<compile_context>
chip_gen: v5e
topology: v5e:2x2
jax: 0.10.0
libtpu: 0.0.40
codegen_flags: <defaults>
</compile_context>

<pallas_src>
import functools

import jax
import jax.numpy as jnp
from jax.experimental import pallas as pl
from jax.experimental.pallas import tpu as pltpu


def _round_up(n, m):
    return ((n + m - 1) // m) * m


# ---------------------------------------------------------------------------
# Kernel 1: multimodal self-attention core, one batch element per grid step.
# ---------------------------------------------------------------------------
def _attention_kernel(x_ref, wq_ref, wk_ref, wv_ref, bq_ref, bk_ref, bv_ref,
                      mrow_ref, mcol_ref, segw_ref, ctx_ref, prob_ref,
                      *, num_head, seg_bounds, scale):
    x = x_ref[0]                                                 # (S, H)
    S = x.shape[0]

    # Pairwise mask = outer product of the 1-D attention mask (shared by heads).
    pair = mcol_ref[0] * mrow_ref[0]                             # (S,1)*(1,S)->(S,S)
    segw = segw_ref[...]                                         # (1, S)

    # Static per-modality column masks (w / v / a segments of the key axis).
    col = jax.lax.broadcasted_iota(jnp.int32, (S, S), 1)
    seg_masks = [jnp.logical_and(col >= lo, col < hi)
                 for lo, hi in zip(seg_bounds[:-1], seg_bounds[1:])]

    # TODO(synk): for large num_head, bound live ranges with a (B, head) grid
    # axis instead of this unrolled Python loop.
    ctx_parts = []
    for h in range(num_head):
        # Head projections: native-dtype operands, f32 accumulation on the MXU.
        q = jnp.dot(x, wq_ref[h], preferred_element_type=jnp.float32) + bq_ref[h]
        k = jnp.dot(x, wk_ref[h], preferred_element_type=jnp.float32) + bk_ref[h]
        v = jnp.dot(x, wv_ref[h], preferred_element_type=jnp.float32) + bv_ref[h]

        # Scaled scores q @ k^T (contract the head dim), then masked_fill(-1e9).
        s = jax.lax.dot_general(q, k, (((1,), (1,)), ((), ())),
                                preferred_element_type=jnp.float32) * scale
        s = jnp.where(pair == 0.0, -1e9, s)

        # Per-modality softmax over the key axis.  Build a per-column segment
        # max / denominator so the expensive exp is evaluated only once.
        mx = jnp.zeros_like(s)
        for m in seg_masks:
            seg_max = jnp.max(jnp.where(m, s, -jnp.inf), axis=-1, keepdims=True)
            mx = mx + jnp.where(m, seg_max, 0.0)
        p = jnp.exp(s - mx)
        denom = jnp.zeros_like(s)
        for m in seg_masks:
            seg_sum = jnp.sum(jnp.where(m, p, 0.0), axis=-1, keepdims=True)
            denom = denom + jnp.where(m, seg_sum, 0.0)

        # Learnable per-modality weights (the "mask2" w_a/w_b/w_c row).
        prob = p / denom * segw
        prob_ref[0, h] = prob.astype(prob_ref.dtype)

        # TODO(synk): attention dropout (dropout_1) is identity in eval mode.
        ctx_parts.append(jnp.dot(prob.astype(v.dtype), v,
                                 preferred_element_type=jnp.float32))

    # Concatenate heads -> lane-dense (S, H) context store.
    ctx_ref[0] = jnp.concatenate(ctx_parts, axis=-1).astype(ctx_ref.dtype)


# ---------------------------------------------------------------------------
# Kernel 2: attention output dense + LN, then Feed_Forward + LN, row-tiled.
# ---------------------------------------------------------------------------
def _post_attention_kernel(ctx_ref, x_ref, wd_ref, bd_ref, g1_ref, be1_ref,
                           w1_ref, b1_ref, w2_ref, b2_ref, g2_ref, be2_ref,
                           o_ref, *, eps):
    def layer_norm(z, gamma, beta):
        mean = jnp.mean(z, axis=-1, keepdims=True)
        var = jnp.mean((z - mean) * (z - mean), axis=-1, keepdims=True)
        return (z - mean) * jax.lax.rsqrt(var + eps) * gamma + beta

    x = x_ref[...]

    # Attention output projection + residual + LayerNorm.
    a = jnp.dot(ctx_ref[...], wd_ref[...], preferred_element_type=jnp.float32)
    # TODO(synk): dropout_2 and the FFN hidden dropout are identity in eval mode.
    a = layer_norm(a + bd_ref[...] + x, g1_ref[...], be1_ref[...])

    # Feed_Forward: GELU(a @ W1 + b1) @ W2 + b2, residual + LayerNorm.
    h = jnp.dot(a.astype(w1_ref.dtype), w1_ref[...],
                preferred_element_type=jnp.float32)
    h = jax.nn.gelu(h + b1_ref[...], approximate=False)
    y = jnp.dot(h.astype(w2_ref.dtype), w2_ref[...],
                preferred_element_type=jnp.float32)
    out = layer_norm(y + b2_ref[...] + a, g2_ref[...], be2_ref[...])
    o_ref[...] = out.astype(o_ref.dtype)


# ---------------------------------------------------------------------------
# Wrapper
# ---------------------------------------------------------------------------
def multimodal_layer(hidden_state, attention_mask, params, config, *, tm_max=256):
    B, S, H = hidden_state.shape
    nh = config['num_head']
    hd = H // nh
    w_len, v_len, a_len = config['w_len'], config['v_len'], config['a_len']
    assert S == w_len + v_len + a_len, "sequence must be w_len + v_len + a_len"
    eps = config['layer_norm_eps']
    inter = params['w1'].shape[1]
    dt = hidden_state.dtype

    # ---- attention core (one batch element per grid step) ----
    def head_w(w):   # (H, H) -> (nh, H, hd): head-sliced output columns
        return w.reshape(H, nh, hd).transpose(1, 0, 2)

    def head_b(b):   # (H,) -> (nh, 1, hd)
        return b.reshape(nh, 1, hd)

    mask = attention_mask.astype(jnp.float32)
    mask_row = mask.reshape(B, 1, S)
    mask_col = mask.reshape(B, S, 1)
    segw = jnp.concatenate(
        [jnp.broadcast_to(params['w_a'], (1, w_len)),
         jnp.broadcast_to(params['w_b'], (1, v_len)),
         jnp.broadcast_to(params['w_c'], (1, a_len))], axis=1).astype(jnp.float32)

    attn_kernel = functools.partial(
        _attention_kernel,
        num_head=nh,
        seg_bounds=(0, w_len, w_len + v_len, S),
        scale=float(1.0 / (hd ** 0.5)))

    ctx, probs = pl.pallas_call(
        attn_kernel,
        out_shape=(jax.ShapeDtypeStruct((B, S, H), dt),
                   jax.ShapeDtypeStruct((B, nh, S, S), dt)),
        grid_spec=pltpu.PrefetchScalarGridSpec(
            num_scalar_prefetch=0,
            grid=(B,),
            in_specs=[
                pl.BlockSpec((1, S, H), lambda b: (b, 0, 0)),     # x rows
                pl.BlockSpec((nh, H, hd), lambda b: (0, 0, 0)),   # Wq (all heads)
                pl.BlockSpec((nh, H, hd), lambda b: (0, 0, 0)),   # Wk (all heads)
                pl.BlockSpec((nh, H, hd), lambda b: (0, 0, 0)),   # Wv (all heads)
                pl.BlockSpec((nh, 1, hd), lambda b: (0, 0, 0)),   # bq
                pl.BlockSpec((nh, 1, hd), lambda b: (0, 0, 0)),   # bk
                pl.BlockSpec((nh, 1, hd), lambda b: (0, 0, 0)),   # bv
                pl.BlockSpec((1, 1, S), lambda b: (b, 0, 0)),     # mask (row form)
                pl.BlockSpec((1, S, 1), lambda b: (b, 0, 0)),     # mask (col form)
                pl.BlockSpec((1, S), lambda b: (0, 0)),           # modality weights
            ],
            out_specs=[
                pl.BlockSpec((1, S, H), lambda b: (b, 0, 0)),          # context
                pl.BlockSpec((1, nh, S, S), lambda b: (b, 0, 0, 0)),   # attn probs
            ],
        ),
        compiler_params=pltpu.CompilerParams(
            dimension_semantics=("parallel",),
            vmem_limit_bytes=64 * 1024 * 1024),
    )(hidden_state, head_w(params['wq']), head_w(params['wk']),
      head_w(params['wv']), head_b(params['bq']), head_b(params['bk']),
      head_b(params['bv']), mask_row, mask_col, segw)

    # Context already comes back as (B, S, H); just flatten rows.
    ctx2 = ctx.reshape(B * S, H)
    x2 = hidden_state.reshape(B * S, H)

    # ---- attention output dense + LN, then Feed_Forward + LN (row tiled) ----
    n = B * S
    # Big row tile (<= tm_max), but keep >= 2 grid steps when possible so both
    # v7x TensorCores get work; pad rows instead of asserting divisibility.
    tm = min(tm_max, _round_up(pl.cdiv(n, 2), 8)) if n > 8 else 8
    n_pad = _round_up(n, tm)
    if n_pad != n:
        ctx2 = jnp.pad(ctx2, ((0, n_pad - n), (0, 0)))
        x2 = jnp.pad(x2, ((0, n_pad - n), (0, 0)))

    # TODO(synk): for production sizes (H~4k, I~16k) add a K-tiling grid axis
    # over the intermediate dim and single-buffer the constant weight blocks
    # (pipeline_mode=pl.Buffered(1)) instead of keeping both weights resident.
    post_kernel = functools.partial(_post_attention_kernel, eps=eps)
    out = pl.pallas_call(
        post_kernel,
        out_shape=jax.ShapeDtypeStruct((n_pad, H), dt),
        grid_spec=pltpu.PrefetchScalarGridSpec(
            num_scalar_prefetch=0,
            grid=(n_pad // tm,),
            in_specs=[
                pl.BlockSpec((tm, H), lambda i: (i, 0)),        # context rows
                pl.BlockSpec((tm, H), lambda i: (i, 0)),        # residual rows
                pl.BlockSpec((H, H), lambda i: (0, 0)),         # Wd
                pl.BlockSpec((1, H), lambda i: (0, 0)),         # bd
                pl.BlockSpec((1, H), lambda i: (0, 0)),         # LN1 gamma
                pl.BlockSpec((1, H), lambda i: (0, 0)),         # LN1 beta
                pl.BlockSpec((H, inter), lambda i: (0, 0)),     # W1
                pl.BlockSpec((1, inter), lambda i: (0, 0)),     # b1
                pl.BlockSpec((inter, H), lambda i: (0, 0)),     # W2
                pl.BlockSpec((1, H), lambda i: (0, 0)),         # b2
                pl.BlockSpec((1, H), lambda i: (0, 0)),         # LN2 gamma
                pl.BlockSpec((1, H), lambda i: (0, 0)),         # LN2 beta
            ],
            out_specs=pl.BlockSpec((tm, H), lambda i: (i, 0)),
        ),
        compiler_params=pltpu.CompilerParams(
            dimension_semantics=("parallel",),
            vmem_limit_bytes=64 * 1024 * 1024),
    )(ctx2, x2, params['wd'], params['bd'].reshape(1, H),
      params['ln1_gamma'].reshape(1, H), params['ln1_beta'].reshape(1, H),
      params['w1'], params['b1'].reshape(1, inter),
      params['w2'], params['b2'].reshape(1, H),
      params['ln2_gamma'].reshape(1, H), params['ln2_beta'].reshape(1, H))

    out = out[:n].reshape(B, S, H)
    if config['output_attention']:
        return out, probs
    return (out,)


# ---------------------------------------------------------------------------
# Pure-JAX reference (mirrors the PyTorch forward, eval mode).
# ---------------------------------------------------------------------------
def _reference(x, mask, p, config):
    H = x.shape[-1]
    nh = config['num_head']
    hd = H // nh
    wl, vl, al = config['w_len'], config['v_len'], config['a_len']
    eps = config['layer_norm_eps']

    def split_heads(t):
        b, s, _ = t.shape
        return t.reshape(b, s, nh, hd).transpose(0, 2, 1, 3)

    q = split_heads(x @ p['wq'] + p['bq'])
    k = split_heads(x @ p['wk'] + p['bk'])
    v = split_heads(x @ p['wv'] + p['bv'])
    s = jnp.einsum('bhqd,bhkd->bhqk', q, k) / (hd ** 0.5)
    pair = mask[:, :, None] * mask[:, None, :]
    s = jnp.where((pair == 0.0)[:, None], -1e9, s)
    prob = jnp.concatenate([
        jax.nn.softmax(s[..., :wl], axis=-1),
        jax.nn.softmax(s[..., wl:wl + vl], axis=-1),
        jax.nn.softmax(s[..., wl + vl:], axis=-1)], axis=-1)
    segw = jnp.concatenate([
        jnp.broadcast_to(p['w_a'], (wl,)),
        jnp.broadcast_to(p['w_b'], (vl,)),
        jnp.broadcast_to(p['w_c'], (al,))])
    prob = prob * segw
    ctx = jnp.einsum('bhqk,bhkd->bhqd', prob, v)
    b, _, sq, _ = ctx.shape
    ctx = ctx.transpose(0, 2, 1, 3).reshape(b, sq, H)

    def ln(z, g, be):
        m = jnp.mean(z, -1, keepdims=True)
        var = jnp.mean((z - m) ** 2, -1, keepdims=True)
        return (z - m) * jax.lax.rsqrt(var + eps) * g + be

    a = ln(ctx @ p['wd'] + p['bd'] + x, p['ln1_gamma'], p['ln1_beta'])
    h = jax.nn.gelu(a @ p['w1'] + p['b1'], approximate=False)
    y = h @ p['w2'] + p['b2']
    out = ln(y + a, p['ln2_gamma'], p['ln2_beta'])
    return out, prob


if __name__ == "__main__":
    config = dict(hidden_size=128, intermediate_size=256, num_head=4,
                  w_len=16, v_len=16, a_len=16, modal_size=3,
                  layer_norm_eps=1e-12, hidden_dropout_prob=0.1,
                  attention_dropout_prob=0.1, output_attention=True)
    B = 2
    S = config['w_len'] + config['v_len'] + config['a_len']
    H, inter = config['hidden_size'], config['intermediate_size']

    key = jax.random.PRNGKey(0)
    ks = jax.random.split(key, 16)

    def dense_w(k, fan_in, shape):    # Linear weights pre-transposed to (in, out)
        return jax.random.normal(k, shape, jnp.float32) * (1.0 / fan_in) ** 0.5

    def dense_b(k, nfeat):
        return jax.random.normal(k, (nfeat,), jnp.float32) * 0.02

    params = dict(
        wq=dense_w(ks[0], H, (H, H)), bq=dense_b(ks[1], H),
        wk=dense_w(ks[2], H, (H, H)), bk=dense_b(ks[3], H),
        wv=dense_w(ks[4], H, (H, H)), bv=dense_b(ks[5], H),
        wd=dense_w(ks[6], H, (H, H)), bd=dense_b(ks[7], H),
        w1=dense_w(ks[8], H, (H, inter)), b1=dense_b(ks[9], inter),
        w2=dense_w(ks[10], inter, (inter, H)), b2=dense_b(ks[11], H),
        ln1_gamma=jnp.ones((H,), jnp.float32), ln1_beta=jnp.zeros((H,), jnp.float32),
        ln2_gamma=jnp.ones((H,), jnp.float32), ln2_beta=jnp.zeros((H,), jnp.float32),
        w_a=jnp.asarray(0.62, jnp.float32), w_b=jnp.asarray(0.2, jnp.float32),
        w_c=jnp.asarray(0.2, jnp.float32))

    x = jax.random.normal(ks[12], (B, S, H), jnp.float32)
    attention_mask = (jax.random.uniform(ks[13], (B, S)) > 0.2).astype(jnp.float32)

    out, probs = multimodal_layer(x, attention_mask, params, config)
    out = jax.block_until_ready(out)
    probs = jax.block_until_ready(probs)

    ref_out, ref_prob = _reference(x, attention_mask, params, config)
    assert out.shape == (B, S, H)
    assert probs.shape == (B, config['num_head'], S, S)
    assert jnp.allclose(out, ref_out, atol=1e-3, rtol=1e-3), "output mismatch"
    assert jnp.allclose(probs, ref_prob, atol=1e-3, rtol=1e-3), "attention prob mismatch"

    print("KERNEL_OK")
</pallas_src>

<mosaic_0001>
module attributes {stable_mosaic.version = 11 : i64} {
  func.func @_attention_kernel(%arg0: i32, %arg1: memref<1x48x128xf32, #tpu.memory_space<vmem>>, %arg2: memref<4x128x32xf32, #tpu.memory_space<vmem>>, %arg3: memref<4x128x32xf32, #tpu.memory_space<vmem>>, %arg4: memref<4x128x32xf32, #tpu.memory_space<vmem>>, %arg5: memref<4x1x32xf32, #tpu.memory_space<vmem>>, %arg6: memref<4x1x32xf32, #tpu.memory_space<vmem>>, %arg7: memref<4x1x32xf32, #tpu.memory_space<vmem>>, %arg8: memref<1x1x48xf32, #tpu.memory_space<vmem>>, %arg9: memref<1x48x1xf32, #tpu.memory_space<vmem>>, %arg10: memref<1x48xf32, #tpu.memory_space<vmem>>, %arg11: memref<1x48x128xf32, #tpu.memory_space<vmem>>, %arg12: memref<1x4x48x48xf32, #tpu.memory_space<vmem>>) attributes {dimension_semantics = [#tpu.dimension_semantics<parallel>], iteration_bounds = array<i64: 2>, scalar_prefetch = 0 : i64, scratch_operands = 0 : i64, tpu.core_type = #tpu.core_type<tc>, window_params = [{transform_indices = @transform_0, window_bounds = array<i64: 1, 48, 128>}, {pipeline_mode = #tpu.pipeline_mode<synchronous>, transform_indices = @transform_1, window_bounds = array<i64: 4, 128, 32>}, {pipeline_mode = #tpu.pipeline_mode<synchronous>, transform_indices = @transform_2, window_bounds = array<i64: 4, 128, 32>}, {pipeline_mode = #tpu.pipeline_mode<synchronous>, transform_indices = @transform_3, window_bounds = array<i64: 4, 128, 32>}, {pipeline_mode = #tpu.pipeline_mode<synchronous>, transform_indices = @transform_4, window_bounds = array<i64: 4, 1, 32>}, {pipeline_mode = #tpu.pipeline_mode<synchronous>, transform_indices = @transform_5, window_bounds = array<i64: 4, 1, 32>}, {pipeline_mode = #tpu.pipeline_mode<synchronous>, transform_indices = @transform_6, window_bounds = array<i64: 4, 1, 32>}, {transform_indices = @transform_7, window_bounds = array<i64: 1, 1, 48>}, {transform_indices = @transform_8, window_bounds = array<i64: 1, 48, 1>}, {pipeline_mode = #tpu.pipeline_mode<synchronous>, transform_indices = @transform_9, window_bounds = array<i64: 1, 48>}, {transform_indices = @transform_10, window_bounds = array<i64: 1, 48, 128>}, {transform_indices = @transform_11, window_bounds = array<i64: 1, 4, 48, 48>}]} {
    %c0 = arith.constant 0 : index
    %c0_0 = arith.constant 0 : index
    %c0_1 = arith.constant 0 : index
    %0 = vector.load %arg1[%c0, %c0_0, %c0_1] : memref<1x48x128xf32, #tpu.memory_space<vmem>>, vector<1x48x128xf32>
    %1 = vector.shape_cast %0 : vector<1x48x128xf32> to vector<48x128xf32>
    %c0_2 = arith.constant 0 : index
    %c0_3 = arith.constant 0 : index
    %c0_4 = arith.constant 0 : index
    %2 = vector.load %arg9[%c0_2, %c0_3, %c0_4] : memref<1x48x1xf32, #tpu.memory_space<vmem>>, vector<1x48x1xf32>
    %3 = vector.shape_cast %2 : vector<1x48x1xf32> to vector<48x1xf32>
    %c0_5 = arith.constant 0 : index
    %c0_6 = arith.constant 0 : index
    %c0_7 = arith.constant 0 : index
    %4 = vector.load %arg8[%c0_5, %c0_6, %c0_7] : memref<1x1x48xf32, #tpu.memory_space<vmem>>, vector<1x1x48xf32>
    %5 = vector.shape_cast %4 : vector<1x1x48xf32> to vector<1x48xf32>
    %6 = vector.broadcast %3 : vector<48x1xf32> to vector<48x48xf32>
    %7 = vector.broadcast %5 : vector<1x48xf32> to vector<48x48xf32>
    %8 = arith.mulf %6, %7 : vector<48x48xf32>
    %c0_8 = arith.constant 0 : index
    %c0_9 = arith.constant 0 : index
    %9 = vector.load %arg10[%c0_8, %c0_9] : memref<1x48xf32, #tpu.memory_space<vmem>>, vector<1x48xf32>
    %10 = tpu.iota {dimensions = array<i32: 1>} : vector<48x48xi32>
    %c0_i32 = arith.constant 0 : i32
    %11 = vector.broadcast %c0_i32 : i32 to vector<48x48xi32>
    %12 = arith.cmpi sge, %10, %11 : vector<48x48xi32>
    %c16_i32 = arith.constant 16 : i32
    %13 = vector.broadcast %c16_i32 : i32 to vector<48x48xi32>
    %14 = arith.cmpi slt, %10, %13 : vector<48x48xi32>
    %15 = arith.andi %12, %14 : vector<48x48xi1>
    %c16_i32_10 = arith.constant 16 : i32
    %16 = vector.broadcast %c16_i32_10 : i32 to vector<48x48xi32>
    %17 = arith.cmpi sge, %10, %16 : vector<48x48xi32>
    %c32_i32 = arith.constant 32 : i32
    %18 = vector.broadcast %c32_i32 : i32 to vector<48x48xi32>
    %19 = arith.cmpi slt, %10, %18 : vector<48x48xi32>
    %20 = arith.andi %17, %19 : vector<48x48xi1>
    %c32_i32_11 = arith.constant 32 : i32
    %21 = vector.broadcast %c32_i32_11 : i32 to vector<48x48xi32>
    %22 = arith.cmpi sge, %10, %21 : vector<48x48xi32>
    %c48_i32 = arith.constant 48 : i32
    %23 = vector.broadcast %c48_i32 : i32 to vector<48x48xi32>
    %24 = arith.cmpi slt, %10, %23 : vector<48x48xi32>
    %25 = arith.andi %22, %24 : vector<48x48xi1>
    %c0_12 = arith.constant 0 : index
    %c0_13 = arith.constant 0 : index
    %c0_14 = arith.constant 0 : index
    %26 = vector.load %arg2[%c0_12, %c0_13, %c0_14] : memref<4x128x32xf32, #tpu.memory_space<vmem>>, vector<1x128x32xf32>
    %27 = vector.shape_cast %26 : vector<1x128x32xf32> to vector<128x32xf32>
    %cst = arith.constant dense<0.000000e+00> : vector<48x32xf32>
    %28 = tpu.matmul %1, %27, %cst {dimension_numbers = #tpu.dot_dimension_numbers<[1], [0], [0], [1], [0, 0, 1, 1], [], []>} : vector<48x128xf32>, vector<128x32xf32>, vector<48x32xf32> -> vector<48x32xf32>
    %c0_15 = arith.constant 0 : index
    %c0_16 = arith.constant 0 : index
    %c0_17 = arith.constant 0 : index
    %29 = vector.load %arg5[%c0_15, %c0_16, %c0_17] : memref<4x1x32xf32, #tpu.memory_space<vmem>>, vector<1x1x32xf32>
    %30 = vector.shape_cast %29 : vector<1x1x32xf32> to vector<1x32xf32>
    %31 = vector.broadcast %30 : vector<1x32xf32> to vector<48x32xf32>
    %32 = arith.addf %28, %31 : vector<48x32xf32>
    %c0_18 = arith.constant 0 : index
    %c0_19 = arith.constant 0 : index
    %c0_20 = arith.constant 0 : index
    %33 = vector.load %arg3[%c0_18, %c0_19, %c0_20] : memref<4x128x32xf32, #tpu.memory_space<vmem>>, vector<1x128x32xf32>
    %34 = vector.shape_cast %33 : vector<1x128x32xf32> to vector<128x32xf32>
    %cst_21 = arith.constant dense<0.000000e+00> : vector<48x32xf32>
    %35 = tpu.matmul %1, %34, %cst_21 {dimension_numbers = #tpu.dot_dimension_numbers<[1], [0], [0], [1], [0, 0, 1, 1], [], []>} : vector<48x128xf32>, vector<128x32xf32>, vector<48x32xf32> -> vector<48x32xf32>
    %c0_22 = arith.constant 0 : index
    %c0_23 = arith.constant 0 : index
    %c0_24 = arith.constant 0 : index
    %36 = vector.load %arg6[%c0_22, %c0_23, %c0_24] : memref<4x1x32xf32, #tpu.memory_space<vmem>>, vector<1x1x32xf32>
    %37 = vector.shape_cast %36 : vector<1x1x32xf32> to vector<1x32xf32>
    %38 = vector.broadcast %37 : vector<1x32xf32> to vector<48x32xf32>
    %39 = arith.addf %35, %38 : vector<48x32xf32>
    %c0_25 = arith.constant 0 : index
    %c0_26 = arith.constant 0 : index
    %c0_27 = arith.constant 0 : index
    %40 = vector.load %arg4[%c0_25, %c0_26, %c0_27] : memref<4x128x32xf32, #tpu.memory_space<vmem>>, vector<1x128x32xf32>
    %41 = vector.shape_cast %40 : vector<1x128x32xf32> to vector<128x32xf32>
    %cst_28 = arith.constant dense<0.000000e+00> : vector<48x32xf32>
    %42 = tpu.matmul %1, %41, %cst_28 {dimension_numbers = #tpu.dot_dimension_numbers<[1], [0], [0], [1], [0, 0, 1, 1], [], []>} : vector<48x128xf32>, vector<128x32xf32>, vector<48x32xf32> -> vector<48x32xf32>
    %c0_29 = arith.constant 0 : index
    %c0_30 = arith.constant 0 : index
    %c0_31 = arith.constant 0 : index
    %43 = vector.load %arg7[%c0_29, %c0_30, %c0_31] : memref<4x1x32xf32, #tpu.memory_space<vmem>>, vector<1x1x32xf32>
    %44 = vector.shape_cast %43 : vector<1x1x32xf32> to vector<1x32xf32>
    %45 = vector.broadcast %44 : vector<1x32xf32> to vector<48x32xf32>
    %46 = arith.addf %42, %45 : vector<48x32xf32>
    %cst_32 = arith.constant dense<0.000000e+00> : vector<48x48xf32>
    %47 = tpu.matmul %32, %39, %cst_32 {dimension_numbers = #tpu.dot_dimension_numbers<[1], [1], [0], [0], [0, 0, 1, 0], [], []>} : vector<48x32xf32>, vector<48x32xf32>, vector<48x48xf32> -> vector<48x48xf32>
    %cst_33 = arith.constant 0.176776692 : f32
    %48 = vector.broadcast %cst_33 : f32 to vector<48x48xf32>
    %49 = arith.mulf %47, %48 : vector<48x48xf32>
    %cst_34 = arith.constant 0.000000e+00 : f32
    %50 = vector.broadcast %cst_34 : f32 to vector<48x48xf32>
    %51 = arith.cmpf oeq, %8, %50 : vector<48x48xf32>
    %cst_35 = arith.constant -1.000000e+09 : f32
    %52 = vector.broadcast %cst_35 : f32 to vector<48x48xf32>
    %53 = arith.select %51, %52, %49 : vector<48x48xi1>, vector<48x48xf32>
    %cst_36 = arith.constant 0.000000e+00 : f32
    %54 = vector.broadcast %cst_36 : f32 to vector<48x48xf32>
    %cst_37 = arith.constant 0xFF800000 : f32
    %55 = vector.broadcast %cst_37 : f32 to vector<48x48xf32>
    %56 = arith.select %15, %53, %55 : vector<48x48xi1>, vector<48x48xf32>
    %cst_38 = arith.constant dense<0xFF800000> : vector<48xf32>
    %57 = vector.multi_reduction <maximumf>, %56, %cst_38 [1] : vector<48x48xf32> to vector<48xf32>
    %58 = vector.shape_cast %57 : vector<48xf32> to vector<48x1xf32>
    %cst_39 = arith.constant 0.000000e+00 : f32
    %59 = vector.shape_cast %58 : vector<48x1xf32> to vector<48x1xf32>
    %60 = vector.broadcast %59 : vector<48x1xf32> to vector<48x48xf32>
    %61 = vector.broadcast %cst_39 : f32 to vector<48x48xf32>
    %62 = arith.select %15, %60, %61 : vector<48x48xi1>, vector<48x48xf32>
    %63 = arith.addf %54, %62 : vector<48x48xf32>
    %cst_40 = arith.constant 0xFF800000 : f32
    %64 = vector.broadcast %cst_40 : f32 to vector<48x48xf32>
    %65 = arith.select %20, %53, %64 : vector<48x48xi1>, vector<48x48xf32>
    %cst_41 = arith.constant dense<0xFF800000> : vector<48xf32>
    %66 = vector.multi_reduction <maximumf>, %65, %cst_41 [1] : vector<48x48xf32> to vector<48xf32>
    %67 = vector.shape_cast %66 : vector<48xf32> to vector<48x1xf32>
    %cst_42 = arith.constant 0.000000e+00 : f32
    %68 = vector.shape_cast %67 : vector<48x1xf32> to vector<48x1xf32>
    %69 = vector.broadcast %68 : vector<48x1xf32> to vector<48x48xf32>
    %70 = vector.broadcast %cst_42 : f32 to vector<48x48xf32>
    %71 = arith.select %20, %69, %70 : vector<48x48xi1>, vector<48x48xf32>
    %72 = arith.addf %63, %71 : vector<48x48xf32>
    %cst_43 = arith.constant 0xFF800000 : f32
    %73 = vector.broadcast %cst_43 : f32 to vector<48x48xf32>
    %74 = arith.select %25, %53, %73 : vector<48x48xi1>, vector<48x48xf32>
    %cst_44 = arith.constant dense<0xFF800000> : vector<48xf32>
    %75 = vector.multi_reduction <maximumf>, %74, %cst_44 [1] : vector<48x48xf32> to vector<48xf32>
    %76 = vector.shape_cast %75 : vector<48xf32> to vector<48x1xf32>
    %cst_45 = arith.constant 0.000000e+00 : f32
    %77 = vector.shape_cast %76 : vector<48x1xf32> to vector<48x1xf32>
    %78 = vector.broadcast %77 : vector<48x1xf32> to vector<48x48xf32>
    %79 = vector.broadcast %cst_45 : f32 to vector<48x48xf32>
    %80 = arith.select %25, %78, %79 : vector<48x48xi1>, vector<48x48xf32>
    %81 = arith.addf %72, %80 : vector<48x48xf32>
    %82 = arith.subf %53, %81 : vector<48x48xf32>
    %83 = math.exp %82 : vector<48x48xf32>
    %cst_46 = arith.constant 0.000000e+00 : f32
    %84 = vector.broadcast %cst_46 : f32 to vector<48x48xf32>
    %cst_47 = arith.constant 0.000000e+00 : f32
    %85 = vector.broadcast %cst_47 : f32 to vector<48x48xf32>
    %86 = arith.select %15, %83, %85 : vector<48x48xi1>, vector<48x48xf32>
    %cst_48 = arith.constant dense<0.000000e+00> : vector<48xf32>
    %87 = vector.multi_reduction <add>, %86, %cst_48 [1] : vector<48x48xf32> to vector<48xf32>
    %88 = vector.shape_cast %87 : vector<48xf32> to vector<48x1xf32>
    %cst_49 = arith.constant 0.000000e+00 : f32
    %89 = vector.shape_cast %88 : vector<48x1xf32> to vector<48x1xf32>
    %90 = vector.broadcast %89 : vector<48x1xf32> to vector<48x48xf32>
    %91 = vector.broadcast %cst_49 : f32 to vector<48x48xf32>
    %92 = arith.select %15, %90, %91 : vector<48x48xi1>, vector<48x48xf32>
    %93 = arith.addf %84, %92 : vector<48x48xf32>
    %cst_50 = arith.constant 0.000000e+00 : f32
    %94 = vector.broadcast %cst_50 : f32 to vector<48x48xf32>
    %95 = arith.select %20, %83, %94 : vector<48x48xi1>, vector<48x48xf32>
    %cst_51 = arith.constant dense<0.000000e+00> : vector<48xf32>
    %96 = vector.multi_reduction <add>, %95, %cst_51 [1] : vector<48x48xf32> to vector<48xf32>
    %97 = vector.shape_cast %96 : vector<48xf32> to vector<48x1xf32>
    %cst_52 = arith.constant 0.000000e+00 : f32
    %98 = vector.shape_cast %97 : vector<48x1xf32> to vector<48x1xf32>
    %99 = vector.broadcast %98 : vector<48x1xf32> to vector<48x48xf32>
    %100 = vector.broadcast %cst_52 : f32 to vector<48x48xf32>
    %101 = arith.select %20, %99, %100 : vector<48x48xi1>, vector<48x48xf32>
    %102 = arith.addf %93, %101 : vector<48x48xf32>
    %cst_53 = arith.constant 0.000000e+00 : f32
    %103 = vector.broadcast %cst_53 : f32 to vector<48x48xf32>
    %104 = arith.select %25, %83, %103 : vector<48x48xi1>, vector<48x48xf32>
    %cst_54 = arith.constant dense<0.000000e+00> : vector<48xf32>
    %105 = vector.multi_reduction <add>, %104, %cst_54 [1] : vector<48x48xf32> to vector<48xf32>
    %106 = vector.shape_cast %105 : vector<48xf32> to vector<48x1xf32>
    %cst_55 = arith.constant 0.000000e+00 : f32
    %107 = vector.shape_cast %106 : vector<48x1xf32> to vector<48x1xf32>
    %108 = vector.broadcast %107 : vector<48x1xf32> to vector<48x48xf32>
    %109 = vector.broadcast %cst_55 : f32 to vector<48x48xf32>
    %110 = arith.select %25, %108, %109 : vector<48x48xi1>, vector<48x48xf32>
    %111 = arith.addf %102, %110 : vector<48x48xf32>
    %112 = arith.divf %83, %111 : vector<48x48xf32>
    %113 = vector.broadcast %9 : vector<1x48xf32> to vector<48x48xf32>
    %114 = arith.mulf %112, %113 : vector<48x48xf32>
    %c0_56 = arith.constant 0 : index
    %c0_57 = arith.constant 0 : index
    %c0_58 = arith.constant 0 : index
    %c0_59 = arith.constant 0 : index
    %115 = vector.load %arg12[%c0_56, %c0_57, %c0_58, %c0_59] : memref<1x4x48x48xf32, #tpu.memory_space<vmem>>, vector<1x1x48x48xf32>
    %116 = vector.shape_cast %115 : vector<1x1x48x48xf32> to vector<48x48xf32>
    %117 = vector.shape_cast %114 : vector<48x48xf32> to vector<1x1x48x48xf32>
    tpu.vector_store %arg12[%c0_56, %c0_57, %c0_58, %c0_59], %117 {strides = array<i32>} : memref<1x4x48x48xf32, #tpu.memory_space<vmem>>, vector<1x1x48x48xf32>,
    %cst_60 = arith.constant dense<0.000000e+00> : vector<48x32xf32>
    %118 = tpu.matmul %114, %46, %cst_60 {dimension_numbers = #tpu.dot_dimension_numbers<[1], [0], [0], [1], [0, 0, 1, 1], [], []>} : vector<48x48xf32>, vector<48x32xf32>, vector<48x32xf32> -> vector<48x32xf32>
    %c1 = arith.constant 1 : index
    %c0_61 = arith.constant 0 : index
    %c0_62 = arith.constant 0 : index
    %119 = vector.load %arg2[%c1, %c0_61, %c0_62] : memref<4x128x32xf32, #tpu.memory_space<vmem>>, vector<1x128x32xf32>
    %120 = vector.shape_cast %119 : vector<1x128x32xf32> to vector<128x32xf32>
    %cst_63 = arith.constant dense<0.000000e+00> : vector<48x32xf32>
    %121 = tpu.matmul %1, %120, %cst_63 {dimension_numbers = #tpu.dot_dimension_numbers<[1], [0], [0], [1], [0, 0, 1, 1], [], []>} : vector<48x128xf32>, vector<128x32xf32>, vector<48x32xf32> -> vector<48x32xf32>
    %c1_64 = arith.constant 1 : index
    %c0_65 = arith.constant 0 : index
    %c0_66 = arith.constant 0 : index
    %122 = vector.load %arg5[%c1_64, %c0_65, %c0_66] : memref<4x1x32xf32, #tpu.memory_space<vmem>>, vector<1x1x32xf32>
    %123 = vector.shape_cast %122 : vector<1x1x32xf32> to vector<1x32xf32>
    %124 = vector.broadcast %123 : vector<1x32xf32> to vector<48x32xf32>
    %125 = arith.addf %121, %124 : vector<48x32xf32>
    %c1_67 = arith.constant 1 : index
    %c0_68 = arith.constant 0 : index
    %c0_69 = arith.constant 0 : index
    %126 = vector.load %arg3[%c1_67, %c0_68, %c0_69] : memref<4x128x32xf32, #tpu.memory_space<vmem>>, vector<1x128x32xf32>
    %127 = vector.shape_cast %126 : vector<1x128x32xf32> to vector<128x32xf32>
    %cst_70 = arith.constant dense<0.000000e+00> : vector<48x32xf32>
    %128 = tpu.matmul %1, %127, %cst_70 {dimension_numbers = #tpu.dot_dimension_numbers<[1], [0], [0], [1], [0, 0, 1, 1], [], []>} : vector<48x128xf32>, vector<128x32xf32>, vector<48x32xf32> -> vector<48x32xf32>
    %c1_71 = arith.constant 1 : index
    %c0_72 = arith.constant 0 : index
    %c0_73 = arith.constant 0 : index
    %129 = vector.load %arg6[%c1_71, %c0_72, %c0_73] : memref<4x1x32xf32, #tpu.memory_space<vmem>>, vector<1x1x32xf32>
    %130 = vector.shape_cast %129 : vector<1x1x32xf32> to vector<1x32xf32>
    %131 = vector.broadcast %130 : vector<1x32xf32> to vector<48x32xf32>
    %132 = arith.addf %128, %131 : vector<48x32xf32>
    %c1_74 = arith.constant 1 : index
    %c0_75 = arith.constant 0 : index
    %c0_76 = arith.constant 0 : index
    %133 = vector.load %arg4[%c1_74, %c0_75, %c0_76] : memref<4x128x32xf32, #tpu.memory_space<vmem>>, vector<1x128x32xf32>
    %134 = vector.shape_cast %133 : vector<1x128x32xf32> to vector<128x32xf32>
    %cst_77 = arith.constant dense<0.000000e+00> : vector<48x32xf32>
    %135 = tpu.matmul %1, %134, %cst_77 {dimension_numbers = #tpu.dot_dimension_numbers<[1], [0], [0], [1], [0, 0, 1, 1], [], []>} : vector<48x128xf32>, vector<128x32xf32>, vector<48x32xf32> -> vector<48x32xf32>
    %c1_78 = arith.constant 1 : index
    %c0_79 = arith.constant 0 : index
    %c0_80 = arith.constant 0 : index
    %136 = vector.load %arg7[%c1_78, %c0_79, %c0_80] : memref<4x1x32xf32, #tpu.memory_space<vmem>>, vector<1x1x32xf32>
    %137 = vector.shape_cast %136 : vector<1x1x32xf32> to vector<1x32xf32>
    %138 = vector.broadcast %137 : vector<1x32xf32> to vector<48x32xf32>
    %139 = arith.addf %135, %138 : vector<48x32xf32>
    %cst_81 = arith.constant dense<0.000000e+00> : vector<48x48xf32>
    %140 = tpu.matmul %125, %132, %cst_81 {dimension_numbers = #tpu.dot_dimension_numbers<[1], [1], [0], [0], [0, 0, 1, 0], [], []>} : vector<48x32xf32>, vector<48x32xf32>, vector<48x48xf32> -> vector<48x48xf32>
    %cst_82 = arith.constant 0.176776692 : f32
    %141 = vector.broadcast %cst_82 : f32 to vector<48x48xf32>
    %142 = arith.mulf %140, %141 : vector<48x48xf32>
    %cst_83 = arith.constant 0.000000e+00 : f32
    %143 = vector.broadcast %cst_83 : f32 to vector<48x48xf32>
    %144 = arith.cmpf oeq, %8, %143 : vector<48x48xf32>
    %cst_84 = arith.constant -1.000000e+09 : f32
    %145 = vector.broadcast %cst_84 : f32 to vector<48x48xf32>
    %146 = arith.select %144, %145, %142 : vector<48x48xi1>, vector<48x48xf32>
    %cst_85 = arith.constant 0.000000e+00 : f32
    %147 = vector.broadcast %cst_85 : f32 to vector<48x48xf32>
    %cst_86 = arith.constant 0xFF800000 : f32
    %148 = vector.broadcast %cst_86 : f32 to vector<48x48xf32>
    %149 = arith.select %15, %146, %148 : vector<48x48xi1>, vector<48x48xf32>
    %cst_87 = arith.constant dense<0xFF800000> : vector<48xf32>
    %150 = vector.multi_reduction <maximumf>, %149, %cst_87 [1] : vector<48x48xf32> to vector<48xf32>
    %151 = vector.shape_cast %150 : vector<48xf32> to vector<48x1xf32>
    %cst_88 = arith.constant 0.000000e+00 : f32
    %152 = vector.shape_cast %151 : vector<48x1xf32> to vector<48x1xf32>
    %153 = vector.broadcast %152 : vector<48x1xf32> to vector<48x48xf32>
    %154 = vector.broadcast %cst_88 : f32 to vector<48x48xf32>
    %155 = arith.select %15, %153, %154 : vector<48x48xi1>, vector<48x48xf32>
    %156 = arith.addf %147, %155 : vector<48x48xf32>
    %cst_89 = arith.constant 0xFF800000 : f32
    %157 = vector.broadcast %cst_89 : f32 to vector<48x48xf32>
    %158 = arith.select %20, %146, %157 : vector<48x48xi1>, vector<48x48xf32>
    %cst_90 = arith.constant dense<0xFF800000> : vector<48xf32>
    %159 = vector.multi_reduction <maximumf>, %158, %cst_90 [1] : vector<48x48xf32> to vector<48xf32>
    %160 = vector.shape_cast %159 : vector<48xf32> to vector<48x1xf32>
    %cst_91 = arith.constant 0.000000e+00 : f32
    %161 = vector.shape_cast %160 : vector<48x1xf32> to vector<48x1xf32>
    %162 = vector.broadcast %161 : vector<48x1xf32> to vector<48x48xf32>
    %163 = vector.broadcast %cst_91 : f32 to vector<48x48xf32>
    %164 = arith.select %20, %162, %163 : vector<48x48xi1>, vector<48x48xf32>
    %165 = arith.addf %156, %164 : vector<48x48xf32>
    %cst_92 = arith.constant 0xFF800000 : f32
    %166 = vector.broadcast %cst_92 : f32 to vector<48x48xf32>
    %167 = arith.select %25, %146, %166 : vector<48x48xi1>, vector<48x48xf32>
    %cst_93 = arith.constant dense<0xFF800000> : vector<48xf32>
    %168 = vector.multi_reduction <maximumf>, %167, %cst_93 [1] : vector<48x48xf32> to vector<48xf32>
    %169 = vector.shape_cast %168 : vector<48xf32> to vector<48x1xf32>
    %cst_94 = arith.constant 0.000000e+00 : f32
    %170 = vector.shape_cast %169 : vector<48x1xf32> to vector<48x1xf32>
    %171 = vector.broadcast %170 : vector<48x1xf32> to vector<48x48xf32>
    %172 = vector.broadcast %cst_94 : f32 to vector<48x48xf32>
    %173 = arith.select %25, %171, %172 : vector<48x48xi1>, vector<48x48xf32>
    %174 = arith.addf %165, %173 : vector<48x48xf32>
    %175 = arith.subf %146, %174 : vector<48x48xf32>
    %176 = math.exp %175 : vector<48x48xf32>
    %cst_95 = arith.constant 0.000000e+00 : f32
    %177 = vector.broadcast %cst_95 : f32 to vector<48x48xf32>
    %cst_96 = arith.constant 0.000000e+00 : f32
    %178 = vector.broadcast %cst_96 : f32 to vector<48x48xf32>
    %179 = arith.select %15, %176, %178 : vector<48x48xi1>, vector<48x48xf32>
    %cst_97 = arith.constant dense<0.000000e+00> : vector<48xf32>
    %180 = vector.multi_reduction <add>, %179, %cst_97 [1] : vector<48x48xf32> to vector<48xf32>
    %181 = vector.shape_cast %180 : vector<48xf32> to vector<48x1xf32>
    %cst_98 = arith.constant 0.000000e+00 : f32
    %182 = vector.shape_cast %181 : vector<48x1xf32> to vector<48x1xf32>
    %183 = vector.broadcast %182 : vector<48x1xf32> to vector<48x48xf32>
    %184 = vector.broadcast %cst_98 : f32 to vector<48x48xf32>
    %185 = arith.select %15, %183, %184 : vector<48x48xi1>, vector<48x48xf32>
    %186 = arith.addf %177, %185 : vector<48x48xf32>
    %cst_99 = arith.constant 0.000000e+00 : f32
    %187 = vector.broadcast %cst_99 : f32 to vector<48x48xf32>
    %188 = arith.select %20, %176, %187 : vector<48x48xi1>, vector<48x48xf32>
    %cst_100 = arith.constant dense<0.000000e+00> : vector<48xf32>
    %189 = vector.multi_reduction <add>, %188, %cst_100 [1] : vector<48x48xf32> to vector<48xf32>
    %190 = vector.shape_cast %189 : vector<48xf32> to vector<48x1xf32>
    %cst_101 = arith.constant 0.000000e+00 : f32
    %191 = vector.shape_cast %190 : vector<48x1xf32> to vector<48x1xf32>
    %192 = vector.broadcast %191 : vector<48x1xf32> to vector<48x48xf32>
    %193 = vector.broadcast %cst_101 : f32 to vector<48x48xf32>
    %194 = arith.select %20, %192, %193 : vector<48x48xi1>, vector<48x48xf32>
    %195 = arith.addf %186, %194 : vector<48x48xf32>
    %cst_102 = arith.constant 0.000000e+00 : f32
    %196 = vector.broadcast %cst_102 : f32 to vector<48x48xf32>
    %197 = arith.select %25, %176, %196 : vector<48x48xi1>, vector<48x48xf32>
    %cst_103 = arith.constant dense<0.000000e+00> : vector<48xf32>
    %198 = vector.multi_reduction <add>, %197, %cst_103 [1] : vector<48x48xf32> to vector<48xf32>
    %199 = vector.shape_cast %198 : vector<48xf32> to vector<48x1xf32>
    %cst_104 = arith.constant 0.000000e+00 : f32
    %200 = vector.shape_cast %199 : vector<48x1xf32> to vector<48x1xf32>
    %201 = vector.broadcast %200 : vector<48x1xf32> to vector<48x48xf32>
    %202 = vector.broadcast %cst_104 : f32 to vector<48x48xf32>
    %203 = arith.select %25, %201, %202 : vector<48x48xi1>, vector<48x48xf32>
    %204 = arith.addf %195, %203 : vector<48x48xf32>
    %205 = arith.divf %176, %204 : vector<48x48xf32>
    %206 = vector.broadcast %9 : vector<1x48xf32> to vector<48x48xf32>
    %207 = arith.mulf %205, %206 : vector<48x48xf32>
    %c0_105 = arith.constant 0 : index
    %c1_106 = arith.constant 1 : index
    %c0_107 = arith.constant 0 : index
    %c0_108 = arith.constant 0 : index
    %208 = vector.load %arg12[%c0_105, %c1_106, %c0_107, %c0_108] : memref<1x4x48x48xf32, #tpu.memory_space<vmem>>, vector<1x1x48x48xf32>
    %209 = vector.shape_cast %208 : vector<1x1x48x48xf32> to vector<48x48xf32>
    %210 = vector.shape_cast %207 : vector<48x48xf32> to vector<1x1x48x48xf32>
    tpu.vector_store %arg12[%c0_105, %c1_106, %c0_107, %c0_108], %210 {strides = array<i32>} : memref<1x4x48x48xf32, #tpu.memory_space<vmem>>, vector<1x1x48x48xf32>,
    %cst_109 = arith.constant dense<0.000000e+00> : vector<48x32xf32>
    %211 = tpu.matmul %207, %139, %cst_109 {dimension_numbers = #tpu.dot_dimension_numbers<[1], [0], [0], [1], [0, 0, 1, 1], [], []>} : vector<48x48xf32>, vector<48x32xf32>, vector<48x32xf32> -> vector<48x32xf32>
    %c2 = arith.constant 2 : index
    %c0_110 = arith.constant 0 : index
    %c0_111 = arith.constant 0 : index
    %212 = vector.load %arg2[%c2, %c0_110, %c0_111] : memref<4x128x32xf32, #tpu.memory_space<vmem>>, vector<1x128x32xf32>
    %213 = vector.shape_cast %212 : vector<1x128x32xf32> to vector<128x32xf32>
    %cst_112 = arith.constant dense<0.000000e+00> : vector<48x32xf32>
    %214 = tpu.matmul %1, %213, %cst_112 {dimension_numbers = #tpu.dot_dimension_numbers<[1], [0], [0], [1], [0, 0, 1, 1], [], []>} : vector<48x128xf32>, vector<128x32xf32>, vector<48x32xf32> -> vector<48x32xf32>
    %c2_113 = arith.constant 2 : index
    %c0_114 = arith.constant 0 : index
    %c0_115 = arith.constant 0 : index
    %215 = vector.load %arg5[%c2_113, %c0_114, %c0_115] : memref<4x1x32xf32, #tpu.memory_space<vmem>>, vector<1x1x32xf32>
    %216 = vector.shape_cast %215 : vector<1x1x32xf32> to vector<1x32xf32>
    %217 = vector.broadcast %216 : vector<1x32xf32> to vector<48x32xf32>
    %218 = arith.addf %214, %217 : vector<48x32xf32>
    %c2_116 = arith.constant 2 : index
    %c0_117 = arith.constant 0 : index
    %c0_118 = arith.constant 0 : index
    %219 = vector.load %arg3[%c2_116, %c0_117, %c0_118] : memref<4x128x32xf32, #tpu.memory_space<vmem>>, vector<1x128x32xf32>
    %220 = vector.shape_cast %219 : vector<1x128x32xf32> to vector<128x32xf32>
    %cst_119 = arith.constant dense<0.000000e+00> : vector<48x32xf32>
    %221 = tpu.matmul %1, %220, %cst_119 {dimension_numbers = #tpu.dot_dimension_numbers<[1], [0], [0], [1], [0, 0, 1, 1], [], []>} : vector<48x128xf32>, vector<128x32xf32>, vector<48x32xf32> -> vector<48x32xf32>
    %c2_120 = arith.constant 2 : index
    %c0_121 = arith.constant 0 : index
    %c0_122 = arith.constant 0 : index
    %222 = vector.load %arg6[%c2_120, %c0_121, %c0_122] : memref<4x1x32xf32, #tpu.memory_space<vmem>>, vector<1x1x32xf32>
    %223 = vector.shape_cast %222 : vector<1x1x32xf32> to vector<1x32xf32>
    %224 = vector.broadcast %223 : vector<1x32xf32> to vector<48x32xf32>
    %225 = arith.addf %221, %224 : vector<48x32xf32>
    %c2_123 = arith.constant 2 : index
    %c0_124 = arith.constant 0 : index
    %c0_125 = arith.constant 0 : index
    %226 = vector.load %arg4[%c2_123, %c0_124, %c0_125] : memref<4x128x32xf32, #tpu.memory_space<vmem>>, vector<1x128x32xf32>
    %227 = vector.shape_cast %226 : vector<1x128x32xf32> to vector<128x32xf32>
    %cst_126 = arith.constant dense<0.000000e+00> : vector<48x32xf32>
    %228 = tpu.matmul %1, %227, %cst_126 {dimension_numbers = #tpu.dot_dimension_numbers<[1], [0], [0], [1], [0, 0, 1, 1], [], []>} : vector<48x128xf32>, vector<128x32xf32>, vector<48x32xf32> -> vector<48x32xf32>
    %c2_127 = arith.constant 2 : index
    %c0_128 = arith.constant 0 : index
    %c0_129 = arith.constant 0 : index
    %229 = vector.load %arg7[%c2_127, %c0_128, %c0_129] : memref<4x1x32xf32, #tpu.memory_space<vmem>>, vector<1x1x32xf32>
    %230 = vector.shape_cast %229 : vector<1x1x32xf32> to vector<1x32xf32>
    %231 = vector.broadcast %230 : vector<1x32xf32> to vector<48x32xf32>
    %232 = arith.addf %228, %231 : vector<48x32xf32>
    %cst_130 = arith.constant dense<0.000000e+00> : vector<48x48xf32>
    %233 = tpu.matmul %218, %225, %cst_130 {dimension_numbers = #tpu.dot_dimension_numbers<[1], [1], [0], [0], [0, 0, 1, 0], [], []>} : vector<48x32xf32>, vector<48x32xf32>, vector<48x48xf32> -> vector<48x48xf32>
    %cst_131 = arith.constant 0.176776692 : f32
    %234 = vector.broadcast %cst_131 : f32 to vector<48x48xf32>
    %235 = arith.mulf %233, %234 : vector<48x48xf32>
    %cst_132 = arith.constant 0.000000e+00 : f32
    %236 = vector.broadcast %cst_132 : f32 to vector<48x48xf32>
    %237 = arith.cmpf oeq, %8, %236 : vector<48x48xf32>
    %cst_133 = arith.constant -1.000000e+09 : f32
    %238 = vector.broadcast %cst_133 : f32 to vector<48x48xf32>
    %239 = arith.select %237, %238, %235 : vector<48x48xi1>, vector<48x48xf32>
    %cst_134 = arith.constant 0.000000e+00 : f32
    %240 = vector.broadcast %cst_134 : f32 to vector<48x48xf32>
    %cst_135 = arith.constant 0xFF800000 : f32
    %241 = vector.broadcast %cst_135 : f32 to vector<48x48xf32>
    %242 = arith.select %15, %239, %241 : vector<48x48xi1>, vector<48x48xf32>
    %cst_136 = arith.constant dense<0xFF800000> : vector<48xf32>
    %243 = vector.multi_reduction <maximumf>, %242, %cst_136 [1] : vector<48x48xf32> to vector<48xf32>
    %244 = vector.shape_cast %243 : vector<48xf32> to vector<48x1xf32>
    %cst_137 = arith.constant 0.000000e+00 : f32
    %245 = vector.shape_cast %244 : vector<48x1xf32> to vector<48x1xf32>
    %246 = vector.broadcast %245 : vector<48x1xf32> to vector<48x48xf32>
    %247 = vector.broadcast %cst_137 : f32 to vector<48x48xf32>
    %248 = arith.select %15, %246, %247 : vector<48x48xi1>, vector<48x48xf32>
    %249 = arith.addf %240, %248 : vector<48x48xf32>
    %cst_138 = arith.constant 0xFF800000 : f32
    %250 = vector.broadcast %cst_138 : f32 to vector<48x48xf32>
    %251 = arith.select %20, %239, %250 : vector<48x48xi1>, vector<48x48xf32>
    %cst_139 = arith.constant dense<0xFF800000> : vector<48xf32>
    %252 = vector.multi_reduction <maximumf>, %251, %cst_139 [1] : vector<48x48xf32> to vector<48xf32>
    %253 = vector.shape_cast %252 : vector<48xf32> to vector<48x1xf32>
    %cst_140 = arith.constant 0.000000e+00 : f32
    %254 = vector.shape_cast %253 : vector<48x1xf32> to vector<48x1xf32>
    %255 = vector.broadcast %254 : vector<48x1xf32> to vector<48x48xf32>
    %256 = vector.broadcast %cst_140 : f32 to vector<48x48xf32>
    %257 = arith.select %20, %255, %256 : vector<48x48xi1>, vector<48x48xf32>
    %258 = arith.addf %249, %257 : vector<48x48xf32>
    %cst_141 = arith.constant 0xFF800000 : f32
    %259 = vector.broadcast %cst_141 : f32 to vector<48x48xf32>
    %260 = arith.select %25, %239, %259 : vector<48x48xi1>, vector<48x48xf32>
    %cst_142 = arith.constant dense<0xFF800000> : vector<48xf32>
    %261 = vector.multi_reduction <maximumf>, %260, %cst_142 [1] : vector<48x48xf32> to vector<48xf32>
    %262 = vector.shape_cast %261 : vector<48xf32> to vector<48x1xf32>
    %cst_143 = arith.constant 0.000000e+00 : f32
    %263 = vector.shape_cast %262 : vector<48x1xf32> to vector<48x1xf32>
    %264 = vector.broadcast %263 : vector<48x1xf32> to vector<48x48xf32>
    %265 = vector.broadcast %cst_143 : f32 to vector<48x48xf32>
    %266 = arith.select %25, %264, %265 : vector<48x48xi1>, vector<48x48xf32>
    %267 = arith.addf %258, %266 : vector<48x48xf32>
    %268 = arith.subf %239, %267 : vector<48x48xf32>
    %269 = math.exp %268 : vector<48x48xf32>
    %cst_144 = arith.constant 0.000000e+00 : f32
    %270 = vector.broadcast %cst_144 : f32 to vector<48x48xf32>
    %cst_145 = arith.constant 0.000000e+00 : f32
    %271 = vector.broadcast %cst_145 : f32 to vector<48x48xf32>
    %272 = arith.select %15, %269, %271 : vector<48x48xi1>, vector<48x48xf32>
    %cst_146 = arith.constant dense<0.000000e+00> : vector<48xf32>
    %273 = vector.multi_reduction <add>, %272, %cst_146 [1] : vector<48x48xf32> to vector<48xf32>
    %274 = vector.shape_cast %273 : vector<48xf32> to vector<48x1xf32>
    %cst_147 = arith.constant 0.000000e+00 : f32
    %275 = vector.shape_cast %274 : vector<48x1xf32> to vector<48x1xf32>
    %276 = vector.broadcast %275 : vector<48x1xf32> to vector<48x48xf32>
    %277 = vector.broadcast %cst_147 : f32 to vector<48x48xf32>
    %278 = arith.select %15, %276, %277 : vector<48x48xi1>, vector<48x48xf32>
    %279 = arith.addf %270, %278 : vector<48x48xf32>
    %cst_148 = arith.constant 0.000000e+00 : f32
    %280 = vector.broadcast %cst_148 : f32 to vector<48x48xf32>
    %281 = arith.select %20, %269, %280 : vector<48x48xi1>, vector<48x48xf32>
    %cst_149 = arith.constant dense<0.000000e+00> : vector<48xf32>
    %282 = vector.multi_reduction <add>, %281, %cst_149 [1] : vector<48x48xf32> to vector<48xf32>
    %283 = vector.shape_cast %282 : vector<48xf32> to vector<48x1xf32>
    %cst_150 = arith.constant 0.000000e+00 : f32
    %284 = vector.shape_cast %283 : vector<48x1xf32> to vector<48x1xf32>
    %285 = vector.broadcast %284 : vector<48x1xf32> to vector<48x48xf32>
    %286 = vector.broadcast %cst_150 : f32 to vector<48x48xf32>
    %287 = arith.select %20, %285, %286 : vector<48x48xi1>, vector<48x48xf32>
    %288 = arith.addf %279, %287 : vector<48x48xf32>
    %cst_151 = arith.constant 0.000000e+00 : f32
    %289 = vector.broadcast %cst_151 : f32 to vector<48x48xf32>
    %290 = arith.select %25, %269, %289 : vector<48x48xi1>, vector<48x48xf32>
    %cst_152 = arith.constant dense<0.000000e+00> : vector<48xf32>
    %291 = vector.multi_reduction <add>, %290, %cst_152 [1] : vector<48x48xf32> to vector<48xf32>
    %292 = vector.shape_cast %291 : vector<48xf32> to vector<48x1xf32>
    %cst_153 = arith.constant 0.000000e+00 : f32
    %293 = vector.shape_cast %292 : vector<48x1xf32> to vector<48x1xf32>
    %294 = vector.broadcast %293 : vector<48x1xf32> to vector<48x48xf32>
    %295 = vector.broadcast %cst_153 : f32 to vector<48x48xf32>
    %296 = arith.select %25, %294, %295 : vector<48x48xi1>, vector<48x48xf32>
    %297 = arith.addf %288, %296 : vector<48x48xf32>
    %298 = arith.divf %269, %297 : vector<48x48xf32>
    %299 = vector.broadcast %9 : vector<1x48xf32> to vector<48x48xf32>
    %300 = arith.mulf %298, %299 : vector<48x48xf32>
    %c0_154 = arith.constant 0 : index
    %c2_155 = arith.constant 2 : index
    %c0_156 = arith.constant 0 : index
    %c0_157 = arith.constant 0 : index
    %301 = vector.load %arg12[%c0_154, %c2_155, %c0_156, %c0_157] : memref<1x4x48x48xf32, #tpu.memory_space<vmem>>, vector<1x1x48x48xf32>
    %302 = vector.shape_cast %301 : vector<1x1x48x48xf32> to vector<48x48xf32>
    %303 = vector.shape_cast %300 : vector<48x48xf32> to vector<1x1x48x48xf32>
    tpu.vector_store %arg12[%c0_154, %c2_155, %c0_156, %c0_157], %303 {strides = array<i32>} : memref<1x4x48x48xf32, #tpu.memory_space<vmem>>, vector<1x1x48x48xf32>,
    %cst_158 = arith.constant dense<0.000000e+00> : vector<48x32xf32>
    %304 = tpu.matmul %300, %232, %cst_158 {dimension_numbers = #tpu.dot_dimension_numbers<[1], [0], [0], [1], [0, 0, 1, 1], [], []>} : vector<48x48xf32>, vector<48x32xf32>, vector<48x32xf32> -> vector<48x32xf32>
    %c3 = arith.constant 3 : index
    %c0_159 = arith.constant 0 : index
    %c0_160 = arith.constant 0 : index
    %305 = vector.load %arg2[%c3, %c0_159, %c0_160] : memref<4x128x32xf32, #tpu.memory_space<vmem>>, vector<1x128x32xf32>
    %306 = vector.shape_cast %305 : vector<1x128x32xf32> to vector<128x32xf32>
    %cst_161 = arith.constant dense<0.000000e+00> : vector<48x32xf32>
    %307 = tpu.matmul %1, %306, %cst_161 {dimension_numbers = #tpu.dot_dimension_numbers<[1], [0], [0], [1], [0, 0, 1, 1], [], []>} : vector<48x128xf32>, vector<128x32xf32>, vector<48x32xf32> -> vector<48x32xf32>
    %c3_162 = arith.constant 3 : index
    %c0_163 = arith.constant 0 : index
    %c0_164 = arith.constant 0 : index
    %308 = vector.load %arg5[%c3_162, %c0_163, %c0_164] : memref<4x1x32xf32, #tpu.memory_space<vmem>>, vector<1x1x32xf32>
    %309 = vector.shape_cast %308 : vector<1x1x32xf32> to vector<1x32xf32>
    %310 = vector.broadcast %309 : vector<1x32xf32> to vector<48x32xf32>
    %311 = arith.addf %307, %310 : vector<48x32xf32>
    %c3_165 = arith.constant 3 : index
    %c0_166 = arith.constant 0 : index
    %c0_167 = arith.constant 0 : index
    %312 = vector.load %arg3[%c3_165, %c0_166, %c0_167] : memref<4x128x32xf32, #tpu.memory_space<vmem>>, vector<1x128x32xf32>
    %313 = vector.shape_cast %312 : vector<1x128x32xf32> to vector<128x32xf32>
    %cst_168 = arith.constant dense<0.000000e+00> : vector<48x32xf32>
    %314 = tpu.matmul %1, %313, %cst_168 {dimension_numbers = #tpu.dot_dimension_numbers<[1], [0], [0], [1], [0, 0, 1, 1], [], []>} : vector<48x128xf32>, vector<128x32xf32>, vector<48x32xf32> -> vector<48x32xf32>
    %c3_169 = arith.constant 3 : index
    %c0_170 = arith.constant 0 : index
    %c0_171 = arith.constant 0 : index
    %315 = vector.load %arg6[%c3_169, %c0_170, %c0_171] : memref<4x1x32xf32, #tpu.memory_space<vmem>>, vector<1x1x32xf32>
    %316 = vector.shape_cast %315 : vector<1x1x32xf32> to vector<1x32xf32>
    %317 = vector.broadcast %316 : vector<1x32xf32> to vector<48x32xf32>
    %318 = arith.addf %314, %317 : vector<48x32xf32>
    %c3_172 = arith.constant 3 : index
    %c0_173 = arith.constant 0 : index
    %c0_174 = arith.constant 0 : index
    %319 = vector.load %arg4[%c3_172, %c0_173, %c0_174] : memref<4x128x32xf32, #tpu.memory_space<vmem>>, vector<1x128x32xf32>
    %320 = vector.shape_cast %319 : vector<1x128x32xf32> to vector<128x32xf32>
    %cst_175 = arith.constant dense<0.000000e+00> : vector<48x32xf32>
    %321 = tpu.matmul %1, %320, %cst_175 {dimension_numbers = #tpu.dot_dimension_numbers<[1], [0], [0], [1], [0, 0, 1, 1], [], []>} : vector<48x128xf32>, vector<128x32xf32>, vector<48x32xf32> -> vector<48x32xf32>
    %c3_176 = arith.constant 3 : index
    %c0_177 = arith.constant 0 : index
    %c0_178 = arith.constant 0 : index
    %322 = vector.load %arg7[%c3_176, %c0_177, %c0_178] : memref<4x1x32xf32, #tpu.memory_space<vmem>>, vector<1x1x32xf32>
    %323 = vector.shape_cast %322 : vector<1x1x32xf32> to vector<1x32xf32>
    %324 = vector.broadcast %323 : vector<1x32xf32> to vector<48x32xf32>
    %325 = arith.addf %321, %324 : vector<48x32xf32>
    %cst_179 = arith.constant dense<0.000000e+00> : vector<48x48xf32>
    %326 = tpu.matmul %311, %318, %cst_179 {dimension_numbers = #tpu.dot_dimension_numbers<[1], [1], [0], [0], [0, 0, 1, 0], [], []>} : vector<48x32xf32>, vector<48x32xf32>, vector<48x48xf32> -> vector<48x48xf32>
    %cst_180 = arith.constant 0.176776692 : f32
    %327 = vector.broadcast %cst_180 : f32 to vector<48x48xf32>
    %328 = arith.mulf %326, %327 : vector<48x48xf32>
    %cst_181 = arith.constant 0.000000e+00 : f32
    %329 = vector.broadcast %cst_181 : f32 to vector<48x48xf32>
    %330 = arith.cmpf oeq, %8, %329 : vector<48x48xf32>
    %cst_182 = arith.constant -1.000000e+09 : f32
    %331 = vector.broadcast %cst_182 : f32 to vector<48x48xf32>
    %332 = arith.select %330, %331, %328 : vector<48x48xi1>, vector<48x48xf32>
    %cst_183 = arith.constant 0.000000e+00 : f32
    %333 = vector.broadcast %cst_183 : f32 to vector<48x48xf32>
    %cst_184 = arith.constant 0xFF800000 : f32
    %334 = vector.broadcast %cst_184 : f32 to vector<48x48xf32>
    %335 = arith.select %15, %332, %334 : vector<48x48xi1>, vector<48x48xf32>
    %cst_185 = arith.constant dense<0xFF800000> : vector<48xf32>
    %336 = vector.multi_reduction <maximumf>, %335, %cst_185 [1] : vector<48x48xf32> to vector<48xf32>
    %337 = vector.shape_cast %336 : vector<48xf32> to vector<48x1xf32>
    %cst_186 = arith.constant 0.000000e+00 : f32
    %338 = vector.shape_cast %337 : vector<48x1xf32> to vector<48x1xf32>
    %339 = vector.broadcast %338 : vector<48x1xf32> to vector<48x48xf32>
    %340 = vector.broadcast %cst_186 : f32 to vector<48x48xf32>
    %341 = arith.select %15, %339, %340 : vector<48x48xi1>, vector<48x48xf32>
    %342 = arith.addf %333, %341 : vector<48x48xf32>
    %cst_187 = arith.constant 0xFF800000 : f32
    %343 = vector.broadcast %cst_187 : f32 to vector<48x48xf32>
    %344 = arith.select %20, %332, %343 : vector<48x48xi1>, vector<48x48xf32>
    %cst_188 = arith.constant dense<0xFF800000> : vector<48xf32>
    %345 = vector.multi_reduction <maximumf>, %344, %cst_188 [1] : vector<48x48xf32> to vector<48xf32>
    %346 = vector.shape_cast %345 : vector<48xf32> to vector<48x1xf32>
    %cst_189 = arith.constant 0.000000e+00 : f32
    %347 = vector.shape_cast %346 : vector<48x1xf32> to vector<48x1xf32>
    %348 = vector.broadcast %347 : vector<48x1xf32> to vector<48x48xf32>
    %349 = vector.broadcast %cst_189 : f32 to vector<48x48xf32>
    %350 = arith.select %20, %348, %349 : vector<48x48xi1>, vector<48x48xf32>
    %351 = arith.addf %342, %350 : vector<48x48xf32>
    %cst_190 = arith.constant 0xFF800000 : f32
    %352 = vector.broadcast %cst_190 : f32 to vector<48x48xf32>
    %353 = arith.select %25, %332, %352 : vector<48x48xi1>, vector<48x48xf32>
    %cst_191 = arith.constant dense<0xFF800000> : vector<48xf32>
    %354 = vector.multi_reduction <maximumf>, %353, %cst_191 [1] : vector<48x48xf32> to vector<48xf32>
    %355 = vector.shape_cast %354 : vector<48xf32> to vector<48x1xf32>
    %cst_192 = arith.constant 0.000000e+00 : f32
    %356 = vector.shape_cast %355 : vector<48x1xf32> to vector<48x1xf32>
    %357 = vector.broadcast %356 : vector<48x1xf32> to vector<48x48xf32>
    %358 = vector.broadcast %cst_192 : f32 to vector<48x48xf32>
    %359 = arith.select %25, %357, %358 : vector<48x48xi1>, vector<48x48xf32>
    %360 = arith.addf %351, %359 : vector<48x48xf32>
    %361 = arith.subf %332, %360 : vector<48x48xf32>
    %362 = math.exp %361 : vector<48x48xf32>
    %cst_193 = arith.constant 0.000000e+00 : f32
    %363 = vector.broadcast %cst_193 : f32 to vector<48x48xf32>
    %cst_194 = arith.constant 0.000000e+00 : f32
    %364 = vector.broadcast %cst_194 : f32 to vector<48x48xf32>
    %365 = arith.select %15, %362, %364 : vector<48x48xi1>, vector<48x48xf32>
    %cst_195 = arith.constant dense<0.000000e+00> : vector<48xf32>
    %366 = vector.multi_reduction <add>, %365, %cst_195 [1] : vector<48x48xf32> to vector<48xf32>
    %367 = vector.shape_cast %366 : vector<48xf32> to vector<48x1xf32>
    %cst_196 = arith.constant 0.000000e+00 : f32
    %368 = vector.shape_cast %367 : vector<48x1xf32> to vector<48x1xf32>
    %369 = vector.broadcast %368 : vector<48x1xf32> to vector<48x48xf32>
    %370 = vector.broadcast %cst_196 : f32 to vector<48x48xf32>
    %371 = arith.select %15, %369, %370 : vector<48x48xi1>, vector<48x48xf32>
    %372 = arith.addf %363, %371 : vector<48x48xf32>
    %cst_197 = arith.constant 0.000000e+00 : f32
    %373 = vector.broadcast %cst_197 : f32 to vector<48x48xf32>
    %374 = arith.select %20, %362, %373 : vector<48x48xi1>, vector<48x48xf32>
    %cst_198 = arith.constant dense<0.000000e+00> : vector<48xf32>
    %375 = vector.multi_reduction <add>, %374, %cst_198 [1] : vector<48x48xf32> to vector<48xf32>
    %376 = vector.shape_cast %375 : vector<48xf32> to vector<48x1xf32>
    %cst_199 = arith.constant 0.000000e+00 : f32
    %377 = vector.shape_cast %376 : vector<48x1xf32> to vector<48x1xf32>
    %378 = vector.broadcast %377 : vector<48x1xf32> to vector<48x48xf32>
    %379 = vector.broadcast %cst_199 : f32 to vector<48x48xf32>
    %380 = arith.select %20, %378, %379 : vector<48x48xi1>, vector<48x48xf32>
    %381 = arith.addf %372, %380 : vector<48x48xf32>
    %cst_200 = arith.constant 0.000000e+00 : f32
    %382 = vector.broadcast %cst_200 : f32 to vector<48x48xf32>
    %383 = arith.select %25, %362, %382 : vector<48x48xi1>, vector<48x48xf32>
    %cst_201 = arith.constant dense<0.000000e+00> : vector<48xf32>
    %384 = vector.multi_reduction <add>, %383, %cst_201 [1] : vector<48x48xf32> to vector<48xf32>
    %385 = vector.shape_cast %384 : vector<48xf32> to vector<48x1xf32>
    %cst_202 = arith.constant 0.000000e+00 : f32
    %386 = vector.shape_cast %385 : vector<48x1xf32> to vector<48x1xf32>
    %387 = vector.broadcast %386 : vector<48x1xf32> to vector<48x48xf32>
    %388 = vector.broadcast %cst_202 : f32 to vector<48x48xf32>
    %389 = arith.select %25, %387, %388 : vector<48x48xi1>, vector<48x48xf32>
    %390 = arith.addf %381, %389 : vector<48x48xf32>
    %391 = arith.divf %362, %390 : vector<48x48xf32>
    %392 = vector.broadcast %9 : vector<1x48xf32> to vector<48x48xf32>
    %393 = arith.mulf %391, %392 : vector<48x48xf32>
    %c0_203 = arith.constant 0 : index
    %c3_204 = arith.constant 3 : index
    %c0_205 = arith.constant 0 : index
    %c0_206 = arith.constant 0 : index
    %394 = vector.load %arg12[%c0_203, %c3_204, %c0_205, %c0_206] : memref<1x4x48x48xf32, #tpu.memory_space<vmem>>, vector<1x1x48x48xf32>
    %395 = vector.shape_cast %394 : vector<1x1x48x48xf32> to vector<48x48xf32>
    %396 = vector.shape_cast %393 : vector<48x48xf32> to vector<1x1x48x48xf32>
    tpu.vector_store %arg12[%c0_203, %c3_204, %c0_205, %c0_206], %396 {strides = array<i32>} : memref<1x4x48x48xf32, #tpu.memory_space<vmem>>, vector<1x1x48x48xf32>,
    %cst_207 = arith.constant dense<0.000000e+00> : vector<48x32xf32>
    %397 = tpu.matmul %393, %325, %cst_207 {dimension_numbers = #tpu.dot_dimension_numbers<[1], [0], [0], [1], [0, 0, 1, 1], [], []>} : vector<48x48xf32>, vector<48x32xf32>, vector<48x32xf32> -> vector<48x32xf32>
    %398 = tpu.concatenate %118, %211, %304, %397 in 1 : vector<48x32xf32>, vector<48x32xf32>, vector<48x32xf32>, vector<48x32xf32> -> vector<48x128xf32>
    %c0_208 = arith.constant 0 : index
    %c0_209 = arith.constant 0 : index
    %c0_210 = arith.constant 0 : index
    %399 = vector.load %arg11[%c0_208, %c0_209, %c0_210] : memref<1x48x128xf32, #tpu.memory_space<vmem>>, vector<1x48x128xf32>
    %400 = vector.shape_cast %399 : vector<1x48x128xf32> to vector<48x128xf32>
    %401 = vector.shape_cast %398 : vector<48x128xf32> to vector<1x48x128xf32>
    tpu.vector_store %arg11[%c0_208, %c0_209, %c0_210], %401 {strides = array<i32>} : memref<1x48x128xf32, #tpu.memory_space<vmem>>, vector<1x48x128xf32>,
    return
  }
  func.func @transform_0(%arg0: i32) -> (i32, i32, i32) {
    %c0_i32 = arith.constant 0 : i32
    %c0_i32_0 = arith.constant 0 : i32
    %c0_i32_1 = arith.constant 0 : i32
    return %arg0, %c0_i32, %c0_i32_0 : i32, i32, i32
  }
  func.func @transform_1(%arg0: i32) -> (i32, i32, i32) {
    %c0_i32 = arith.constant 0 : i32
    %c0_i32_0 = arith.constant 0 : i32
    %c0_i32_1 = arith.constant 0 : i32
    %c0_i32_2 = arith.constant 0 : i32
    return %c0_i32, %c0_i32_0, %c0_i32_1 : i32, i32, i32
  }
  func.func @transform_2(%arg0: i32) -> (i32, i32, i32) {
    %c0_i32 = arith.constant 0 : i32
    %c0_i32_0 = arith.constant 0 : i32
    %c0_i32_1 = arith.constant 0 : i32
    %c0_i32_2 = arith.constant 0 : i32
    return %c0_i32, %c0_i32_0, %c0_i32_1 : i32, i32, i32
  }
  func.func @transform_3(%arg0: i32) -> (i32, i32, i32) {
    %c0_i32 = arith.constant 0 : i32
    %c0_i32_0 = arith.constant 0 : i32
    %c0_i32_1 = arith.constant 0 : i32
    %c0_i32_2 = arith.constant 0 : i32
    return %c0_i32, %c0_i32_0, %c0_i32_1 : i32, i32, i32
  }
  func.func @transform_4(%arg0: i32) -> (i32, i32, i32) {
    %c0_i32 = arith.constant 0 : i32
    %c0_i32_0 = arith.constant 0 : i32
    %c0_i32_1 = arith.constant 0 : i32
    %c0_i32_2 = arith.constant 0 : i32
    return %c0_i32, %c0_i32_0, %c0_i32_1 : i32, i32, i32
  }
  func.func @transform_5(%arg0: i32) -> (i32, i32, i32) {
    %c0_i32 = arith.constant 0 : i32
    %c0_i32_0 = arith.constant 0 : i32
    %c0_i32_1 = arith.constant 0 : i32
    %c0_i32_2 = arith.constant 0 : i32
    return %c0_i32, %c0_i32_0, %c0_i32_1 : i32, i32, i32
  }
  func.func @transform_6(%arg0: i32) -> (i32, i32, i32) {
    %c0_i32 = arith.constant 0 : i32
    %c0_i32_0 = arith.constant 0 : i32
    %c0_i32_1 = arith.constant 0 : i32
    %c0_i32_2 = arith.constant 0 : i32
    return %c0_i32, %c0_i32_0, %c0_i32_1 : i32, i32, i32
  }
  func.func @transform_7(%arg0: i32) -> (i32, i32, i32) {
    %c0_i32 = arith.constant 0 : i32
    %c0_i32_0 = arith.constant 0 : i32
    %c0_i32_1 = arith.constant 0 : i32
    return %arg0, %c0_i32, %c0_i32_0 : i32, i32, i32
  }
  func.func @transform_8(%arg0: i32) -> (i32, i32, i32) {
    %c0_i32 = arith.constant 0 : i32
    %c0_i32_0 = arith.constant 0 : i32
    %c0_i32_1 = arith.constant 0 : i32
    return %arg0, %c0_i32, %c0_i32_0 : i32, i32, i32
  }
  func.func @transform_9(%arg0: i32) -> (i32, i32) {
    %c0_i32 = arith.constant 0 : i32
    %c0_i32_0 = arith.constant 0 : i32
    %c0_i32_1 = arith.constant 0 : i32
    return %c0_i32, %c0_i32_0 : i32, i32
  }
  func.func @transform_10(%arg0: i32) -> (i32, i32, i32) {
    %c0_i32 = arith.constant 0 : i32
    %c0_i32_0 = arith.constant 0 : i32
    %c0_i32_1 = arith.constant 0 : i32
    return %arg0, %c0_i32, %c0_i32_0 : i32, i32, i32
  }
  func.func @transform_11(%arg0: i32) -> (i32, i32, i32, i32) {
    %c0_i32 = arith.constant 0 : i32
    %c0_i32_0 = arith.constant 0 : i32
    %c0_i32_1 = arith.constant 0 : i32
    %c0_i32_2 = arith.constant 0 : i32
    return %arg0, %c0_i32, %c0_i32_0, %c0_i32_1 : i32, i32, i32, i32
  }
}

</mosaic_0001>

<llo_original>
// kernel: tpu_custom_call.1
$region0: #{tpu_custom_call.1}
  #allocation0 [shape = 'u32[]', space=smem, size = 0x4, offset = 0x4, fixed_abs, tag = 'smem constant byte address 0x4 - core index']
  #allocation1 [shape = 'u32[72,128]{1,0:T(1,128)}', space=vmem, size = 0x9000, scoped, tag = 'internal scratch']
  %s0 = inlined_call_operand.vmem [shape: f32[2,48,128], index: 0, kind: input, shape index: {}]
  %s1 = inlined_call_operand.vmem [shape: f32[4,128,32], index: 1, kind: input, shape index: {}]
  %s2 = inlined_call_operand.vmem [shape: f32[4,128,32], index: 2, kind: input, shape index: {}]
  %s3 = inlined_call_operand.vmem [shape: f32[4,128,32], index: 3, kind: input, shape index: {}]
  %s4 = inlined_call_operand.vmem [shape: f32[4,1,32], index: 4, kind: input, shape index: {}]
  %s5 = inlined_call_operand.vmem [shape: f32[4,1,32], index: 5, kind: input, shape index: {}]
  %s6 = inlined_call_operand.vmem [shape: f32[4,1,32], index: 6, kind: input, shape index: {}]
  %s7 = inlined_call_operand.vmem [shape: f32[2,1,48], index: 7, kind: input, shape index: {}]
  %s8 = inlined_call_operand.vmem [shape: f32[2,48,1], index: 8, kind: input, shape index: {}]
  %s9 = inlined_call_operand.vmem [shape: f32[1,48], index: 9, kind: input, shape index: {}]
  %s10 = inlined_call_operand.hbm [shape: f32[2,48,128], index: 10, kind: output, shape index: {0}]
  %s11 = inlined_call_operand.hbm [shape: f32[2,4,48,48], index: 11, kind: output, shape index: {1}]
  %12 = xla_tuple %s10, %s11
  %s13 = sld [smem:[#allocation0]]
  $region81: #{tpu_custom_call.1} parent=0
    _
  %s15 = ssub.s32 1, %s13
  %s16 = scalar_select 0, %s15, %s13
  $region1: #{tpu_custom_call.1} parent=0
    #allocation2 [shape = 'u8[49152]{0}', space=vmem, size = 0xc000, scoped, tag = 'output window, operand 0']
    #allocation3 [shape = 's32[2]{0}', space=sflag, size = 0x8, scoped, tag = 'scoped memory for tpu_custom_call.1']
    #allocation4 [shape = 'u8[196608]{0}', space=vmem, size = 0x30000, scoped, tag = 'output window, operand 1']
    #allocation5 [shape = 's32[2]{0}', space=sflag, size = 0x8, scoped, tag = 'scoped memory for tpu_custom_call.1']
    %17 = vsyncpa [#allocation3], 0
    %s18 = scalar_lea.sflag [#allocation3], 1
    %19 = vsyncpa %s18, 0
    %20 = vsyncpa [#allocation5], 0
    %s21 = scalar_lea.sflag [#allocation5], 1
    %22 = vsyncpa %s21, 0
    loop: start=0, step=1, limit=4
    $region2: #{tpu_custom_call.1} parent=1 // loop_pre_header
      _
    $region3: #{tpu_custom_call.1} parent=1 // loop_header
      %s24 = sphi 0, %s28
      %p25 = scmp.ge.s32.totalorder %s24, 4
      %s34 = sphi 0, %s36
      %s37 = sphi 0, %s34
      %s38 = sphi 0, %s37
      %s54 = sphi 0, %s38
      %s58 = sphi 0, %s58
      %s60 = sphi 0, %s58
      %s61 = sphi 0, %s60
      %s75 = sphi 0, %s61
      %s79 = sphi 0, %s79
      %s81 = sphi 0, %s79
      %s82 = sphi 0, %s81
      %s96 = sphi 0, %s82
      %s100 = sphi 0, %s100
      %s102 = sphi 0, %s100
      %s103 = sphi 0, %s102
      %s117 = sphi 0, %s103
      %s121 = sphi 0, %s121
      %s123 = sphi 0, %s121
      %s124 = sphi 0, %s123
      %s138 = sphi 0, %s124
      %s142 = sphi 0, %s142
      %s144 = sphi 0, %s142
      %s145 = sphi 0, %s144
      %s159 = sphi 0, %s145
      %s163 = sphi 0, %s163
      %s165 = sphi 0, %s163
      %s166 = sphi 0, %s165
      %s180 = sphi 0, %s166
      %s186 = sphi 0, %s188
      %s189 = sphi 0, %s186
      %s190 = sphi 0, %s189
      %s206 = sphi 0, %s190
      %s212 = sphi 0, %s214
      %s215 = sphi 0, %s212
      %s216 = sphi 0, %s215
      %s232 = sphi 0, %s216
      %s236 = sphi 0, %s236
      %s238 = sphi 0, %s236
      %s239 = sphi 0, %s238
      %s253 = sphi 0, %s239
      %s259 = sphi 0, %s261
      %s262 = sphi 0, %s259
      %s263 = sphi 0, %s262
      %s279 = sphi 0, %s263
      %s285 = sphi 0, %s287
      %s288 = sphi 0, %s285
      %s289 = sphi 0, %s288
      %s305 = sphi 0, %s289
    $region4: #{tpu_custom_call.1} parent=1 // loop_header_branch
      %27 = sbr.rel (%p25) target = $region8
    $region5: #{tpu_custom_call.1} parent=1 // loop_body
      %s29 = ssub.s32 %s24, 1
      %s30 = ssub.s32 %s24, 2
      %s31 = sadd.s32 %s24, 1
      %s32 = ssub.s32 %s24, %s31
      %p33 = scmp.eq.s32.totalorder %s32, 0
      %s35 = sadd.s32 %s34, 1
      %s36 = scalar_select %p33, %s34, %s35
      %p39 = pneg %p33
      %p40 = scmp.eq.s32.totalorder %s24, 1
      %p41 = por %p39, %p40
      %p42 = scmp.ne.s32.totalorder %s34, %s37
      %p43 = scmp.eq.s32.totalorder %s24, 0
      %p44 = por %p42, %p43
      %p45 = scmp.ne.s32.totalorder %s34, %s37
      %p46 = scmp.eq.s32.totalorder %s29, 1
      %p47 = por %p45, %p46
      %p48 = scmp.ne.s32.totalorder %s37, %s38
      %p49 = scmp.eq.s32.totalorder %s29, 0
      %p50 = por %p48, %p49
      %p51 = scmp.ne.s32.totalorder %s37, %s38
      %p52 = scmp.eq.s32.totalorder %s30, 1
      %p53 = por %p51, %p52
      %p55 = scmp.ne.s32.totalorder %s38, %s54
      %p56 = scmp.eq.s32.totalorder %s30, 0
      %p57 = por %p55, %p56
      %s59 = sadd.s32 %s58, 1
      %p62 = scmp.eq.s32.totalorder %s24, 1
      %p63 = scmp.ne.s32.totalorder %s58, %s60
      %p64 = scmp.eq.s32.totalorder %s24, 0
      %p65 = por %p63, %p64
      %p66 = scmp.ne.s32.totalorder %s58, %s60
      %p67 = scmp.eq.s32.totalorder %s29, 1
      %p68 = por %p66, %p67
      %p69 = scmp.ne.s32.totalorder %s60, %s61
      %p70 = scmp.eq.s32.totalorder %s29, 0
      %p71 = por %p69, %p70
      %p72 = scmp.ne.s32.totalorder %s60, %s61
      %p73 = scmp.eq.s32.totalorder %s30, 1
      %p74 = por %p72, %p73
      %p76 = scmp.ne.s32.totalorder %s61, %s75
      %p77 = scmp.eq.s32.totalorder %s30, 0
      %p78 = por %p76, %p77
      %s80 = sadd.s32 %s79, 1
      %p83 = scmp.eq.s32.totalorder %s24, 1
      %p84 = scmp.ne.s32.totalorder %s79, %s81
      %p85 = scmp.eq.s32.totalorder %s24, 0
      %p86 = por %p84, %p85
      %p87 = scmp.ne.s32.totalorder %s79, %s81
      %p88 = scmp.eq.s32.totalorder %s29, 1
      %p89 = por %p87, %p88
      %p90 = scmp.ne.s32.totalorder %s81, %s82
      %p91 = scmp.eq.s32.totalorder %s29, 0
      %p92 = por %p90, %p91
      %p93 = scmp.ne.s32.totalorder %s81, %s82
      %p94 = scmp.eq.s32.totalorder %s30, 1
      %p95 = por %p93, %p94
      %p97 = scmp.ne.s32.totalorder %s82, %s96
      %p98 = scmp.eq.s32.totalorder %s30, 0
      %p99 = por %p97, %p98
      %s101 = sadd.s32 %s100, 1
      %p104 = scmp.eq.s32.totalorder %s24, 1
      %p105 = scmp.ne.s32.totalorder %s100, %s102
      %p106 = scmp.eq.s32.totalorder %s24, 0
      %p107 = por %p105, %p106
      %p108 = scmp.ne.s32.totalorder %s100, %s102
      %p109 = scmp.eq.s32.totalorder %s29, 1
      %p110 = por %p108, %p109
      %p111 = scmp.ne.s32.totalorder %s102, %s103
      %p112 = scmp.eq.s32.totalorder %s29, 0
      %p113 = por %p111, %p112
      %p114 = scmp.ne.s32.totalorder %s102, %s103
      %p115 = scmp.eq.s32.totalorder %s30, 1
      %p116 = por %p114, %p115
      %p118 = scmp.ne.s32.totalorder %s103, %s117
      %p119 = scmp.eq.s32.totalorder %s30, 0
      %p120 = por %p118, %p119
      %s122 = sadd.s32 %s121, 1
      %p125 = scmp.eq.s32.totalorder %s24, 1
      %p126 = scmp.ne.s32.totalorder %s121, %s123
      %p127 = scmp.eq.s32.totalorder %s24, 0
      %p128 = por %p126, %p127
      %p129 = scmp.ne.s32.totalorder %s121, %s123
      %p130 = scmp.eq.s32.totalorder %s29, 1
      %p131 = por %p129, %p130
      %p132 = scmp.ne.s32.totalorder %s123, %s124
      %p133 = scmp.eq.s32.totalorder %s29, 0
      %p134 = por %p132, %p133
      %p135 = scmp.ne.s32.totalorder %s123, %s124
      %p136 = scmp.eq.s32.totalorder %s30, 1
      %p137 = por %p135, %p136
      %p139 = scmp.ne.s32.totalorder %s124, %s138
      %p140 = scmp.eq.s32.totalorder %s30, 0
      %p141 = por %p139, %p140
      %s143 = sadd.s32 %s142, 1
      %p146 = scmp.eq.s32.totalorder %s24, 1
      %p147 = scmp.ne.s32.totalorder %s142, %s144
      %p148 = scmp.eq.s32.totalorder %s24, 0
      %p149 = por %p147, %p148
      %p150 = scmp.ne.s32.totalorder %s142, %s144
      %p151 = scmp.eq.s32.totalorder %s29, 1
      %p152 = por %p150, %p151
      %p153 = scmp.ne.s32.totalorder %s144, %s145
      %p154 = scmp.eq.s32.totalorder %s29, 0
      %p155 = por %p153, %p154
      %p156 = scmp.ne.s32.totalorder %s144, %s145
      %p157 = scmp.eq.s32.totalorder %s30, 1
      %p158 = por %p156, %p157
      %p160 = scmp.ne.s32.totalorder %s145, %s159
      %p161 = scmp.eq.s32.totalorder %s30, 0
      %p162 = por %p160, %p161
      %s164 = sadd.s32 %s163, 1
      %p167 = scmp.eq.s32.totalorder %s24, 1
      %p168 = scmp.ne.s32.totalorder %s163, %s165
      %p169 = scmp.eq.s32.totalorder %s24, 0
      %p170 = por %p168, %p169
      %p171 = scmp.ne.s32.totalorder %s163, %s165
      %p172 = scmp.eq.s32.totalorder %s29, 1
      %p173 = por %p171, %p172
      %p174 = scmp.ne.s32.totalorder %s165, %s166
      %p175 = scmp.eq.s32.totalorder %s29, 0
      %p176 = por %p174, %p175
      %p177 = scmp.ne.s32.totalorder %s165, %s166
      %p178 = scmp.eq.s32.totalorder %s30, 1
      %p179 = por %p177, %p178
      %p181 = scmp.ne.s32.totalorder %s166, %s180
      %p182 = scmp.eq.s32.totalorder %s30, 0
      %p183 = por %p181, %p182
      %s184 = ssub.s32 %s24, %s31
      %p185 = scmp.eq.s32.totalorder %s184, 0
      %s187 = sadd.s32 %s186, 1
      %s188 = scalar_select %p185, %s186, %s187
      %p191 = pneg %p185
      %p192 = scmp.eq.s32.totalorder %s24, 1
      %p193 = por %p191, %p192
      %p194 = scmp.ne.s32.totalorder %s186, %s189
      %p195 = scmp.eq.s32.totalorder %s24, 0
      %p196 = por %p194, %p195
      %p197 = scmp.ne.s32.totalorder %s186, %s189
      %p198 = scmp.eq.s32.totalorder %s29, 1
      %p199 = por %p197, %p198
      %p200 = scmp.ne.s32.totalorder %s189, %s190
      %p201 = scmp.eq.s32.totalorder %s29, 0
      %p202 = por %p200, %p201
      %p203 = scmp.ne.s32.totalorder %s189, %s190
      %p204 = scmp.eq.s32.totalorder %s30, 1
      %p205 = por %p203, %p204
      %p207 = scmp.ne.s32.totalorder %s190, %s206
      %p208 = scmp.eq.s32.totalorder %s30, 0
      %p209 = por %p207, %p208
      %s210 = ssub.s32 %s24, %s31
      %p211 = scmp.eq.s32.totalorder %s210, 0
      %s213 = sadd.s32 %s212, 1
      %s214 = scalar_select %p211, %s212, %s213
      %p217 = pneg %p211
      %p218 = scmp.eq.s32.totalorder %s24, 1
      %p219 = por %p217, %p218
      %p220 = scmp.ne.s32.totalorder %s212, %s215
      %p221 = scmp.eq.s32.totalorder %s24, 0
      %p222 = por %p220, %p221
      %p223 = scmp.ne.s32.totalorder %s212, %s215
      %p224 = scmp.eq.s32.totalorder %s29, 1
      %p225 = por %p223, %p224
      %p226 = scmp.ne.s32.totalorder %s215, %s216
      %p227 = scmp.eq.s32.totalorder %s29, 0
      %p228 = por %p226, %p227
      %p229 = scmp.ne.s32.totalorder %s215, %s216
      %p230 = scmp.eq.s32.totalorder %s30, 1
      %p231 = por %p229, %p230
      %p233 = scmp.ne.s32.totalorder %s216, %s232
      %p234 = scmp.eq.s32.totalorder %s30, 0
      %p235 = por %p233, %p234
      %s237 = sadd.s32 %s236, 1
      %p240 = scmp.eq.s32.totalorder %s24, 1
      %p241 = scmp.ne.s32.totalorder %s236, %s238
      %p242 = scmp.eq.s32.totalorder %s24, 0
      %p243 = por %p241, %p242
      %p244 = scmp.ne.s32.totalorder %s236, %s238
      %p245 = scmp.eq.s32.totalorder %s29, 1
      %p246 = por %p244, %p245
      %p247 = scmp.ne.s32.totalorder %s238, %s239
      %p248 = scmp.eq.s32.totalorder %s29, 0
      %p249 = por %p247, %p248
      %p250 = scmp.ne.s32.totalorder %s238, %s239
      %p251 = scmp.eq.s32.totalorder %s30, 1
      %p252 = por %p250, %p251
      %p254 = scmp.ne.s32.totalorder %s239, %s253
      %p255 = scmp.eq.s32.totalorder %s30, 0
      %p256 = por %p254, %p255
      %s257 = ssub.s32 %s24, %s31
      %p258 = scmp.eq.s32.totalorder %s257, 0
      %s260 = sadd.s32 %s259, 1
      %s261 = scalar_select %p258, %s259, %s260
      %p264 = pneg %p258
      %p265 = scmp.eq.s32.totalorder %s24, 1
      %p266 = por %p264, %p265
      %p267 = scmp.ne.s32.totalorder %s259, %s262
      %p268 = scmp.eq.s32.totalorder %s24, 0
      %p269 = por %p267, %p268
      %p270 = scmp.ne.s32.totalorder %s259, %s262
      %p271 = scmp.eq.s32.totalorder %s29, 1
      %p272 = por %p270, %p271
      %p273 = scmp.ne.s32.totalorder %s262, %s263
      %p274 = scmp.eq.s32.totalorder %s29, 0
      %p275 = por %p273, %p274
      %p276 = scmp.ne.s32.totalorder %s262, %s263
      %p277 = scmp.eq.s32.totalorder %s30, 1
      %p278 = por %p276, %p277
      %p280 = scmp.ne.s32.totalorder %s263, %s279
      %p281 = scmp.eq.s32.totalorder %s30, 0
      %p282 = por %p280, %p281
      %s283 = ssub.s32 %s24, %s31
      %p284 = scmp.eq.s32.totalorder %s283, 0
      %s286 = sadd.s32 %s285, 1
      %s287 = scalar_select %p284, %s285, %s286
      %p290 = pneg %p284
      %p291 = scmp.eq.s32.totalorder %s24, 1
      %p292 = por %p290, %p291
      %p293 = scmp.ne.s32.totalorder %s285, %s288
      %p294 = scmp.eq.s32.totalorder %s24, 0
      %p295 = por %p293, %p294
      %p296 = scmp.ne.s32.totalorder %s285, %s288
      %p297 = scmp.eq.s32.totalorder %s29, 1
      %p298 = por %p296, %p297
      %p299 = scmp.ne.s32.totalorder %s288, %s289
      %p300 = scmp.eq.s32.totalorder %s29, 0
      %p301 = por %p299, %p300
      %p302 = scmp.ne.s32.totalorder %s288, %s289
      %p303 = scmp.eq.s32.totalorder %s30, 1
      %p304 = por %p302, %p303
      %p306 = scmp.ne.s32.totalorder %s289, %s305
      %p307 = scmp.eq.s32.totalorder %s30, 0
      %p308 = por %p306, %p307
      %p309 = scmp.le.s32.totalorder 1, %s24
      %p310 = scmp.lt.s32.totalorder %s24, 3
      %p311 = pnand %p309, %p310
      %p312 = pneg %p311
      // Predicated region
      $region9: #{tpu_custom_call.1} parent=5 // pred_check
        _
      $region10: #{tpu_custom_call.1} parent=5 // pred_check_branch
        %314 = sbr.rel (%p311) target = $region12
      $region11: #{tpu_custom_call.1} parent=5 // pred_region
        %s315 = ssub.s32 %s24, 1
        // Predicated region
        $region13: #{tpu_custom_call.1} parent=11 // pred_check
          %p316 = pneg %p71
        $region14: #{tpu_custom_call.1} parent=11 // pred_check_branch
          %318 = sbr.rel (%p316) target = $region16
        $region15: #{tpu_custom_call.1} parent=11 // pred_region
          _
        $region16: #{tpu_custom_call.1} parent=11 // pred_fallthru
          _
        // Predicated region
        $region17: #{tpu_custom_call.1} parent=11 // pred_check
          %p319 = pneg %p92
        $region18: #{tpu_custom_call.1} parent=11 // pred_check_branch
          %321 = sbr.rel (%p319) target = $region20
        $region19: #{tpu_custom_call.1} parent=11 // pred_region
          _
        $region20: #{tpu_custom_call.1} parent=11 // pred_fallthru
          _
        // Predicated region
        $region21: #{tpu_custom_call.1} parent=11 // pred_check
          %p322 = pneg %p113
        $region22: #{tpu_custom_call.1} parent=11 // pred_check_branch
          %324 = sbr.rel (%p322) target = $region24
        $region23: #{tpu_custom_call.1} parent=11 // pred_region
          _
        $region24: #{tpu_custom_call.1} parent=11 // pred_fallthru
          _
        // Predicated region
        $region25: #{tpu_custom_call.1} parent=11 // pred_check
          %p325 = pneg %p134
        $region26: #{tpu_custom_call.1} parent=11 // pred_check_branch
          %327 = sbr.rel (%p325) target = $region28
        $region27: #{tpu_custom_call.1} parent=11 // pred_region
          _
        $region28: #{tpu_custom_call.1} parent=11 // pred_fallthru
          _
        // Predicated region
        $region29: #{tpu_custom_call.1} parent=11 // pred_check
          %p328 = pneg %p155
        $region30: #{tpu_custom_call.1} parent=11 // pred_check_branch
          %330 = sbr.rel (%p328) target = $region32
        $region31: #{tpu_custom_call.1} parent=11 // pred_region
          _
        $region32: #{tpu_custom_call.1} parent=11 // pred_fallthru
          _
        // Predicated region
        $region33: #{tpu_custom_call.1} parent=11 // pred_check
          %p331 = pneg %p176
        $region34: #{tpu_custom_call.1} parent=11 // pred_check_branch
          %333 = sbr.rel (%p331) target = $region36
        $region35: #{tpu_custom_call.1} parent=11 // pred_region
          _
        $region36: #{tpu_custom_call.1} parent=11 // pred_fallthru
          _
        // Predicated region
        $region37: #{tpu_custom_call.1} parent=11 // pred_check
          %p334 = pneg %p249
        $region38: #{tpu_custom_call.1} parent=11 // pred_check_branch
          %336 = sbr.rel (%p334) target = $region40
        $region39: #{tpu_custom_call.1} parent=11 // pred_region
          _
        $region40: #{tpu_custom_call.1} parent=11 // pred_fallthru
          _
      $region12: #{tpu_custom_call.1} parent=5 // pred_fallthru
        _
      %p337 = scmp.lt.s32.totalorder %s24, 2
      // Predicated region
      $region41: #{tpu_custom_call.1} parent=5 // pred_check
        %p338 = pneg %p337
      $region42: #{tpu_custom_call.1} parent=5 // pred_check_branch
        %340 = sbr.rel (%p338) target = $region44
      $region43: #{tpu_custom_call.1} parent=5 // pred_region
        // Predicated region
        $region45: #{tpu_custom_call.1} parent=43 // pred_check
          %p341 = pneg %p44
        $region46: #{tpu_custom_call.1} parent=43 // pred_check_branch
          %343 = sbr.rel (%p341) target = $region48
        $region47: #{tpu_custom_call.1} parent=43 // pred_region
          %p344 = scmp.lt.s32.totalorder %s24, 1
          %s345 = scalar_select %p344, %s24, 1
          %s346 = smul.addr %s345, 6
          %s347 = smul.addr %s346, 8
          %s348 = scalar_lea.vmem %s0, %s347
        $region48: #{tpu_custom_call.1} parent=43 // pred_fallthru
          _
        // Predicated region
        $region49: #{tpu_custom_call.1} parent=43 // pred_check
          %p349 = pneg %p196
        $region50: #{tpu_custom_call.1} parent=43 // pred_check_branch
          %351 = sbr.rel (%p349) target = $region52
        $region51: #{tpu_custom_call.1} parent=43 // pred_region
          %p352 = scmp.lt.s32.totalorder %s24, 1
          %s353 = scalar_select %p352, %s24, 1
          %s354 = scalar_lea.vmem %s7, %s353
        $region52: #{tpu_custom_call.1} parent=43 // pred_fallthru
          _
        // Predicated region
        $region53: #{tpu_custom_call.1} parent=43 // pred_check
          %p355 = pneg %p222
        $region54: #{tpu_custom_call.1} parent=43 // pred_check_branch
          %357 = sbr.rel (%p355) target = $region56
        $region55: #{tpu_custom_call.1} parent=43 // pred_region
          %p358 = scmp.lt.s32.totalorder %s24, 1
          %s359 = scalar_select %p358, %s24, 1
          %s360 = smul.addr %s359, 6
          %s361 = smul.addr %s360, 8
          %s362 = scalar_lea.vmem %s8, %s361
        $region56: #{tpu_custom_call.1} parent=43 // pred_fallthru
          _
      $region44: #{tpu_custom_call.1} parent=5 // pred_fallthru
        _
      %p363 = scmp.le.s32.totalorder 1, %s24
      %p364 = scmp.lt.s32.totalorder %s24, 3
      %p365 = pnand %p363, %p364
      %p366 = pneg %p365
      // Predicated region
      $region57: #{tpu_custom_call.1} parent=5 // pred_check
        _
      $region58: #{tpu_custom_call.1} parent=5 // pred_check_branch
        %368 = sbr.rel (%p365) target = $region60
      $region59: #{tpu_custom_call.1} parent=5 // pred_region
        %s369 = ssub.s32 %s24, 1
        %p370 = scmp.lt.s32.totalorder %s29, 1
        %s371 = scalar_select %p370, %s29, 1
        %s372 = smul.addr %s371, 6
        %s373 = smul.addr %s372, 8
        %s374 = scalar_lea.vmem %s0, %s373
        %p375 = pneg %p50
        %p376 = pneg %p47
        %p377 = pneg %p71
        %p378 = pneg %p68
        %p379 = pneg %p92
        %p380 = pneg %p89
        %p381 = pneg %p113
        %p382 = pneg %p110
        %p383 = pneg %p134
        %p384 = pneg %p131
        %p385 = pneg %p155
        %p386 = pneg %p152
        %p387 = pneg %p176
        %p388 = pneg %p173
        %p389 = scmp.lt.s32.totalorder %s29, 1
        %s390 = scalar_select %p389, %s29, 1
        %s391 = scalar_lea.vmem %s7, %s390
        %p392 = pneg %p202
        %p393 = pneg %p199
        %p394 = scmp.lt.s32.totalorder %s29, 1
        %s395 = scalar_select %p394, %s29, 1
        %s396 = smul.addr %s395, 6
        %s397 = smul.addr %s396, 8
        %s398 = scalar_lea.vmem %s8, %s397
        %p399 = pneg %p228
        %p400 = pneg %p225
        %p401 = pneg %p249
        %p402 = pneg %p246
        %p403 = pneg %p275
        %p404 = pneg %p272
        %s405 = sand.u32 %s262, 1
        %s406 = scalar_lea.sflag [#allocation3], %s405
        %s407 = sand.u32 %s262, 1
        %s408 = smul.addr %s407, 48
        %s409 = scalar_lea.vmem [#allocation2], %s408
        %p410 = pneg %p301
        %p411 = pneg %p298
        %s412 = sand.u32 %s288, 1
        %s413 = scalar_lea.sflag [#allocation5], %s412
        %s414 = sand.u32 %s288, 1
        %s415 = smul.addr %s414, 192
        %s416 = scalar_lea.vmem [#allocation4], %s415
        %p417 = scmp.lt.s32.totalorder %s29, 1
        %s418 = scalar_select %p417, %s29, 1
        %s419 = smul.addr %s418, 6
        %s420 = smul.addr %s419, 8
        %s421 = scalar_lea.vmem %s0, %s420
        %p422 = scmp.lt.s32.totalorder %s29, 1
        %s423 = scalar_select %p422, %s29, 1
        %s424 = scalar_lea.vmem %s7, %s423
        %p425 = scmp.lt.s32.totalorder %s29, 1
        %s426 = scalar_select %p425, %s29, 1
        %s427 = smul.addr %s426, 6
        %s428 = smul.addr %s427, 8
        %s429 = scalar_lea.vmem %s8, %s428
        %v430 = vld [vmem:[%s421] sm:$0xff]
        %v431 = vld [vmem:[%s421 + $0x8] sm:$0xff]
        %v432 = vld [vmem:[%s421 + $0x10] sm:$0xff]
        %v433 = vld [vmem:[%s421 + $0x18] sm:$0xff]
        %v434 = vld [vmem:[%s421 + $0x20] sm:$0xff]
        %v435 = vld [vmem:[%s421 + $0x28] sm:$0xff]
        %v436 = vld [vmem:[%s429] sm:$0xff]
        %v437 = vld [vmem:[%s429 + $0x8] sm:$0xff]
        %v438 = vld [vmem:[%s429 + $0x10] sm:$0xff]
        %v439 = vld [vmem:[%s429 + $0x18] sm:$0xff]
        %v440 = vld [vmem:[%s429 + $0x20] sm:$0xff]
        %v441 = vld [vmem:[%s429 + $0x28] sm:$0xff]
        %v442 = vld [vmem:[%s424] sm:$0x1]
        %444 = vset.pattern.permute.xlu0 0
        %445 = vperm.xlu0 %444, %v436
        %v446 = vpop.permute.xlu0 %445
        %449 = vset.pattern.permute.xlu0 0
        %450 = vperm.xlu0 %449, %v437
        %v451 = vpop.permute.xlu0 %450
        %454 = vset.pattern.permute.xlu0 0
        %455 = vperm.xlu0 %454, %v438
        %v456 = vpop.permute.xlu0 %455
        %459 = vset.pattern.permute.xlu0 0
        %460 = vperm.xlu0 %459, %v439
        %v461 = vpop.permute.xlu0 %460
        %464 = vset.pattern.permute.xlu0 0
        %465 = vperm.xlu0 %464, %v440
        %v466 = vpop.permute.xlu0 %465
        %469 = vset.pattern.permute.xlu0 0
        %470 = vperm.xlu0 %469, %v441
        %v471 = vpop.permute.xlu0 %470
        %v474 = vperm.slane %v442, 0
        %v476 = vmul.f32 %v446, %v474
        %v477 = vmul.f32 %v451, %v474
        %v478 = vmul.f32 %v456, %v474
        %v479 = vmul.f32 %v461, %v474
        %v480 = vmul.f32 %v466, %v474
        %v481 = vmul.f32 %v471, %v474
        %v482 = vld [vmem:[%s9] sm:$0x1]
        %v483 = vlaneseq
        %v484 = vand.u32 %v483, 127
        %vm485 = vcmp.ge.s32.totalorder %v484, 0
        %vm486 = vcmp.lt.s32.totalorder %v484, 16
        %vm487 = vmand %vm485, %vm486
        %vm488 = vcmp.ge.s32.totalorder %v484, 16
        %vm489 = vcmp.lt.s32.totalorder %v484, 32
        %vm490 = vmand %vm488, %vm489
        %vm491 = vcmp.ge.s32.totalorder %v484, 32
        %vm492 = vcmp.lt.s32.totalorder %v484, 48
        %vm493 = vmand %vm491, %vm492
        %v494 = vld [vmem:[%s1] sm:$0xff]
        %v495 = vld [vmem:[%s1 + $0x8] sm:$0xff]
        %v496 = vld [vmem:[%s1 + $0x10] sm:$0xff]
        %v497 = vld [vmem:[%s1 + $0x18] sm:$0xff]
        %v498 = vld [vmem:[%s1 + $0x20] sm:$0xff]
        %v499 = vld [vmem:[%s1 + $0x28] sm:$0xff]
        %v500 = vld [vmem:[%s1 + $0x30] sm:$0xff]
        %v501 = vld [vmem:[%s1 + $0x38] sm:$0xff]
        %v502 = vld [vmem:[%s1 + $0x40] sm:$0xff]
        %v503 = vld [vmem:[%s1 + $0x48] sm:$0xff]
        %v504 = vld [vmem:[%s1 + $0x50] sm:$0xff]
        %v505 = vld [vmem:[%s1 + $0x58] sm:$0xff]
        %v506 = vld [vmem:[%s1 + $0x60] sm:$0xff]
        %v507 = vld [vmem:[%s1 + $0x68] sm:$0xff]
        %v508 = vld [vmem:[%s1 + $0x70] sm:$0xff]
        %v509 = vld [vmem:[%s1 + $0x78] sm:$0xff]
        %v510 = vld [vmem:[%s4] sm:$0x1]
        %v512 = vperm.slane %v510, 0
        %514 = vmatpush.msra.mxu0 %v509
        %515 = vmatpush.msra.mxu0 %v508
        %516 = vmatpush.msra.mxu0 %v507
        %517 = vmatpush.msra.mxu0 %v506
        %518 = vmatpush.msra.mxu0 %v505
        %519 = vmatpush.msra.mxu0 %v504
        %520 = vmatpush.msra.mxu0 %v503
        %521 = vmatpush.msra.mxu0 %v502
        %522 = vmatpush.msra.mxu0 %v501
        %523 = vmatpush.msra.mxu0 %v500
        %524 = vmatpush.msra.mxu0 %v499
        %525 = vmatpush.msra.mxu0 %v498
        %526 = vmatpush.msra.mxu0 %v497
        %527 = vmatpush.msra.mxu0 %v496
        %528 = vmatpush.msra.mxu0 %v495
        %529 = vmatpush.msra.mxu0 %v494
        %530 = vmatmul.f32.gmra.mxu0 %v430
        %v531 = vpop.f32.mrf.mxu0
        %v532 = vadd.f32 %v512, %v531
        %533 = vmatmul.f32.gmra.mxu0 %v431
        %v534 = vpop.f32.mrf.mxu0
        %v535 = vadd.f32 %v512, %v534
        %536 = vmatmul.f32.gmra.mxu0 %v432
        %v537 = vpop.f32.mrf.mxu0
        %v538 = vadd.f32 %v512, %v537
        %539 = vmatmul.f32.gmra.mxu0 %v433
        %v540 = vpop.f32.mrf.mxu0
        %v541 = vadd.f32 %v512, %v540
        %542 = vmatmul.f32.gmra.mxu0 %v434
        %v543 = vpop.f32.mrf.mxu0
        %v544 = vadd.f32 %v512, %v543
        %545 = vmatmul.f32.gmra.mxu0 %v435
        %v546 = vpop.f32.mrf.mxu0
        %v547 = vadd.f32 %v512, %v546
        %548 = vdwg.mxu0
        %v549 = vld [vmem:[%s2] sm:$0xff]
        %v550 = vld [vmem:[%s2 + $0x8] sm:$0xff]
        %v551 = vld [vmem:[%s2 + $0x10] sm:$0xff]
        %v552 = vld [vmem:[%s2 + $0x18] sm:$0xff]
        %v553 = vld [vmem:[%s2 + $0x20] sm:$0xff]
        %v554 = vld [vmem:[%s2 + $0x28] sm:$0xff]
        %v555 = vld [vmem:[%s2 + $0x30] sm:$0xff]
        %v556 = vld [vmem:[%s2 + $0x38] sm:$0xff]
        %v557 = vld [vmem:[%s2 + $0x40] sm:$0xff]
        %v558 = vld [vmem:[%s2 + $0x48] sm:$0xff]
        %v559 = vld [vmem:[%s2 + $0x50] sm:$0xff]
        %v560 = vld [vmem:[%s2 + $0x58] sm:$0xff]
        %v561 = vld [vmem:[%s2 + $0x60] sm:$0xff]
        %v562 = vld [vmem:[%s2 + $0x68] sm:$0xff]
        %v563 = vld [vmem:[%s2 + $0x70] sm:$0xff]
        %v564 = vld [vmem:[%s2 + $0x78] sm:$0xff]
        %v565 = vld [vmem:[%s5] sm:$0x1]
        %v567 = vperm.slane %v565, 0
        %569 = vmatpush.msra.mxu0 %v564
        %570 = vmatpush.msra.mxu0 %v563
        %571 = vmatpush.msra.mxu0 %v562
        %572 = vmatpush.msra.mxu0 %v561
        %573 = vmatpush.msra.mxu0 %v560
        %574 = vmatpush.msra.mxu0 %v559
        %575 = vmatpush.msra.mxu0 %v558
        %576 = vmatpush.msra.mxu0 %v557
        %577 = vmatpush.msra.mxu0 %v556
        %578 = vmatpush.msra.mxu0 %v555
        %579 = vmatpush.msra.mxu0 %v554
        %580 = vmatpush.msra.mxu0 %v553
        %581 = vmatpush.msra.mxu0 %v552
        %582 = vmatpush.msra.mxu0 %v551
        %583 = vmatpush.msra.mxu0 %v550
        %584 = vmatpush.msra.mxu0 %v549
        %585 = vmatmul.f32.gmra.mxu0 %v430
        %v586 = vpop.f32.mrf.mxu0
        %v587 = vadd.f32 %v567, %v586
        %588 = vmatmul.f32.gmra.mxu0 %v431
        %v589 = vpop.f32.mrf.mxu0
        %v590 = vadd.f32 %v567, %v589
        %591 = vmatmul.f32.gmra.mxu0 %v432
        %v592 = vpop.f32.mrf.mxu0
        %v593 = vadd.f32 %v567, %v592
        %594 = vmatmul.f32.gmra.mxu0 %v433
        %v595 = vpop.f32.mrf.mxu0
        %v596 = vadd.f32 %v567, %v595
        %597 = vmatmul.f32.gmra.mxu0 %v434
        %v598 = vpop.f32.mrf.mxu0
        %v599 = vadd.f32 %v567, %v598
        %600 = vmatmul.f32.gmra.mxu0 %v435
        %v601 = vpop.f32.mrf.mxu0
        %v602 = vadd.f32 %v567, %v601
        %603 = vdwg.mxu0
        %v604 = vld [vmem:[%s3] sm:$0xff]
        %v605 = vld [vmem:[%s3 + $0x8] sm:$0xff]
        %v606 = vld [vmem:[%s3 + $0x10] sm:$0xff]
        %v607 = vld [vmem:[%s3 + $0x18] sm:$0xff]
        %v608 = vld [vmem:[%s3 + $0x20] sm:$0xff]
        %v609 = vld [vmem:[%s3 + $0x28] sm:$0xff]
        %v610 = vld [vmem:[%s3 + $0x30] sm:$0xff]
        %v611 = vld [vmem:[%s3 + $0x38] sm:$0xff]
        %v612 = vld [vmem:[%s3 + $0x40] sm:$0xff]
        %v613 = vld [vmem:[%s3 + $0x48] sm:$0xff]
        %v614 = vld [vmem:[%s3 + $0x50] sm:$0xff]
        %v615 = vld [vmem:[%s3 + $0x58] sm:$0xff]
        %v616 = vld [vmem:[%s3 + $0x60] sm:$0xff]
        %v617 = vld [vmem:[%s3 + $0x68] sm:$0xff]
        %v618 = vld [vmem:[%s3 + $0x70] sm:$0xff]
        %v619 = vld [vmem:[%s3 + $0x78] sm:$0xff]
        %v620 = vld [vmem:[%s6] sm:$0x1]
        %v622 = vperm.slane %v620, 0
        %624 = vmatpush.msra.mxu0 %v619
        %625 = vmatpush.msra.mxu0 %v618
        %626 = vmatpush.msra.mxu0 %v617
        %627 = vmatpush.msra.mxu0 %v616
        %628 = vmatpush.msra.mxu0 %v615
        %629 = vmatpush.msra.mxu0 %v614
        %630 = vmatpush.msra.mxu0 %v613
        %631 = vmatpush.msra.mxu0 %v612
        %632 = vmatpush.msra.mxu0 %v611
        %633 = vmatpush.msra.mxu0 %v610
        %634 = vmatpush.msra.mxu0 %v609
        %635 = vmatpush.msra.mxu0 %v608
        %636 = vmatpush.msra.mxu0 %v607
        %637 = vmatpush.msra.mxu0 %v606
        %638 = vmatpush.msra.mxu0 %v605
        %639 = vmatpush.msra.mxu0 %v604
        %640 = vmatmul.f32.gmra.mxu0 %v430
        %v641 = vpop.f32.mrf.mxu0
        %v642 = vadd.f32 %v622, %v641
        %643 = vmatmul.f32.gmra.mxu0 %v431
        %v644 = vpop.f32.mrf.mxu0
        %v645 = vadd.f32 %v622, %v644
        %646 = vmatmul.f32.gmra.mxu0 %v432
        %v647 = vpop.f32.mrf.mxu0
        %v648 = vadd.f32 %v622, %v647
        %649 = vmatmul.f32.gmra.mxu0 %v433
        %v650 = vpop.f32.mrf.mxu0
        %v651 = vadd.f32 %v622, %v650
        %652 = vmatmul.f32.gmra.mxu0 %v434
        %v653 = vpop.f32.mrf.mxu0
        %v654 = vadd.f32 %v622, %v653
        %655 = vmatmul.f32.gmra.mxu0 %v435
        %v656 = vpop.f32.mrf.mxu0
        %v657 = vadd.f32 %v622, %v656
        %658 = vdwg.mxu0
        %vm659 = vcmask 261120
        %v661 = vsel %vm659, %v532, 0
        %v664 = vsel %vm659, %v535, 0
        %v667 = vsel %vm659, %v538, 0
        %v670 = vsel %vm659, %v541, 0
        %v673 = vsel %vm659, %v544, 0
        %v676 = vsel %vm659, %v547, 0
        %v679 = vsel %vm659, %v587, 0
        %v682 = vsel %vm659, %v590, 0
        %v685 = vsel %vm659, %v593, 0
        %v688 = vsel %vm659, %v596, 0
        %v691 = vsel %vm659, %v599, 0
        %v694 = vsel %vm659, %v602, 0
        %696 = vmatpush.xpose.msra.mxu0 0.0
        %697 = vmatpush.xpose.msra.mxu0 0.0
        %698 = vmatpush.xpose.msra.mxu0 0.0
        %699 = vmatpush.xpose.msra.mxu0 0.0
        %700 = vmatpush.xpose.msra.mxu0 0.0
        %701 = vmatpush.xpose.msra.mxu0 0.0
        %702 = vmatpush.xpose.msra.mxu0 0.0
        %703 = vmatpush.xpose.msra.mxu0 0.0
        %704 = vmatpush.xpose.msra.mxu0 0.0
        %705 = vmatpush.xpose.msra.mxu0 0.0
        %706 = vmatpush.xpose.msra.mxu0 %v694
        %707 = vmatpush.xpose.msra.mxu0 %v691
        %708 = vmatpush.xpose.msra.mxu0 %v688
        %709 = vmatpush.xpose.msra.mxu0 %v685
        %710 = vmatpush.xpose.msra.mxu0 %v682
        %711 = vmatpush.xpose.msra.mxu0 %v679
        %712 = vmatmul.f32.gmra.mxu0 %v661
        %v713 = vpop.f32.mrf.mxu0
        %v714 = vadd.f32 0.0, %v713
        %715 = vmatmul.f32.gmra.mxu0 %v664
        %v716 = vpop.f32.mrf.mxu0
        %v717 = vadd.f32 0.0, %v716
        %718 = vmatmul.f32.gmra.mxu0 %v667
        %v719 = vpop.f32.mrf.mxu0
        %v720 = vadd.f32 0.0, %v719
        %721 = vmatmul.f32.gmra.mxu0 %v670
        %v722 = vpop.f32.mrf.mxu0
        %v723 = vadd.f32 0.0, %v722
        %724 = vmatmul.f32.gmra.mxu0 %v673
        %v725 = vpop.f32.mrf.mxu0
        %v726 = vadd.f32 0.0, %v725
        %727 = vmatmul.f32.gmra.mxu0 %v676
        %v728 = vpop.f32.mrf.mxu0
        %v729 = vadd.f32 0.0, %v728
        %730 = vdwg.mxu0
        %v731 = vmul.f32 %v714, 0.17677669
        %v732 = vmul.f32 %v717, 0.17677669
        %v733 = vmul.f32 %v720, 0.17677669
        %v734 = vmul.f32 %v723, 0.17677669
        %v735 = vmul.f32 %v726, 0.17677669
        %v736 = vmul.f32 %v729, 0.17677669
        %vm737 = vcmp.eq.f32.partialorder %v476, 0.0
        %vm738 = vcmp.eq.f32.partialorder %v477, 0.0
        %vm739 = vcmp.eq.f32.partialorder %v478, 0.0
        %vm740 = vcmp.eq.f32.partialorder %v479, 0.0
        %vm741 = vcmp.eq.f32.partialorder %v480, 0.0
        %vm742 = vcmp.eq.f32.partialorder %v481, 0.0
        %v743 = vsel %vm737, -1e+09, %v731
        %v744 = vsel %vm738, -1e+09, %v732
        %v745 = vsel %vm739, -1e+09, %v733
        %v746 = vsel %vm740, -1e+09, %v734
        %v747 = vsel %vm741, -1e+09, %v735
        %v748 = vsel %vm742, -1e+09, %v736
        %v749 = vsel %vm487, %v743, -inf
        %v750 = vsel %vm487, %v744, -inf
        %v751 = vsel %vm487, %v745, -inf
        %v752 = vsel %vm487, %v746, -inf
        %v753 = vsel %vm487, %v747, -inf
        %v754 = vsel %vm487, %v748, -inf
        %vm755 = vcmask 392192
        %v756 = vsel %vm755, %v749, -inf
        %757 = vmax.xlane.f32.xlu0 %v756
        %v758 = vpop.xlane.xlu0 %757
        %v759 = vsel %vm755, %v750, -inf
        %760 = vmax.xlane.f32.xlu0 %v759
        %v761 = vpop.xlane.xlu0 %760
        %v762 = vsel %vm755, %v751, -inf
        %763 = vmax.xlane.f32.xlu0 %v762
        %v764 = vpop.xlane.xlu0 %763
        %v765 = vsel %vm755, %v752, -inf
        %766 = vmax.xlane.f32.xlu0 %v765
        %v767 = vpop.xlane.xlu0 %766
        %v768 = vsel %vm755, %v753, -inf
        %769 = vmax.xlane.f32.xlu0 %v768
        %v770 = vpop.xlane.xlu0 %769
        %v771 = vsel %vm755, %v754, -inf
        %772 = vmax.xlane.f32.xlu0 %v771
        %v773 = vpop.xlane.xlu0 %772
        %v774 = vsel %vm487, %v758, 0.0
        %v775 = vsel %vm487, %v761, 0.0
        %v776 = vsel %vm487, %v764, 0.0
        %v777 = vsel %vm487, %v767, 0.0
        %v778 = vsel %vm487, %v770, 0.0
        %v779 = vsel %vm487, %v773, 0.0
        %v780 = vadd.f32 %v774, 0.0
        %v781 = vadd.f32 %v775, 0.0
        %v782 = vadd.f32 %v776, 0.0
        %v783 = vadd.f32 %v777, 0.0
        %v784 = vadd.f32 %v778, 0.0
        %v785 = vadd.f32 %v779, 0.0
        %v786 = vsel %vm490, %v743, -inf
        %v787 = vsel %vm490, %v744, -inf
        %v788 = vsel %vm490, %v745, -inf
        %v789 = vsel %vm490, %v746, -inf
        %v790 = vsel %vm490, %v747, -inf
        %v791 = vsel %vm490, %v748, -inf
        %v792 = vsel %vm755, %v786, -inf
        %793 = vmax.xlane.f32.xlu0 %v792
        %v794 = vpop.xlane.xlu0 %793
        %v795 = vsel %vm755, %v787, -inf
        %796 = vmax.xlane.f32.xlu0 %v795
        %v797 = vpop.xlane.xlu0 %796
        %v798 = vsel %vm755, %v788, -inf
        %799 = vmax.xlane.f32.xlu0 %v798
        %v800 = vpop.xlane.xlu0 %799
        %v801 = vsel %vm755, %v789, -inf
        %802 = vmax.xlane.f32.xlu0 %v801
        %v803 = vpop.xlane.xlu0 %802
        %v804 = vsel %vm755, %v790, -inf
        %805 = vmax.xlane.f32.xlu0 %v804
        %v806 = vpop.xlane.xlu0 %805
        %v807 = vsel %vm755, %v791, -inf
        %808 = vmax.xlane.f32.xlu0 %v807
        %v809 = vpop.xlane.xlu0 %808
        %v810 = vsel %vm490, %v794, 0.0
        %v811 = vsel %vm490, %v797, 0.0
        %v812 = vsel %vm490, %v800, 0.0
        %v813 = vsel %vm490, %v803, 0.0
        %v814 = vsel %vm490, %v806, 0.0
        %v815 = vsel %vm490, %v809, 0.0
        %v816 = vadd.f32 %v780, %v810
        %v817 = vadd.f32 %v781, %v811
        %v818 = vadd.f32 %v782, %v812
        %v819 = vadd.f32 %v783, %v813
        %v820 = vadd.f32 %v784, %v814
        %v821 = vadd.f32 %v785, %v815
        %v822 = vsel %vm493, %v743, -inf
        %v823 = vsel %vm493, %v744, -inf
        %v824 = vsel %vm493, %v745, -inf
        %v825 = vsel %vm493, %v746, -inf
        %v826 = vsel %vm493, %v747, -inf
        %v827 = vsel %vm493, %v748, -inf
        %v828 = vsel %vm755, %v822, -inf
        %829 = vmax.xlane.f32.xlu0 %v828
        %v830 = vpop.xlane.xlu0 %829
        %v831 = vsel %vm755, %v823, -inf
        %832 = vmax.xlane.f32.xlu0 %v831
        %v833 = vpop.xlane.xlu0 %832
        %v834 = vsel %vm755, %v824, -inf
        %835 = vmax.xlane.f32.xlu0 %v834
        %v836 = vpop.xlane.xlu0 %835
        %v837 = vsel %vm755, %v825, -inf
        %838 = vmax.xlane.f32.xlu0 %v837
        %v839 = vpop.xlane.xlu0 %838
        %v840 = vsel %vm755, %v826, -inf
        %841 = vmax.xlane.f32.xlu0 %v840
        %v842 = vpop.xlane.xlu0 %841
        %v843 = vsel %vm755, %v827, -inf
        %844 = vmax.xlane.f32.xlu0 %v843
        %v845 = vpop.xlane.xlu0 %844
        %v846 = vsel %vm493, %v830, 0.0
        %v847 = vsel %vm493, %v833, 0.0
        %v848 = vsel %vm493, %v836, 0.0
        %v849 = vsel %vm493, %v839, 0.0
        %v850 = vsel %vm493, %v842, 0.0
        %v851 = vsel %vm493, %v845, 0.0
        %v852 = vadd.f32 %v816, %v846
        %v853 = vadd.f32 %v817, %v847
        %v854 = vadd.f32 %v818, %v848
        %v855 = vadd.f32 %v819, %v849
        %v856 = vadd.f32 %v820, %v850
        %v857 = vadd.f32 %v821, %v851
        %v858 = vsub.f32 %v743, %v852
        %v859 = vsub.f32 %v744, %v853
        %v860 = vsub.f32 %v745, %v854
        %v861 = vsub.f32 %v746, %v855
        %v862 = vsub.f32 %v747, %v856
        %v863 = vsub.f32 %v748, %v857
        %v864 = vmul.f32 %v858, 1.442695
        %v865 = vpow.pop %v864
        %v866 = vmul.f32 %v859, 1.442695
        %v867 = vpow.pop %v866
        %v868 = vmul.f32 %v860, 1.442695
        %v869 = vpow.pop %v868
        %v870 = vmul.f32 %v861, 1.442695
        %v871 = vpow.pop %v870
        %v872 = vmul.f32 %v862, 1.442695
        %v873 = vpow.pop %v872
        %v874 = vmul.f32 %v863, 1.442695
        %v875 = vpow.pop %v874
        %v876 = vsel %vm487, %v865, 0.0
        %v877 = vsel %vm487, %v867, 0.0
        %v878 = vsel %vm487, %v869, 0.0
        %v879 = vsel %vm487, %v871, 0.0
        %v880 = vsel %vm487, %v873, 0.0
        %v881 = vsel %vm487, %v875, 0.0
        %v882 = vsel %vm755, %v876, 0.0
        %883 = vadd.xlane.f32.xlu0 %v882
        %v884 = vpop.xlane.xlu0 %883
        %v885 = vsel %vm755, %v877, 0.0
        %886 = vadd.xlane.f32.xlu0 %v885
        %v887 = vpop.xlane.xlu0 %886
        %v888 = vsel %vm755, %v878, 0.0
        %889 = vadd.xlane.f32.xlu0 %v888
        %v890 = vpop.xlane.xlu0 %889
        %v891 = vsel %vm755, %v879, 0.0
        %892 = vadd.xlane.f32.xlu0 %v891
        %v893 = vpop.xlane.xlu0 %892
        %v894 = vsel %vm755, %v880, 0.0
        %895 = vadd.xlane.f32.xlu0 %v894
        %v896 = vpop.xlane.xlu0 %895
        %v897 = vsel %vm755, %v881, 0.0
        %898 = vadd.xlane.f32.xlu0 %v897
        %v899 = vpop.xlane.xlu0 %898
        %v900 = vsel %vm487, %v884, 0.0
        %v901 = vsel %vm487, %v887, 0.0
        %v902 = vsel %vm487, %v890, 0.0
        %v903 = vsel %vm487, %v893, 0.0
        %v904 = vsel %vm487, %v896, 0.0
        %v905 = vsel %vm487, %v899, 0.0
        %v906 = vadd.f32 %v900, 0.0
        %v907 = vadd.f32 %v901, 0.0
        %v908 = vadd.f32 %v902, 0.0
        %v909 = vadd.f32 %v903, 0.0
        %v910 = vadd.f32 %v904, 0.0
        %v911 = vadd.f32 %v905, 0.0
        %v912 = vsel %vm490, %v865, 0.0
        %v913 = vsel %vm490, %v867, 0.0
        %v914 = vsel %vm490, %v869, 0.0
        %v915 = vsel %vm490, %v871, 0.0
        %v916 = vsel %vm490, %v873, 0.0
        %v917 = vsel %vm490, %v875, 0.0
        %v918 = vsel %vm755, %v912, 0.0
        %919 = vadd.xlane.f32.xlu0 %v918
        %v920 = vpop.xlane.xlu0 %919
        %v921 = vsel %vm755, %v913, 0.0
        %922 = vadd.xlane.f32.xlu0 %v921
        %v923 = vpop.xlane.xlu0 %922
        %v924 = vsel %vm755, %v914, 0.0
        %925 = vadd.xlane.f32.xlu0 %v924
        %v926 = vpop.xlane.xlu0 %925
        %v927 = vsel %vm755, %v915, 0.0
        %928 = vadd.xlane.f32.xlu0 %v927
        %v929 = vpop.xlane.xlu0 %928
        %v930 = vsel %vm755, %v916, 0.0
        %931 = vadd.xlane.f32.xlu0 %v930
        %v932 = vpop.xlane.xlu0 %931
        %v933 = vsel %vm755, %v917, 0.0
        %934 = vadd.xlane.f32.xlu0 %v933
        %v935 = vpop.xlane.xlu0 %934
        %v936 = vsel %vm490, %v920, 0.0
        %v937 = vsel %vm490, %v923, 0.0
        %v938 = vsel %vm490, %v926, 0.0
        %v939 = vsel %vm490, %v929, 0.0
        %v940 = vsel %vm490, %v932, 0.0
        %v941 = vsel %vm490, %v935, 0.0
        %v942 = vadd.f32 %v906, %v936
        %v943 = vadd.f32 %v907, %v937
        %v944 = vadd.f32 %v908, %v938
        %v945 = vadd.f32 %v909, %v939
        %v946 = vadd.f32 %v910, %v940
        %v947 = vadd.f32 %v911, %v941
        %v948 = vsel %vm493, %v865, 0.0
        %v949 = vsel %vm493, %v867, 0.0
        %v950 = vsel %vm493, %v869, 0.0
        %v951 = vsel %vm493, %v871, 0.0
        %v952 = vsel %vm493, %v873, 0.0
        %v953 = vsel %vm493, %v875, 0.0
        %v954 = vsel %vm755, %v948, 0.0
        %955 = vadd.xlane.f32.xlu0 %v954
        %v956 = vpop.xlane.xlu0 %955
        %v957 = vsel %vm755, %v949, 0.0
        %958 = vadd.xlane.f32.xlu0 %v957
        %v959 = vpop.xlane.xlu0 %958
        %v960 = vsel %vm755, %v950, 0.0
        %961 = vadd.xlane.f32.xlu0 %v960
        %v962 = vpop.xlane.xlu0 %961
        %v963 = vsel %vm755, %v951, 0.0
        %964 = vadd.xlane.f32.xlu0 %v963
        %v965 = vpop.xlane.xlu0 %964
        %v966 = vsel %vm755, %v952, 0.0
        %967 = vadd.xlane.f32.xlu0 %v966
        %v968 = vpop.xlane.xlu0 %967
        %v969 = vsel %vm755, %v953, 0.0
        %970 = vadd.xlane.f32.xlu0 %v969
        %v971 = vpop.xlane.xlu0 %970
        %v972 = vsel %vm493, %v956, 0.0
        %v973 = vsel %vm493, %v959, 0.0
        %v974 = vsel %vm493, %v962, 0.0
        %v975 = vsel %vm493, %v965, 0.0
        %v976 = vsel %vm493, %v968, 0.0
        %v977 = vsel %vm493, %v971, 0.0
        %v978 = vadd.f32 %v942, %v972
        %v979 = vadd.f32 %v943, %v973
        %v980 = vadd.f32 %v944, %v974
        %v981 = vadd.f32 %v945, %v975
        %v982 = vadd.f32 %v946, %v976
        %v983 = vadd.f32 %v947, %v977
        %v984 = vrcp.pop %v978
        %v985 = vmul.f32 %v978, %v984
        %v986 = vsub.f32 1.0, %v985
        %v987 = vmul.f32 %v984, %v986
        %v988 = vadd.f32 %v984, %v987
        %vm989 = vweird.f32 %v978
        %vm990 = vweird.f32 %v984
        %vm991 = vmor %vm989, %vm990
        %v992 = vsel %vm991, %v984, %v988
        %v993 = vand.u32 2147483647, %v978
        %vm994 = vcmp.eq.f32.partialorder %v993, 8.507059e+37
        %v995 = vand.u32 %v978, 2147483648
        %v996 = vor.u32 1.1754944e-38, %v995
        %v997 = vsel %vm994, %v996, %v992
        %v998 = vmul.f32 %v865, %v997
        %v999 = vrcp.pop %v979
        %v1000 = vmul.f32 %v979, %v999
        %v1001 = vsub.f32 1.0, %v1000
        %v1002 = vmul.f32 %v999, %v1001
        %v1003 = vadd.f32 %v999, %v1002
        %vm1004 = vweird.f32 %v979
        %vm1005 = vweird.f32 %v999
        %vm1006 = vmor %vm1004, %vm1005
        %v1007 = vsel %vm1006, %v999, %v1003
        %v1008 = vand.u32 2147483647, %v979
        %vm1009 = vcmp.eq.f32.partialorder %v1008, 8.507059e+37
        %v1010 = vand.u32 %v979, 2147483648
        %v1011 = vor.u32 1.1754944e-38, %v1010
        %v1012 = vsel %vm1009, %v1011, %v1007
        %v1013 = vmul.f32 %v867, %v1012
        %v1014 = vrcp.pop %v980
        %v1015 = vmul.f32 %v980, %v1014
        %v1016 = vsub.f32 1.0, %v1015
        %v1017 = vmul.f32 %v1014, %v1016
        %v1018 = vadd.f32 %v1014, %v1017
        %vm1019 = vweird.f32 %v980
        %vm1020 = vweird.f32 %v1014
        %vm1021 = vmor %vm1019, %vm1020
        %v1022 = vsel %vm1021, %v1014, %v1018
        %v1023 = vand.u32 2147483647, %v980
        %vm1024 = vcmp.eq.f32.partialorder %v1023, 8.507059e+37
        %v1025 = vand.u32 %v980, 2147483648
        %v1026 = vor.u32 1.1754944e-38, %v1025
        %v1027 = vsel %vm1024, %v1026, %v1022
        %v1028 = vmul.f32 %v869, %v1027
        %v1029 = vrcp.pop %v981
        %v1030 = vmul.f32 %v981, %v1029
        %v1031 = vsub.f32 1.0, %v1030
        %v1032 = vmul.f32 %v1029, %v1031
        %v1033 = vadd.f32 %v1029, %v1032
        %vm1034 = vweird.f32 %v981
        %vm1035 = vweird.f32 %v1029
        %vm1036 = vmor %vm1034, %vm1035
        %v1037 = vsel %vm1036, %v1029, %v1033
        %v1038 = vand.u32 2147483647, %v981
        %vm1039 = vcmp.eq.f32.partialorder %v1038, 8.507059e+37
        %v1040 = vand.u32 %v981, 2147483648
        %v1041 = vor.u32 1.1754944e-38, %v1040
        %v1042 = vsel %vm1039, %v1041, %v1037
        %v1043 = vmul.f32 %v871, %v1042
        %v1044 = vrcp.pop %v982
        %v1045 = vmul.f32 %v982, %v1044
        %v1046 = vsub.f32 1.0, %v1045
        %v1047 = vmul.f32 %v1044, %v1046
        %v1048 = vadd.f32 %v1044, %v1047
        %vm1049 = vweird.f32 %v982
        %vm1050 = vweird.f32 %v1044
        %vm1051 = vmor %vm1049, %vm1050
        %v1052 = vsel %vm1051, %v1044, %v1048
        %v1053 = vand.u32 2147483647, %v982
        %vm1054 = vcmp.eq.f32.partialorder %v1053, 8.507059e+37
        %v1055 = vand.u32 %v982, 2147483648
        %v1056 = vor.u32 1.1754944e-38, %v1055
        %v1057 = vsel %vm1054, %v1056, %v1052
        %v1058 = vmul.f32 %v873, %v1057
        %v1059 = vrcp.pop %v983
        %v1060 = vmul.f32 %v983, %v1059
        %v1061 = vsub.f32 1.0, %v1060
        %v1062 = vmul.f32 %v1059, %v1061
        %v1063 = vadd.f32 %v1059, %v1062
        %vm1064 = vweird.f32 %v983
        %vm1065 = vweird.f32 %v1059
        %vm1066 = vmor %vm1064, %vm1065
        %v1067 = vsel %vm1066, %v1059, %v1063
        %v1068 = vand.u32 2147483647, %v983
        %vm1069 = vcmp.eq.f32.partialorder %v1068, 8.507059e+37
        %v1070 = vand.u32 %v983, 2147483648
        %v1071 = vor.u32 1.1754944e-38, %v1070
        %v1072 = vsel %vm1069, %v1071, %v1067
        %v1073 = vmul.f32 %v875, %v1072
        %v1075 = vperm.slane %v482, 0
        %v1077 = vmul.f32 %v998, %v1075
        %v1078 = vmul.f32 %v1013, %v1075
        %v1079 = vmul.f32 %v1028, %v1075
        %v1080 = vmul.f32 %v1043, %v1075
        %v1081 = vmul.f32 %v1058, %v1075
        %v1082 = vmul.f32 %v1073, %v1075
        %1083 = vst.msk [vmem:[%s416] sm:$0xff] %vm755, %v1077
        %1084 = vst.msk [vmem:[%s416 + $0x8] sm:$0xff] %vm755, %v1078
        %1085 = vst.msk [vmem:[%s416 + $0x10] sm:$0xff] %vm755, %v1079
        %1086 = vst.msk [vmem:[%s416 + $0x18] sm:$0xff] %vm755, %v1080
        %1087 = vst.msk [vmem:[%s416 + $0x20] sm:$0xff] %vm755, %v1081
        %1088 = vst.msk [vmem:[%s416 + $0x28] sm:$0xff] %vm755, %v1082
        %v1090 = vsel %vm755, %v1077, 0
        %v1093 = vsel %vm755, %v1078, 0
        %v1096 = vsel %vm755, %v1079, 0
        %v1099 = vsel %vm755, %v1080, 0
        %v1102 = vsel %vm755, %v1081, 0
        %v1105 = vsel %vm755, %v1082, 0
        %1107 = vmatpush.msra.mxu0 0.0
        %1108 = vmatpush.msra.mxu0 0.0
        %1109 = vmatpush.msra.mxu0 0.0
        %1110 = vmatpush.msra.mxu0 0.0
        %1111 = vmatpush.msra.mxu0 0.0
        %1112 = vmatpush.msra.mxu0 0.0
        %1113 = vmatpush.msra.mxu0 0.0
        %1114 = vmatpush.msra.mxu0 0.0
        %1115 = vmatpush.msra.mxu0 0.0
        %1116 = vmatpush.msra.mxu0 0.0
        %1117 = vmatpush.msra.mxu0 %v657
        %1118 = vmatpush.msra.mxu0 %v654
        %1119 = vmatpush.msra.mxu0 %v651
        %1120 = vmatpush.msra.mxu0 %v648
        %1121 = vmatpush.msra.mxu0 %v645
        %1122 = vmatpush.msra.mxu0 %v642
        %1123 = vmatmul.f32.gmra.mxu0 %v1090
        %v1124 = vpop.f32.mrf.mxu0
        %v1125 = vadd.f32 0.0, %v1124
        %1126 = vmatmul.f32.gmra.mxu0 %v1093
        %v1127 = vpop.f32.mrf.mxu0
        %v1128 = vadd.f32 0.0, %v1127
        %1129 = vmatmul.f32.gmra.mxu0 %v1096
        %v1130 = vpop.f32.mrf.mxu0
        %v1131 = vadd.f32 0.0, %v1130
        %1132 = vmatmul.f32.gmra.mxu0 %v1099
        %v1133 = vpop.f32.mrf.mxu0
        %v1134 = vadd.f32 0.0, %v1133
        %1135 = vmatmul.f32.gmra.mxu0 %v1102
        %v1136 = vpop.f32.mrf.mxu0
        %v1137 = vadd.f32 0.0, %v1136
        %1138 = vmatmul.f32.gmra.mxu0 %v1105
        %v1139 = vpop.f32.mrf.mxu0
        %v1140 = vadd.f32 0.0, %v1139
        %1141 = vdwg.mxu0
        %s1142 = scalar_lea.vmem %s1, 128
        %v1143 = vld [vmem:[%s1142] sm:$0xff]
        %v1144 = vld [vmem:[%s1142 + $0x8] sm:$0xff]
        %v1145 = vld [vmem:[%s1142 + $0x10] sm:$0xff]
        %v1146 = vld [vmem:[%s1142 + $0x18] sm:$0xff]
        %v1147 = vld [vmem:[%s1142 + $0x20] sm:$0xff]
        %v1148 = vld [vmem:[%s1142 + $0x28] sm:$0xff]
        %v1149 = vld [vmem:[%s1142 + $0x30] sm:$0xff]
        %v1150 = vld [vmem:[%s1142 + $0x38] sm:$0xff]
        %v1151 = vld [vmem:[%s1142 + $0x40] sm:$0xff]
        %v1152 = vld [vmem:[%s1142 + $0x48] sm:$0xff]
        %v1153 = vld [vmem:[%s1142 + $0x50] sm:$0xff]
        %v1154 = vld [vmem:[%s1142 + $0x58] sm:$0xff]
        %v1155 = vld [vmem:[%s1142 + $0x60] sm:$0xff]
        %v1156 = vld [vmem:[%s1142 + $0x68] sm:$0xff]
        %v1157 = vld [vmem:[%s1142 + $0x70] sm:$0xff]
        %v1158 = vld [vmem:[%s1142 + $0x78] sm:$0xff]
        %s1159 = scalar_lea.vmem %s4, 1
        %v1160 = vld [vmem:[%s1159] sm:$0x1]
        %v1162 = vperm.slane %v1160, 0
        %1164 = vmatpush.msra.mxu0 %v1158
        %1165 = vmatpush.msra.mxu0 %v1157
        %1166 = vmatpush.msra.mxu0 %v1156
        %1167 = vmatpush.msra.mxu0 %v1155
        %1168 = vmatpush.msra.mxu0 %v1154
        %1169 = vmatpush.msra.mxu0 %v1153
        %1170 = vmatpush.msra.mxu0 %v1152
        %1171 = vmatpush.msra.mxu0 %v1151
        %1172 = vmatpush.msra.mxu0 %v1150
        %1173 = vmatpush.msra.mxu0 %v1149
        %1174 = vmatpush.msra.mxu0 %v1148
        %1175 = vmatpush.msra.mxu0 %v1147
        %1176 = vmatpush.msra.mxu0 %v1146
        %1177 = vmatpush.msra.mxu0 %v1145
        %1178 = vmatpush.msra.mxu0 %v1144
        %1179 = vmatpush.msra.mxu0 %v1143
        %1180 = vmatmul.f32.gmra.mxu0 %v430
        %v1181 = vpop.f32.mrf.mxu0
        %v1182 = vadd.f32 %v1162, %v1181
        %1183 = vmatmul.f32.gmra.mxu0 %v431
        %v1184 = vpop.f32.mrf.mxu0
        %v1185 = vadd.f32 %v1162, %v1184
        %1186 = vmatmul.f32.gmra.mxu0 %v432
        %v1187 = vpop.f32.mrf.mxu0
        %v1188 = vadd.f32 %v1162, %v1187
        %1189 = vmatmul.f32.gmra.mxu0 %v433
        %v1190 = vpop.f32.mrf.mxu0
        %v1191 = vadd.f32 %v1162, %v1190
        %1192 = vmatmul.f32.gmra.mxu0 %v434
        %v1193 = vpop.f32.mrf.mxu0
        %v1194 = vadd.f32 %v1162, %v1193
        %1195 = vmatmul.f32.gmra.mxu0 %v435
        %v1196 = vpop.f32.mrf.mxu0
        %v1197 = vadd.f32 %v1162, %v1196
        %1198 = vdwg.mxu0
        %s1199 = scalar_lea.vmem %s2, 128
        %v1200 = vld [vmem:[%s1199] sm:$0xff]
        %v1201 = vld [vmem:[%s1199 + $0x8] sm:$0xff]
        %v1202 = vld [vmem:[%s1199 + $0x10] sm:$0xff]
        %v1203 = vld [vmem:[%s1199 + $0x18] sm:$0xff]
        %v1204 = vld [vmem:[%s1199 + $0x20] sm:$0xff]
        %v1205 = vld [vmem:[%s1199 + $0x28] sm:$0xff]
        %v1206 = vld [vmem:[%s1199 + $0x30] sm:$0xff]
        %v1207 = vld [vmem:[%s1199 + $0x38] sm:$0xff]
        %v1208 = vld [vmem:[%s1199 + $0x40] sm:$0xff]
        %v1209 = vld [vmem:[%s1199 + $0x48] sm:$0xff]
        %v1210 = vld [vmem:[%s1199 + $0x50] sm:$0xff]
        %v1211 = vld [vmem:[%s1199 + $0x58] sm:$0xff]
        %v1212 = vld [vmem:[%s1199 + $0x60] sm:$0xff]
        %v1213 = vld [vmem:[%s1199 + $0x68] sm:$0xff]
        %v1214 = vld [vmem:[%s1199 + $0x70] sm:$0xff]
        %v1215 = vld [vmem:[%s1199 + $0x78] sm:$0xff]
        %s1216 = scalar_lea.vmem %s5, 1
        %v1217 = vld [vmem:[%s1216] sm:$0x1]
        %v1219 = vperm.slane %v1217, 0
        %1221 = vmatpush.msra.mxu0 %v1215
        %1222 = vmatpush.msra.mxu0 %v1214
        %1223 = vmatpush.msra.mxu0 %v1213
        %1224 = vmatpush.msra.mxu0 %v1212
        %1225 = vmatpush.msra.mxu0 %v1211
        %1226 = vmatpush.msra.mxu0 %v1210
        %1227 = vmatpush.msra.mxu0 %v1209
        %1228 = vmatpush.msra.mxu0 %v1208
        %1229 = vmatpush.msra.mxu0 %v1207
        %1230 = vmatpush.msra.mxu0 %v1206
        %1231 = vmatpush.msra.mxu0 %v1205
        %1232 = vmatpush.msra.mxu0 %v1204
        %1233 = vmatpush.msra.mxu0 %v1203
        %1234 = vmatpush.msra.mxu0 %v1202
        %1235 = vmatpush.msra.mxu0 %v1201
        %1236 = vmatpush.msra.mxu0 %v1200
        %1237 = vmatmul.f32.gmra.mxu0 %v430
        %v1238 = vpop.f32.mrf.mxu0
        %v1239 = vadd.f32 %v1219, %v1238
        %1240 = vmatmul.f32.gmra.mxu0 %v431
        %v1241 = vpop.f32.mrf.mxu0
        %v1242 = vadd.f32 %v1219, %v1241
        %1243 = vmatmul.f32.gmra.mxu0 %v432
        %v1244 = vpop.f32.mrf.mxu0
        %v1245 = vadd.f32 %v1219, %v1244
        %1246 = vmatmul.f32.gmra.mxu0 %v433
        %v1247 = vpop.f32.mrf.mxu0
        %v1248 = vadd.f32 %v1219, %v1247
        %1249 = vmatmul.f32.gmra.mxu0 %v434
        %v1250 = vpop.f32.mrf.mxu0
        %v1251 = vadd.f32 %v1219, %v1250
        %1252 = vmatmul.f32.gmra.mxu0 %v435
        %v1253 = vpop.f32.mrf.mxu0
        %v1254 = vadd.f32 %v1219, %v1253
        %1255 = vdwg.mxu0
        %s1256 = scalar_lea.vmem %s3, 128
        %v1257 = vld [vmem:[%s1256] sm:$0xff]
        %v1258 = vld [vmem:[%s1256 + $0x8] sm:$0xff]
        %v1259 = vld [vmem:[%s1256 + $0x10] sm:$0xff]
        %v1260 = vld [vmem:[%s1256 + $0x18] sm:$0xff]
        %v1261 = vld [vmem:[%s1256 + $0x20] sm:$0xff]
        %v1262 = vld [vmem:[%s1256 + $0x28] sm:$0xff]
        %v1263 = vld [vmem:[%s1256 + $0x30] sm:$0xff]
        %v1264 = vld [vmem:[%s1256 + $0x38] sm:$0xff]
        %v1265 = vld [vmem:[%s1256 + $0x40] sm:$0xff]
        %v1266 = vld [vmem:[%s1256 + $0x48] sm:$0xff]
        %v1267 = vld [vmem:[%s1256 + $0x50] sm:$0xff]
        %v1268 = vld [vmem:[%s1256 + $0x58] sm:$0xff]
        %v1269 = vld [vmem:[%s1256 + $0x60] sm:$0xff]
        %v1270 = vld [vmem:[%s1256 + $0x68] sm:$0xff]
        %v1271 = vld [vmem:[%s1256 + $0x70] sm:$0xff]
        %v1272 = vld [vmem:[%s1256 + $0x78] sm:$0xff]
        %s1273 = scalar_lea.vmem %s6, 1
        %v1274 = vld [vmem:[%s1273] sm:$0x1]
        %v1276 = vperm.slane %v1274, 0
        %1278 = vmatpush.msra.mxu0 %v1272
        %1279 = vmatpush.msra.mxu0 %v1271
        %1280 = vmatpush.msra.mxu0 %v1270
        %1281 = vmatpush.msra.mxu0 %v1269
        %1282 = vmatpush.msra.mxu0 %v1268
        %1283 = vmatpush.msra.mxu0 %v1267
        %1284 = vmatpush.msra.mxu0 %v1266
        %1285 = vmatpush.msra.mxu0 %v1265
        %1286 = vmatpush.msra.mxu0 %v1264
        %1287 = vmatpush.msra.mxu0 %v1263
        %1288 = vmatpush.msra.mxu0 %v1262
        %1289 = vmatpush.msra.mxu0 %v1261
        %1290 = vmatpush.msra.mxu0 %v1260
        %1291 = vmatpush.msra.mxu0 %v1259
        %1292 = vmatpush.msra.mxu0 %v1258
        %1293 = vmatpush.msra.mxu0 %v1257
        %1294 = vmatmul.f32.gmra.mxu0 %v430
        %v1295 = vpop.f32.mrf.mxu0
        %v1296 = vadd.f32 %v1276, %v1295
        %1297 = vmatmul.f32.gmra.mxu0 %v431
        %v1298 = vpop.f32.mrf.mxu0
        %v1299 = vadd.f32 %v1276, %v1298
        %1300 = vmatmul.f32.gmra.mxu0 %v432
        %v1301 = vpop.f32.mrf.mxu0
        %v1302 = vadd.f32 %v1276, %v1301
        %1303 = vmatmul.f32.gmra.mxu0 %v433
        %v1304 = vpop.f32.mrf.mxu0
        %v1305 = vadd.f32 %v1276, %v1304
        %1306 = vmatmul.f32.gmra.mxu0 %v434
        %v1307 = vpop.f32.mrf.mxu0
        %v1308 = vadd.f32 %v1276, %v1307
        %1309 = vmatmul.f32.gmra.mxu0 %v435
        %v1310 = vpop.f32.mrf.mxu0
        %v1311 = vadd.f32 %v1276, %v1310
        %1312 = vdwg.mxu0
        %v1314 = vsel %vm659, %v1182, 0
        %v1317 = vsel %vm659, %v1185, 0
        %v1320 = vsel %vm659, %v1188, 0
        %v1323 = vsel %vm659, %v1191, 0
        %v1326 = vsel %vm659, %v1194, 0
        %v1329 = vsel %vm659, %v1197, 0
        %v1332 = vsel %vm659, %v1239, 0
        %v1335 = vsel %vm659, %v1242, 0
        %v1338 = vsel %vm659, %v1245, 0
        %v1341 = vsel %vm659, %v1248, 0
        %v1344 = vsel %vm659, %v1251, 0
        %v1347 = vsel %vm659, %v1254, 0
        %1349 = vmatpush.xpose.msra.mxu0 0.0
        %1350 = vmatpush.xpose.msra.mxu0 0.0
        %1351 = vmatpush.xpose.msra.mxu0 0.0
        %1352 = vmatpush.xpose.msra.mxu0 0.0
        %1353 = vmatpush.xpose.msra.mxu0 0.0
        %1354 = vmatpush.xpose.msra.mxu0 0.0
        %1355 = vmatpush.xpose.msra.mxu0 0.0
        %1356 = vmatpush.xpose.msra.mxu0 0.0
        %1357 = vmatpush.xpose.msra.mxu0 0.0
        %1358 = vmatpush.xpose.msra.mxu0 0.0
        %1359 = vmatpush.xpose.msra.mxu0 %v1347
        %1360 = vmatpush.xpose.msra.mxu0 %v1344
        %1361 = vmatpush.xpose.msra.mxu0 %v1341
        %1362 = vmatpush.xpose.msra.mxu0 %v1338
        %1363 = vmatpush.xpose.msra.mxu0 %v1335
        %1364 = vmatpush.xpose.msra.mxu0 %v1332
        %1365 = vmatmul.f32.gmra.mxu0 %v1314
        %v1366 = vpop.f32.mrf.mxu0
        %v1367 = vadd.f32 0.0, %v1366
        %1368 = vmatmul.f32.gmra.mxu0 %v1317
        %v1369 = vpop.f32.mrf.mxu0
        %v1370 = vadd.f32 0.0, %v1369
        %1371 = vmatmul.f32.gmra.mxu0 %v1320
        %v1372 = vpop.f32.mrf.mxu0
        %v1373 = vadd.f32 0.0, %v1372
        %1374 = vmatmul.f32.gmra.mxu0 %v1323
        %v1375 = vpop.f32.mrf.mxu0
        %v1376 = vadd.f32 0.0, %v1375
        %1377 = vmatmul.f32.gmra.mxu0 %v1326
        %v1378 = vpop.f32.mrf.mxu0
        %v1379 = vadd.f32 0.0, %v1378
        %1380 = vmatmul.f32.gmra.mxu0 %v1329
        %v1381 = vpop.f32.mrf.mxu0
        %v1382 = vadd.f32 0.0, %v1381
        %1383 = vdwg.mxu0
        %v1384 = vmul.f32 %v1367, 0.17677669
        %v1385 = vmul.f32 %v1370, 0.17677669
        %v1386 = vmul.f32 %v1373, 0.17677669
        %v1387 = vmul.f32 %v1376, 0.17677669
        %v1388 = vmul.f32 %v1379, 0.17677669
        %v1389 = vmul.f32 %v1382, 0.17677669
        %v1390 = vsel %vm737, -1e+09, %v1384
        %v1391 = vsel %vm738, -1e+09, %v1385
        %v1392 = vsel %vm739, -1e+09, %v1386
        %v1393 = vsel %vm740, -1e+09, %v1387
        %v1394 = vsel %vm741, -1e+09, %v1388
        %v1395 = vsel %vm742, -1e+09, %v1389
        %v1396 = vsel %vm487, %v1390, -inf
        %v1397 = vsel %vm487, %v1391, -inf
        %v1398 = vsel %vm487, %v1392, -inf
        %v1399 = vsel %vm487, %v1393, -inf
        %v1400 = vsel %vm487, %v1394, -inf
        %v1401 = vsel %vm487, %v1395, -inf
        %v1402 = vsel %vm755, %v1396, -inf
        %1403 = vmax.xlane.f32.xlu0 %v1402
        %v1404 = vpop.xlane.xlu0 %1403
        %v1405 = vsel %vm755, %v1397, -inf
        %1406 = vmax.xlane.f32.xlu0 %v1405
        %v1407 = vpop.xlane.xlu0 %1406
        %v1408 = vsel %vm755, %v1398, -inf
        %1409 = vmax.xlane.f32.xlu0 %v1408
        %v1410 = vpop.xlane.xlu0 %1409
        %v1411 = vsel %vm755, %v1399, -inf
        %1412 = vmax.xlane.f32.xlu0 %v1411
        %v1413 = vpop.xlane.xlu0 %1412
        %v1414 = vsel %vm755, %v1400, -inf
        %1415 = vmax.xlane.f32.xlu0 %v1414
        %v1416 = vpop.xlane.xlu0 %1415
        %v1417 = vsel %vm755, %v1401, -inf
        %1418 = vmax.xlane.f32.xlu0 %v1417
        %v1419 = vpop.xlane.xlu0 %1418
        %v1420 = vsel %vm487, %v1404, 0.0
        %v1421 = vsel %vm487, %v1407, 0.0
        %v1422 = vsel %vm487, %v1410, 0.0
        %v1423 = vsel %vm487, %v1413, 0.0
        %v1424 = vsel %vm487, %v1416, 0.0
        %v1425 = vsel %vm487, %v1419, 0.0
        %v1426 = vadd.f32 %v1420, 0.0
        %v1427 = vadd.f32 %v1421, 0.0
        %v1428 = vadd.f32 %v1422, 0.0
        %v1429 = vadd.f32 %v1423, 0.0
        %v1430 = vadd.f32 %v1424, 0.0
        %v1431 = vadd.f32 %v1425, 0.0
        %v1432 = vsel %vm490, %v1390, -inf
        %v1433 = vsel %vm490, %v1391, -inf
        %v1434 = vsel %vm490, %v1392, -inf
        %v1435 = vsel %vm490, %v1393, -inf
        %v1436 = vsel %vm490, %v1394, -inf
        %v1437 = vsel %vm490, %v1395, -inf
        %v1438 = vsel %vm755, %v1432, -inf
        %1439 = vmax.xlane.f32.xlu0 %v1438
        %v1440 = vpop.xlane.xlu0 %1439
        %v1441 = vsel %vm755, %v1433, -inf
        %1442 = vmax.xlane.f32.xlu0 %v1441
        %v1443 = vpop.xlane.xlu0 %1442
        %v1444 = vsel %vm755, %v1434, -inf
        %1445 = vmax.xlane.f32.xlu0 %v1444
        %v1446 = vpop.xlane.xlu0 %1445
        %v1447 = vsel %vm755, %v1435, -inf
        %1448 = vmax.xlane.f32.xlu0 %v1447
        %v1449 = vpop.xlane.xlu0 %1448
        %v1450 = vsel %vm755, %v1436, -inf
        %1451 = vmax.xlane.f32.xlu0 %v1450
        %v1452 = vpop.xlane.xlu0 %1451
        %v1453 = vsel %vm755, %v1437, -inf
        %1454 = vmax.xlane.f32.xlu0 %v1453
        %v1455 = vpop.xlane.xlu0 %1454
        %v1456 = vsel %vm490, %v1440, 0.0
        %v1457 = vsel %vm490, %v1443, 0.0
        %v1458 = vsel %vm490, %v1446, 0.0
        %v1459 = vsel %vm490, %v1449, 0.0
        %v1460 = vsel %vm490, %v1452, 0.0
        %v1461 = vsel %vm490, %v1455, 0.0
        %v1462 = vadd.f32 %v1426, %v1456
        %v1463 = vadd.f32 %v1427, %v1457
        %v1464 = vadd.f32 %v1428, %v1458
        %v1465 = vadd.f32 %v1429, %v1459
        %v1466 = vadd.f32 %v1430, %v1460
        %v1467 = vadd.f32 %v1431, %v1461
        %v1468 = vsel %vm493, %v1390, -inf
        %v1469 = vsel %vm493, %v1391, -inf
        %v1470 = vsel %vm493, %v1392, -inf
        %v1471 = vsel %vm493, %v1393, -inf
        %v1472 = vsel %vm493, %v1394, -inf
        %v1473 = vsel %vm493, %v1395, -inf
        %v1474 = vsel %vm755, %v1468, -inf
        %1475 = vmax.xlane.f32.xlu0 %v1474
        %v1476 = vpop.xlane.xlu0 %1475
        %v1477 = vsel %vm755, %v1469, -inf
        %1478 = vmax.xlane.f32.xlu0 %v1477
        %v1479 = vpop.xlane.xlu0 %1478
        %v1480 = vsel %vm755, %v1470, -inf
        %1481 = vmax.xlane.f32.xlu0 %v1480
        %v1482 = vpop.xlane.xlu0 %1481
        %v1483 = vsel %vm755, %v1471, -inf
        %1484 = vmax.xlane.f32.xlu0 %v1483
        %v1485 = vpop.xlane.xlu0 %1484
        %v1486 = vsel %vm755, %v1472, -inf
        %1487 = vmax.xlane.f32.xlu0 %v1486
        %v1488 = vpop.xlane.xlu0 %1487
        %v1489 = vsel %vm755, %v1473, -inf
        %1490 = vmax.xlane.f32.xlu0 %v1489
        %v1491 = vpop.xlane.xlu0 %1490
        %v1492 = vsel %vm493, %v1476, 0.0
        %v1493 = vsel %vm493, %v1479, 0.0
        %v1494 = vsel %vm493, %v1482, 0.0
        %v1495 = vsel %vm493, %v1485, 0.0
        %v1496 = vsel %vm493, %v1488, 0.0
        %v1497 = vsel %vm493, %v1491, 0.0
        %v1498 = vadd.f32 %v1462, %v1492
        %v1499 = vadd.f32 %v1463, %v1493
        %v1500 = vadd.f32 %v1464, %v1494
        %v1501 = vadd.f32 %v1465, %v1495
        %v1502 = vadd.f32 %v1466, %v1496
        %v1503 = vadd.f32 %v1467, %v1497
        %v1504 = vsub.f32 %v1390, %v1498
        %v1505 = vsub.f32 %v1391, %v1499
        %v1506 = vsub.f32 %v1392, %v1500
        %v1507 = vsub.f32 %v1393, %v1501
        %v1508 = vsub.f32 %v1394, %v1502
        %v1509 = vsub.f32 %v1395, %v1503
        %v1510 = vmul.f32 %v1504, 1.442695
        %v1511 = vpow.pop %v1510
        %v1512 = vmul.f32 %v1505, 1.442695
        %v1513 = vpow.pop %v1512
        %v1514 = vmul.f32 %v1506, 1.442695
        %v1515 = vpow.pop %v1514
        %v1516 = vmul.f32 %v1507, 1.442695
        %v1517 = vpow.pop %v1516
        %v1518 = vmul.f32 %v1508, 1.442695
        %v1519 = vpow.pop %v1518
        %v1520 = vmul.f32 %v1509, 1.442695
        %v1521 = vpow.pop %v1520
        %v1522 = vsel %vm487, %v1511, 0.0
        %v1523 = vsel %vm487, %v1513, 0.0
        %v1524 = vsel %vm487, %v1515, 0.0
        %v1525 = vsel %vm487, %v1517, 0.0
        %v1526 = vsel %vm487, %v1519, 0.0
        %v1527 = vsel %vm487, %v1521, 0.0
        %v1528 = vsel %vm755, %v1522, 0.0
        %1529 = vadd.xlane.f32.xlu0 %v1528
        %v1530 = vpop.xlane.xlu0 %1529
        %v1531 = vsel %vm755, %v1523, 0.0
        %1532 = vadd.xlane.f32.xlu0 %v1531
        %v1533 = vpop.xlane.xlu0 %1532
        %v1534 = vsel %vm755, %v1524, 0.0
        %1535 = vadd.xlane.f32.xlu0 %v1534
        %v1536 = vpop.xlane.xlu0 %1535
        %v1537 = vsel %vm755, %v1525, 0.0
        %1538 = vadd.xlane.f32.xlu0 %v1537
        %v1539 = vpop.xlane.xlu0 %1538
        %v1540 = vsel %vm755, %v1526, 0.0
        %1541 = vadd.xlane.f32.xlu0 %v1540
        %v1542 = vpop.xlane.xlu0 %1541
        %v1543 = vsel %vm755, %v1527, 0.0
        %1544 = vadd.xlane.f32.xlu0 %v1543
        %v1545 = vpop.xlane.xlu0 %1544
        %v1546 = vsel %vm487, %v1530, 0.0
        %v1547 = vsel %vm487, %v1533, 0.0
        %v1548 = vsel %vm487, %v1536, 0.0
        %v1549 = vsel %vm487, %v1539, 0.0
        %v1550 = vsel %vm487, %v1542, 0.0
        %v1551 = vsel %vm487, %v1545, 0.0
        %v1552 = vadd.f32 %v1546, 0.0
        %v1553 = vadd.f32 %v1547, 0.0
        %v1554 = vadd.f32 %v1548, 0.0
        %v1555 = vadd.f32 %v1549, 0.0
        %v1556 = vadd.f32 %v1550, 0.0
        %v1557 = vadd.f32 %v1551, 0.0
        %v1558 = vsel %vm490, %v1511, 0.0
        %v1559 = vsel %vm490, %v1513, 0.0
        %v1560 = vsel %vm490, %v1515, 0.0
        %v1561 = vsel %vm490, %v1517, 0.0
        %v1562 = vsel %vm490, %v1519, 0.0
        %v1563 = vsel %vm490, %v1521, 0.0
        %v1564 = vsel %vm755, %v1558, 0.0
        %1565 = vadd.xlane.f32.xlu0 %v1564
        %v1566 = vpop.xlane.xlu0 %1565
        %v1567 = vsel %vm755, %v1559, 0.0
        %1568 = vadd.xlane.f32.xlu0 %v1567
        %v1569 = vpop.xlane.xlu0 %1568
        %v1570 = vsel %vm755, %v1560, 0.0
        %1571 = vadd.xlane.f32.xlu0 %v1570
        %v1572 = vpop.xlane.xlu0 %1571
        %v1573 = vsel %vm755, %v1561, 0.0
        %1574 = vadd.xlane.f32.xlu0 %v1573
        %v1575 = vpop.xlane.xlu0 %1574
        %v1576 = vsel %vm755, %v1562, 0.0
        %1577 = vadd.xlane.f32.xlu0 %v1576
        %v1578 = vpop.xlane.xlu0 %1577
        %v1579 = vsel %vm755, %v1563, 0.0
        %1580 = vadd.xlane.f32.xlu0 %v1579
        %v1581 = vpop.xlane.xlu0 %1580
        %v1582 = vsel %vm490, %v1566, 0.0
        %v1583 = vsel %vm490, %v1569, 0.0
        %v1584 = vsel %vm490, %v1572, 0.0
        %v1585 = vsel %vm490, %v1575, 0.0
        %v1586 = vsel %vm490, %v1578, 0.0
        %v1587 = vsel %vm490, %v1581, 0.0
        %v1588 = vadd.f32 %v1552, %v1582
        %v1589 = vadd.f32 %v1553, %v1583
        %v1590 = vadd.f32 %v1554, %v1584
        %v1591 = vadd.f32 %v1555, %v1585
        %v1592 = vadd.f32 %v1556, %v1586
        %v1593 = vadd.f32 %v1557, %v1587
        %v1594 = vsel %vm493, %v1511, 0.0
        %v1595 = vsel %vm493, %v1513, 0.0
        %v1596 = vsel %vm493, %v1515, 0.0
        %v1597 = vsel %vm493, %v1517, 0.0
        %v1598 = vsel %vm493, %v1519, 0.0
        %v1599 = vsel %vm493, %v1521, 0.0
        %v1600 = vsel %vm755, %v1594, 0.0
        %1601 = vadd.xlane.f32.xlu0 %v1600
        %v1602 = vpop.xlane.xlu0 %1601
        %v1603 = vsel %vm755, %v1595, 0.0
        %1604 = vadd.xlane.f32.xlu0 %v1603
        %v1605 = vpop.xlane.xlu0 %1604
        %v1606 = vsel %vm755, %v1596, 0.0
        %1607 = vadd.xlane.f32.xlu0 %v1606
        %v1608 = vpop.xlane.xlu0 %1607
        %v1609 = vsel %vm755, %v1597, 0.0
        %1610 = vadd.xlane.f32.xlu0 %v1609
        %v1611 = vpop.xlane.xlu0 %1610
        %v1612 = vsel %vm755, %v1598, 0.0
        %1613 = vadd.xlane.f32.xlu0 %v1612
        %v1614 = vpop.xlane.xlu0 %1613
        %v1615 = vsel %vm755, %v1599, 0.0
        %1616 = vadd.xlane.f32.xlu0 %v1615
        %v1617 = vpop.xlane.xlu0 %1616
        %v1618 = vsel %vm493, %v1602, 0.0
        %v1619 = vsel %vm493, %v1605, 0.0
        %v1620 = vsel %vm493, %v1608, 0.0
        %v1621 = vsel %vm493, %v1611, 0.0
        %v1622 = vsel %vm493, %v1614, 0.0
        %v1623 = vsel %vm493, %v1617, 0.0
        %v1624 = vadd.f32 %v1588, %v1618
        %v1625 = vadd.f32 %v1589, %v1619
        %v1626 = vadd.f32 %v1590, %v1620
        %v1627 = vadd.f32 %v1591, %v1621
        %v1628 = vadd.f32 %v1592, %v1622
        %v1629 = vadd.f32 %v1593, %v1623
        %v1630 = vrcp.pop %v1624
        %v1631 = vmul.f32 %v1624, %v1630
        %v1632 = vsub.f32 1.0, %v1631
        %v1633 = vmul.f32 %v1630, %v1632
        %v1634 = vadd.f32 %v1630, %v1633
        %vm1635 = vweird.f32 %v1624
        %vm1636 = vweird.f32 %v1630
        %vm1637 = vmor %vm1635, %vm1636
        %v1638 = vsel %vm1637, %v1630, %v1634
        %v1639 = vand.u32 2147483647, %v1624
        %vm1640 = vcmp.eq.f32.partialorder %v1639, 8.507059e+37
        %v1641 = vand.u32 %v1624, 2147483648
        %v1642 = vor.u32 1.1754944e-38, %v1641
        %v1643 = vsel %vm1640, %v1642, %v1638
        %v1644 = vmul.f32 %v1511, %v1643
        %v1645 = vrcp.pop %v1625
        %v1646 = vmul.f32 %v1625, %v1645
        %v1647 = vsub.f32 1.0, %v1646
        %v1648 = vmul.f32 %v1645, %v1647
        %v1649 = vadd.f32 %v1645, %v1648
        %vm1650 = vweird.f32 %v1625
        %vm1651 = vweird.f32 %v1645
        %vm1652 = vmor %vm1650, %vm1651
        %v1653 = vsel %vm1652, %v1645, %v1649
        %v1654 = vand.u32 2147483647, %v1625
        %vm1655 = vcmp.eq.f32.partialorder %v1654, 8.507059e+37
        %v1656 = vand.u32 %v1625, 2147483648
        %v1657 = vor.u32 1.1754944e-38, %v1656
        %v1658 = vsel %vm1655, %v1657, %v1653
        %v1659 = vmul.f32 %v1513, %v1658
        %v1660 = vrcp.pop %v1626
        %v1661 = vmul.f32 %v1626, %v1660
        %v1662 = vsub.f32 1.0, %v1661
        %v1663 = vmul.f32 %v1660, %v1662
        %v1664 = vadd.f32 %v1660, %v1663
        %vm1665 = vweird.f32 %v1626
        %vm1666 = vweird.f32 %v1660
        %vm1667 = vmor %vm1665, %vm1666
        %v1668 = vsel %vm1667, %v1660, %v1664
        %v1669 = vand.u32 2147483647, %v1626
        %vm1670 = vcmp.eq.f32.partialorder %v1669, 8.507059e+37
        %v1671 = vand.u32 %v1626, 2147483648
        %v1672 = vor.u32 1.1754944e-38, %v1671
        %v1673 = vsel %vm1670, %v1672, %v1668
        %v1674 = vmul.f32 %v1515, %v1673
        %v1675 = vrcp.pop %v1627
        %v1676 = vmul.f32 %v1627, %v1675
        %v1677 = vsub.f32 1.0, %v1676
        %v1678 = vmul.f32 %v1675, %v1677
        %v1679 = vadd.f32 %v1675, %v1678
        %vm1680 = vweird.f32 %v1627
        %vm1681 = vweird.f32 %v1675
        %vm1682 = vmor %vm1680, %vm1681
        %v1683 = vsel %vm1682, %v1675, %v1679
        %v1684 = vand.u32 2147483647, %v1627
        %vm1685 = vcmp.eq.f32.partialorder %v1684, 8.507059e+37
        %v1686 = vand.u32 %v1627, 2147483648
        %v1687 = vor.u32 1.1754944e-38, %v1686
        %v1688 = vsel %vm1685, %v1687, %v1683
        %v1689 = vmul.f32 %v1517, %v1688
        %v1690 = vrcp.pop %v1628
        %v1691 = vmul.f32 %v1628, %v1690
        %v1692 = vsub.f32 1.0, %v1691
        %v1693 = vmul.f32 %v1690, %v1692
        %v1694 = vadd.f32 %v1690, %v1693
        %vm1695 = vweird.f32 %v1628
        %vm1696 = vweird.f32 %v1690
        %vm1697 = vmor %vm1695, %vm1696
        %v1698 = vsel %vm1697, %v1690, %v1694
        %v1699 = vand.u32 2147483647, %v1628
        %vm1700 = vcmp.eq.f32.partialorder %v1699, 8.507059e+37
        %v1701 = vand.u32 %v1628, 2147483648
        %v1702 = vor.u32 1.1754944e-38, %v1701
        %v1703 = vsel %vm1700, %v1702, %v1698
        %v1704 = vmul.f32 %v1519, %v1703
        %v1705 = vrcp.pop %v1629
        %v1706 = vmul.f32 %v1629, %v1705
        %v1707 = vsub.f32 1.0, %v1706
        %v1708 = vmul.f32 %v1705, %v1707
        %v1709 = vadd.f32 %v1705, %v1708
        %vm1710 = vweird.f32 %v1629
        %vm1711 = vweird.f32 %v1705
        %vm1712 = vmor %vm1710, %vm1711
        %v1713 = vsel %vm1712, %v1705, %v1709
        %v1714 = vand.u32 2147483647, %v1629
        %vm1715 = vcmp.eq.f32.partialorder %v1714, 8.507059e+37
        %v1716 = vand.u32 %v1629, 2147483648
        %v1717 = vor.u32 1.1754944e-38, %v1716
        %v1718 = vsel %vm1715, %v1717, %v1713
        %v1719 = vmul.f32 %v1521, %v1718
        %v1720 = vmul.f32 %v1644, %v1075
        %v1721 = vmul.f32 %v1659, %v1075
        %v1722 = vmul.f32 %v1674, %v1075
        %v1723 = vmul.f32 %v1689, %v1075
        %v1724 = vmul.f32 %v1704, %v1075
        %v1725 = vmul.f32 %v1719, %v1075
        %s1726 = scalar_lea.vmem %s416, 48 [#allocation4]
        %1727 = vst.msk [vmem:[%s1726] sm:$0xff] %vm755, %v1720
        %1728 = vst.msk [vmem:[%s1726 + $0x8] sm:$0xff] %vm755, %v1721
        %1729 = vst.msk [vmem:[%s1726 + $0x10] sm:$0xff] %vm755, %v1722
        %1730 = vst.msk [vmem:[%s1726 + $0x18] sm:$0xff] %vm755, %v1723
        %1731 = vst.msk [vmem:[%s1726 + $0x20] sm:$0xff] %vm755, %v1724
        %1732 = vst.msk [vmem:[%s1726 + $0x28] sm:$0xff] %vm755, %v1725
        %v1734 = vsel %vm755, %v1720, 0
        %v1737 = vsel %vm755, %v1721, 0
        %v1740 = vsel %vm755, %v1722, 0
        %v1743 = vsel %vm755, %v1723, 0
        %v1746 = vsel %vm755, %v1724, 0
        %v1749 = vsel %vm755, %v1725, 0
        %1751 = vmatpush.msra.mxu0 0.0
        %1752 = vmatpush.msra.mxu0 0.0
        %1753 = vmatpush.msra.mxu0 0.0
        %1754 = vmatpush.msra.mxu0 0.0
        %1755 = vmatpush.msra.mxu0 0.0
        %1756 = vmatpush.msra.mxu0 0.0
        %1757 = vmatpush.msra.mxu0 0.0
        %1758 = vmatpush.msra.mxu0 0.0
        %1759 = vmatpush.msra.mxu0 0.0
        %1760 = vmatpush.msra.mxu0 0.0
        %1761 = vmatpush.msra.mxu0 %v1311
        %1762 = vmatpush.msra.mxu0 %v1308
        %1763 = vmatpush.msra.mxu0 %v1305
        %1764 = vmatpush.msra.mxu0 %v1302
        %1765 = vmatpush.msra.mxu0 %v1299
        %1766 = vmatpush.msra.mxu0 %v1296
        %1767 = vmatmul.f32.gmra.mxu0 %v1734
        %v1768 = vpop.f32.mrf.mxu0
        %v1769 = vadd.f32 0.0, %v1768
        %1770 = vmatmul.f32.gmra.mxu0 %v1737
        %v1771 = vpop.f32.mrf.mxu0
        %v1772 = vadd.f32 0.0, %v1771
        %1773 = vmatmul.f32.gmra.mxu0 %v1740
        %v1774 = vpop.f32.mrf.mxu0
        %v1775 = vadd.f32 0.0, %v1774
        %1776 = vmatmul.f32.gmra.mxu0 %v1743
        %v1777 = vpop.f32.mrf.mxu0
        %v1778 = vadd.f32 0.0, %v1777
        %1779 = vmatmul.f32.gmra.mxu0 %v1746
        %v1780 = vpop.f32.mrf.mxu0
        %v1781 = vadd.f32 0.0, %v1780
        %1782 = vmatmul.f32.gmra.mxu0 %v1749
        %v1783 = vpop.f32.mrf.mxu0
        %v1784 = vadd.f32 0.0, %v1783
        %1785 = vdwg.mxu0
        %s1786 = scalar_lea.vmem %s1, 256
        %v1787 = vld [vmem:[%s1786] sm:$0xff]
        %v1788 = vld [vmem:[%s1786 + $0x8] sm:$0xff]
        %v1789 = vld [vmem:[%s1786 + $0x10] sm:$0xff]
        %v1790 = vld [vmem:[%s1786 + $0x18] sm:$0xff]
        %v1791 = vld [vmem:[%s1786 + $0x20] sm:$0xff]
        %v1792 = vld [vmem:[%s1786 + $0x28] sm:$0xff]
        %v1793 = vld [vmem:[%s1786 + $0x30] sm:$0xff]
        %v1794 = vld [vmem:[%s1786 + $0x38] sm:$0xff]
        %v1795 = vld [vmem:[%s1786 + $0x40] sm:$0xff]
        %v1796 = vld [vmem:[%s1786 + $0x48] sm:$0xff]
        %v1797 = vld [vmem:[%s1786 + $0x50] sm:$0xff]
        %v1798 = vld [vmem:[%s1786 + $0x58] sm:$0xff]
        %v1799 = vld [vmem:[%s1786 + $0x60] sm:$0xff]
        %v1800 = vld [vmem:[%s1786 + $0x68] sm:$0xff]
        %v1801 = vld [vmem:[%s1786 + $0x70] sm:$0xff]
        %v1802 = vld [vmem:[%s1786 + $0x78] sm:$0xff]
        %s1803 = scalar_lea.vmem %s4, 2
        %v1804 = vld [vmem:[%s1803] sm:$0x1]
        %v1806 = vperm.slane %v1804, 0
        %1808 = vmatpush.msra.mxu0 %v1802
        %1809 = vmatpush.msra.mxu0 %v1801
        %1810 = vmatpush.msra.mxu0 %v1800
        %1811 = vmatpush.msra.mxu0 %v1799
        %1812 = vmatpush.msra.mxu0 %v1798
        %1813 = vmatpush.msra.mxu0 %v1797
        %1814 = vmatpush.msra.mxu0 %v1796
        %1815 = vmatpush.msra.mxu0 %v1795
        %1816 = vmatpush.msra.mxu0 %v1794
        %1817 = vmatpush.msra.mxu0 %v1793
        %1818 = vmatpush.msra.mxu0 %v1792
        %1819 = vmatpush.msra.mxu0 %v1791
        %1820 = vmatpush.msra.mxu0 %v1790
        %1821 = vmatpush.msra.mxu0 %v1789
        %1822 = vmatpush.msra.mxu0 %v1788
        %1823 = vmatpush.msra.mxu0 %v1787
        %1824 = vmatmul.f32.gmra.mxu0 %v430
        %v1825 = vpop.f32.mrf.mxu0
        %v1826 = vadd.f32 %v1806, %v1825
        %1827 = vmatmul.f32.gmra.mxu0 %v431
        %v1828 = vpop.f32.mrf.mxu0
        %v1829 = vadd.f32 %v1806, %v1828
        %1830 = vmatmul.f32.gmra.mxu0 %v432
        %v1831 = vpop.f32.mrf.mxu0
        %v1832 = vadd.f32 %v1806, %v1831
        %1833 = vmatmul.f32.gmra.mxu0 %v433
        %v1834 = vpop.f32.mrf.mxu0
        %v1835 = vadd.f32 %v1806, %v1834
        %1836 = vmatmul.f32.gmra.mxu0 %v434
        %v1837 = vpop.f32.mrf.mxu0
        %v1838 = vadd.f32 %v1806, %v1837
        %1839 = vmatmul.f32.gmra.mxu0 %v435
        %v1840 = vpop.f32.mrf.mxu0
        %v1841 = vadd.f32 %v1806, %v1840
        %1842 = vdwg.mxu0
        %s1843 = scalar_lea.vmem %s2, 256
        %v1844 = vld [vmem:[%s1843] sm:$0xff]
        %v1845 = vld [vmem:[%s1843 + $0x8] sm:$0xff]
        %v1846 = vld [vmem:[%s1843 + $0x10] sm:$0xff]
        %v1847 = vld [vmem:[%s1843 + $0x18] sm:$0xff]
        %v1848 = vld [vmem:[%s1843 + $0x20] sm:$0xff]
        %v1849 = vld [vmem:[%s1843 + $0x28] sm:$0xff]
        %v1850 = vld [vmem:[%s1843 + $0x30] sm:$0xff]
        %v1851 = vld [vmem:[%s1843 + $0x38] sm:$0xff]
        %v1852 = vld [vmem:[%s1843 + $0x40] sm:$0xff]
        %v1853 = vld [vmem:[%s1843 + $0x48] sm:$0xff]
        %v1854 = vld [vmem:[%s1843 + $0x50] sm:$0xff]
        %v1855 = vld [vmem:[%s1843 + $0x58] sm:$0xff]
        %v1856 = vld [vmem:[%s1843 + $0x60] sm:$0xff]
        %v1857 = vld [vmem:[%s1843 + $0x68] sm:$0xff]
        %v1858 = vld [vmem:[%s1843 + $0x70] sm:$0xff]
        %v1859 = vld [vmem:[%s1843 + $0x78] sm:$0xff]
        %s1860 = scalar_lea.vmem %s5, 2
        %v1861 = vld [vmem:[%s1860] sm:$0x1]
        %v1863 = vperm.slane %v1861, 0
        %1865 = vmatpush.msra.mxu0 %v1859
        %1866 = vmatpush.msra.mxu0 %v1858
        %1867 = vmatpush.msra.mxu0 %v1857
        %1868 = vmatpush.msra.mxu0 %v1856
        %1869 = vmatpush.msra.mxu0 %v1855
        %1870 = vmatpush.msra.mxu0 %v1854
        %1871 = vmatpush.msra.mxu0 %v1853
        %1872 = vmatpush.msra.mxu0 %v1852
        %1873 = vmatpush.msra.mxu0 %v1851
        %1874 = vmatpush.msra.mxu0 %v1850
        %1875 = vmatpush.msra.mxu0 %v1849
        %1876 = vmatpush.msra.mxu0 %v1848
        %1877 = vmatpush.msra.mxu0 %v1847
        %1878 = vmatpush.msra.mxu0 %v1846
        %1879 = vmatpush.msra.mxu0 %v1845
        %1880 = vmatpush.msra.mxu0 %v1844
        %1881 = vmatmul.f32.gmra.mxu0 %v430
        %v1882 = vpop.f32.mrf.mxu0
        %v1883 = vadd.f32 %v1863, %v1882
        %1884 = vmatmul.f32.gmra.mxu0 %v431
        %v1885 = vpop.f32.mrf.mxu0
        %v1886 = vadd.f32 %v1863, %v1885
        %1887 = vmatmul.f32.gmra.mxu0 %v432
        %v1888 = vpop.f32.mrf.mxu0
        %v1889 = vadd.f32 %v1863, %v1888
        %1890 = vmatmul.f32.gmra.mxu0 %v433
        %v1891 = vpop.f32.mrf.mxu0
        %v1892 = vadd.f32 %v1863, %v1891
        %1893 = vmatmul.f32.gmra.mxu0 %v434
        %v1894 = vpop.f32.mrf.mxu0
        %v1895 = vadd.f32 %v1863, %v1894
        %1896 = vmatmul.f32.gmra.mxu0 %v435
        %v1897 = vpop.f32.mrf.mxu0
        %v1898 = vadd.f32 %v1863, %v1897
        %1899 = vdwg.mxu0
        %s1900 = scalar_lea.vmem %s3, 256
        %v1901 = vld [vmem:[%s1900] sm:$0xff]
        %v1902 = vld [vmem:[%s1900 + $0x8] sm:$0xff]
        %v1903 = vld [vmem:[%s1900 + $0x10] sm:$0xff]
        %v1904 = vld [vmem:[%s1900 + $0x18] sm:$0xff]
        %v1905 = vld [vmem:[%s1900 + $0x20] sm:$0xff]
        %v1906 = vld [vmem:[%s1900 + $0x28] sm:$0xff]
        %v1907 = vld [vmem:[%s1900 + $0x30] sm:$0xff]
        %v1908 = vld [vmem:[%s1900 + $0x38] sm:$0xff]
        %v1909 = vld [vmem:[%s1900 + $0x40] sm:$0xff]
        %v1910 = vld [vmem:[%s1900 + $0x48] sm:$0xff]
        %v1911 = vld [vmem:[%s1900 + $0x50] sm:$0xff]
        %v1912 = vld [vmem:[%s1900 + $0x58] sm:$0xff]
        %v1913 = vld [vmem:[%s1900 + $0x60] sm:$0xff]
        %v1914 = vld [vmem:[%s1900 + $0x68] sm:$0xff]
        %v1915 = vld [vmem:[%s1900 + $0x70] sm:$0xff]
        %v1916 = vld [vmem:[%s1900 + $0x78] sm:$0xff]
        %s1917 = scalar_lea.vmem %s6, 2
        %v1918 = vld [vmem:[%s1917] sm:$0x1]
        %v1920 = vperm.slane %v1918, 0
        %1922 = vmatpush.msra.mxu0 %v1916
        %1923 = vmatpush.msra.mxu0 %v1915
        %1924 = vmatpush.msra.mxu0 %v1914
        %1925 = vmatpush.msra.mxu0 %v1913
        %1926 = vmatpush.msra.mxu0 %v1912
        %1927 = vmatpush.msra.mxu0 %v1911
        %1928 = vmatpush.msra.mxu0 %v1910
        %1929 = vmatpush.msra.mxu0 %v1909
        %1930 = vmatpush.msra.mxu0 %v1908
        %1931 = vmatpush.msra.mxu0 %v1907
        %1932 = vmatpush.msra.mxu0 %v1906
        %1933 = vmatpush.msra.mxu0 %v1905
        %1934 = vmatpush.msra.mxu0 %v1904
        %1935 = vmatpush.msra.mxu0 %v1903
        %1936 = vmatpush.msra.mxu0 %v1902
        %1937 = vmatpush.msra.mxu0 %v1901
        %1938 = vmatmul.f32.gmra.mxu0 %v430
        %v1939 = vpop.f32.mrf.mxu0
        %v1940 = vadd.f32 %v1920, %v1939
        %1941 = vmatmul.f32.gmra.mxu0 %v431
        %v1942 = vpop.f32.mrf.mxu0
        %v1943 = vadd.f32 %v1920, %v1942
        %1944 = vmatmul.f32.gmra.mxu0 %v432
        %v1945 = vpop.f32.mrf.mxu0
        %v1946 = vadd.f32 %v1920, %v1945
        %1947 = vmatmul.f32.gmra.mxu0 %v433
        %v1948 = vpop.f32.mrf.mxu0
        %v1949 = vadd.f32 %v1920, %v1948
        %1950 = vmatmul.f32.gmra.mxu0 %v434
        %v1951 = vpop.f32.mrf.mxu0
        %v1952 = vadd.f32 %v1920, %v1951
        %1953 = vmatmul.f32.gmra.mxu0 %v435
        %v1954 = vpop.f32.mrf.mxu0
        %v1955 = vadd.f32 %v1920, %v1954
        %1956 = vdwg.mxu0
        %v1958 = vsel %vm659, %v1826, 0
        %v1961 = vsel %vm659, %v1829, 0
        %v1964 = vsel %vm659, %v1832, 0
        %v1967 = vsel %vm659, %v1835, 0
        %v1970 = vsel %vm659, %v1838, 0
        %v1973 = vsel %vm659, %v1841, 0
        %v1976 = vsel %vm659, %v1883, 0
        %v1979 = vsel %vm659, %v1886, 0
        %v1982 = vsel %vm659, %v1889, 0
        %v1985 = vsel %vm659, %v1892, 0
        %v1988 = vsel %vm659, %v1895, 0
        %v1991 = vsel %vm659, %v1898, 0
        %1993 = vmatpush.xpose.msra.mxu0 0.0
        %1994 = vmatpush.xpose.msra.mxu0 0.0
        %1995 = vmatpush.xpose.msra.mxu0 0.0
        %1996 = vmatpush.xpose.msra.mxu0 0.0
        %1997 = vmatpush.xpose.msra.mxu0 0.0
        %1998 = vmatpush.xpose.msra.mxu0 0.0
        %1999 = vmatpush.xpose.msra.mxu0 0.0
        %2000 = vmatpush.xpose.msra.mxu0 0.0
        %2001 = vmatpush.xpose.msra.mxu0 0.0
        %2002 = vmatpush.xpose.msra.mxu0 0.0
        %2003 = vmatpush.xpose.msra.mxu0 %v1991
        %2004 = vmatpush.xpose.msra.mxu0 %v1988
        %2005 = vmatpush.xpose.msra.mxu0 %v1985
        %2006 = vmatpush.xpose.msra.mxu0 %v1982
        %2007 = vmatpush.xpose.msra.mxu0 %v1979
        %2008 = vmatpush.xpose.msra.mxu0 %v1976
        %2009 = vmatmul.f32.gmra.mxu0 %v1958
        %v2010 = vpop.f32.mrf.mxu0
        %v2011 = vadd.f32 0.0, %v2010
        %2012 = vmatmul.f32.gmra.mxu0 %v1961
        %v2013 = vpop.f32.mrf.mxu0
        %v2014 = vadd.f32 0.0, %v2013
        %2015 = vmatmul.f32.gmra.mxu0 %v1964
        %v2016 = vpop.f32.mrf.mxu0
        %v2017 = vadd.f32 0.0, %v2016
        %2018 = vmatmul.f32.gmra.mxu0 %v1967
        %v2019 = vpop.f32.mrf.mxu0
        %v2020 = vadd.f32 0.0, %v2019
        %2021 = vmatmul.f32.gmra.mxu0 %v1970
        %v2022 = vpop.f32.mrf.mxu0
        %v2023 = vadd.f32 0.0, %v2022
        %2024 = vmatmul.f32.gmra.mxu0 %v1973
        %v2025 = vpop.f32.mrf.mxu0
        %v2026 = vadd.f32 0.0, %v2025
        %2027 = vdwg.mxu0
        %v2028 = vmul.f32 %v2011, 0.17677669
        %v2029 = vmul.f32 %v2014, 0.17677669
        %v2030 = vmul.f32 %v2017, 0.17677669
        %v2031 = vmul.f32 %v2020, 0.17677669
        %v2032 = vmul.f32 %v2023, 0.17677669
        %v2033 = vmul.f32 %v2026, 0.17677669
        %v2034 = vsel %vm737, -1e+09, %v2028
        %v2035 = vsel %vm738, -1e+09, %v2029
        %v2036 = vsel %vm739, -1e+09, %v2030
        %v2037 = vsel %vm740, -1e+09, %v2031
        %v2038 = vsel %vm741, -1e+09, %v2032
        %v2039 = vsel %vm742, -1e+09, %v2033
        %v2040 = vsel %vm487, %v2034, -inf
        %v2041 = vsel %vm487, %v2035, -inf
        %v2042 = vsel %vm487, %v2036, -inf
        %v2043 = vsel %vm487, %v2037, -inf
        %v2044 = vsel %vm487, %v2038, -inf
        %v2045 = vsel %vm487, %v2039, -inf
        %v2046 = vsel %vm755, %v2040, -inf
        %2047 = vmax.xlane.f32.xlu0 %v2046
        %v2048 = vpop.xlane.xlu0 %2047
        %v2049 = vsel %vm755, %v2041, -inf
        %2050 = vmax.xlane.f32.xlu0 %v2049
        %v2051 = vpop.xlane.xlu0 %2050
        %v2052 = vsel %vm755, %v2042, -inf
        %2053 = vmax.xlane.f32.xlu0 %v2052
        %v2054 = vpop.xlane.xlu0 %2053
        %v2055 = vsel %vm755, %v2043, -inf
        %2056 = vmax.xlane.f32.xlu0 %v2055
        %v2057 = vpop.xlane.xlu0 %2056
        %v2058 = vsel %vm755, %v2044, -inf
        %2059 = vmax.xlane.f32.xlu0 %v2058
        %v2060 = vpop.xlane.xlu0 %2059
        %v2061 = vsel %vm755, %v2045, -inf
        %2062 = vmax.xlane.f32.xlu0 %v2061
        %v2063 = vpop.xlane.xlu0 %2062
        %v2064 = vsel %vm487, %v2048, 0.0
        %v2065 = vsel %vm487, %v2051, 0.0
        %v2066 = vsel %vm487, %v2054, 0.0
        %v2067 = vsel %vm487, %v2057, 0.0
        %v2068 = vsel %vm487, %v2060, 0.0
        %v2069 = vsel %vm487, %v2063, 0.0
        %v2070 = vadd.f32 %v2064, 0.0
        %v2071 = vadd.f32 %v2065, 0.0
        %v2072 = vadd.f32 %v2066, 0.0
        %v2073 = vadd.f32 %v2067, 0.0
        %v2074 = vadd.f32 %v2068, 0.0
        %v2075 = vadd.f32 %v2069, 0.0
        %v2076 = vsel %vm490, %v2034, -inf
        %v2077 = vsel %vm490, %v2035, -inf
        %v2078 = vsel %vm490, %v2036, -inf
        %v2079 = vsel %vm490, %v2037, -inf
        %v2080 = vsel %vm490, %v2038, -inf
        %v2081 = vsel %vm490, %v2039, -inf
        %v2082 = vsel %vm755, %v2076, -inf
        %2083 = vmax.xlane.f32.xlu0 %v2082
        %v2084 = vpop.xlane.xlu0 %2083
        %v2085 = vsel %vm755, %v2077, -inf
        %2086 = vmax.xlane.f32.xlu0 %v2085
        %v2087 = vpop.xlane.xlu0 %2086
        %v2088 = vsel %vm755, %v2078, -inf
        %2089 = vmax.xlane.f32.xlu0 %v2088
        %v2090 = vpop.xlane.xlu0 %2089
        %v2091 = vsel %vm755, %v2079, -inf
        %2092 = vmax.xlane.f32.xlu0 %v2091
        %v2093 = vpop.xlane.xlu0 %2092
        %v2094 = vsel %vm755, %v2080, -inf
        %2095 = vmax.xlane.f32.xlu0 %v2094
        %v2096 = vpop.xlane.xlu0 %2095
        %v2097 = vsel %vm755, %v2081, -inf
        %2098 = vmax.xlane.f32.xlu0 %v2097
        %v2099 = vpop.xlane.xlu0 %2098
        %v2100 = vsel %vm490, %v2084, 0.0
        %v2101 = vsel %vm490, %v2087, 0.0
        %v2102 = vsel %vm490, %v2090, 0.0
        %v2103 = vsel %vm490, %v2093, 0.0
        %v2104 = vsel %vm490, %v2096, 0.0
        %v2105 = vsel %vm490, %v2099, 0.0
        %v2106 = vadd.f32 %v2070, %v2100
        %v2107 = vadd.f32 %v2071, %v2101
        %v2108 = vadd.f32 %v2072, %v2102
        %v2109 = vadd.f32 %v2073, %v2103
        %v2110 = vadd.f32 %v2074, %v2104
        %v2111 = vadd.f32 %v2075, %v2105
        %v2112 = vsel %vm493, %v2034, -inf
        %v2113 = vsel %vm493, %v2035, -inf
        %v2114 = vsel %vm493, %v2036, -inf
        %v2115 = vsel %vm493, %v2037, -inf
        %v2116 = vsel %vm493, %v2038, -inf
        %v2117 = vsel %vm493, %v2039, -inf
        %v2118 = vsel %vm755, %v2112, -inf
        %2119 = vmax.xlane.f32.xlu0 %v2118
        %v2120 = vpop.xlane.xlu0 %2119
        %v2121 = vsel %vm755, %v2113, -inf
        %2122 = vmax.xlane.f32.xlu0 %v2121
        %v2123 = vpop.xlane.xlu0 %2122
        %v2124 = vsel %vm755, %v2114, -inf
        %2125 = vmax.xlane.f32.xlu0 %v2124
        %v2126 = vpop.xlane.xlu0 %2125
        %v2127 = vsel %vm755, %v2115, -inf
        %2128 = vmax.xlane.f32.xlu0 %v2127
        %v2129 = vpop.xlane.xlu0 %2128
        %v2130 = vsel %vm755, %v2116, -inf
        %2131 = vmax.xlane.f32.xlu0 %v2130
        %v2132 = vpop.xlane.xlu0 %2131
        %v2133 = vsel %vm755, %v2117, -inf
        %2134 = vmax.xlane.f32.xlu0 %v2133
        %v2135 = vpop.xlane.xlu0 %2134
        %v2136 = vsel %vm493, %v2120, 0.0
        %v2137 = vsel %vm493, %v2123, 0.0
        %v2138 = vsel %vm493, %v2126, 0.0
        %v2139 = vsel %vm493, %v2129, 0.0
        %v2140 = vsel %vm493, %v2132, 0.0
        %v2141 = vsel %vm493, %v2135, 0.0
        %v2142 = vadd.f32 %v2106, %v2136
        %v2143 = vadd.f32 %v2107, %v2137
        %v2144 = vadd.f32 %v2108, %v2138
        %v2145 = vadd.f32 %v2109, %v2139
        %v2146 = vadd.f32 %v2110, %v2140
        %v2147 = vadd.f32 %v2111, %v2141
        %v2148 = vsub.f32 %v2034, %v2142
        %v2149 = vsub.f32 %v2035, %v2143
        %v2150 = vsub.f32 %v2036, %v2144
        %v2151 = vsub.f32 %v2037, %v2145
        %v2152 = vsub.f32 %v2038, %v2146
        %v2153 = vsub.f32 %v2039, %v2147
        %v2154 = vmul.f32 %v2148, 1.442695
        %v2155 = vpow.pop %v2154
        %v2156 = vmul.f32 %v2149, 1.442695
        %v2157 = vpow.pop %v2156
        %v2158 = vmul.f32 %v2150, 1.442695
        %v2159 = vpow.pop %v2158
        %v2160 = vmul.f32 %v2151, 1.442695
        %v2161 = vpow.pop %v2160
        %v2162 = vmul.f32 %v2152, 1.442695
        %v2163 = vpow.pop %v2162
        %v2164 = vmul.f32 %v2153, 1.442695
        %v2165 = vpow.pop %v2164
        %v2166 = vsel %vm487, %v2155, 0.0
        %v2167 = vsel %vm487, %v2157, 0.0
        %v2168 = vsel %vm487, %v2159, 0.0
        %v2169 = vsel %vm487, %v2161, 0.0
        %v2170 = vsel %vm487, %v2163, 0.0
        %v2171 = vsel %vm487, %v2165, 0.0
        %v2172 = vsel %vm755, %v2166, 0.0
        %2173 = vadd.xlane.f32.xlu0 %v2172
        %v2174 = vpop.xlane.xlu0 %2173
        %v2175 = vsel %vm755, %v2167, 0.0
        %2176 = vadd.xlane.f32.xlu0 %v2175
        %v2177 = vpop.xlane.xlu0 %2176
        %v2178 = vsel %vm755, %v2168, 0.0
        %2179 = vadd.xlane.f32.xlu0 %v2178
        %v2180 = vpop.xlane.xlu0 %2179
        %v2181 = vsel %vm755, %v2169, 0.0
        %2182 = vadd.xlane.f32.xlu0 %v2181
        %v2183 = vpop.xlane.xlu0 %2182
        %v2184 = vsel %vm755, %v2170, 0.0
        %2185 = vadd.xlane.f32.xlu0 %v2184
        %v2186 = vpop.xlane.xlu0 %2185
        %v2187 = vsel %vm755, %v2171, 0.0
        %2188 = vadd.xlane.f32.xlu0 %v2187
        %v2189 = vpop.xlane.xlu0 %2188
        %v2190 = vsel %vm487, %v2174, 0.0
        %v2191 = vsel %vm487, %v2177, 0.0
        %v2192 = vsel %vm487, %v2180, 0.0
        %v2193 = vsel %vm487, %v2183, 0.0
        %v2194 = vsel %vm487, %v2186, 0.0
        %v2195 = vsel %vm487, %v2189, 0.0
        %v2196 = vadd.f32 %v2190, 0.0
        %v2197 = vadd.f32 %v2191, 0.0
        %v2198 = vadd.f32 %v2192, 0.0
        %v2199 = vadd.f32 %v2193, 0.0
        %v2200 = vadd.f32 %v2194, 0.0
        %v2201 = vadd.f32 %v2195, 0.0
        %v2202 = vsel %vm490, %v2155, 0.0
        %v2203 = vsel %vm490, %v2157, 0.0
        %v2204 = vsel %vm490, %v2159, 0.0
        %v2205 = vsel %vm490, %v2161, 0.0
        %v2206 = vsel %vm490, %v2163, 0.0
        %v2207 = vsel %vm490, %v2165, 0.0
        %v2208 = vsel %vm755, %v2202, 0.0
        %2209 = vadd.xlane.f32.xlu0 %v2208
        %v2210 = vpop.xlane.xlu0 %2209
        %v2211 = vsel %vm755, %v2203, 0.0
        %2212 = vadd.xlane.f32.xlu0 %v2211
        %v2213 = vpop.xlane.xlu0 %2212
        %v2214 = vsel %vm755, %v2204, 0.0
        %2215 = vadd.xlane.f32.xlu0 %v2214
        %v2216 = vpop.xlane.xlu0 %2215
        %v2217 = vsel %vm755, %v2205, 0.0
        %2218 = vadd.xlane.f32.xlu0 %v2217
        %v2219 = vpop.xlane.xlu0 %2218
        %v2220 = vsel %vm755, %v2206, 0.0
        %2221 = vadd.xlane.f32.xlu0 %v2220
        %v2222 = vpop.xlane.xlu0 %2221
        %v2223 = vsel %vm755, %v2207, 0.0
        %2224 = vadd.xlane.f32.xlu0 %v2223
        %v2225 = vpop.xlane.xlu0 %2224
        %v2226 = vsel %vm490, %v2210, 0.0
        %v2227 = vsel %vm490, %v2213, 0.0
        %v2228 = vsel %vm490, %v2216, 0.0
        %v2229 = vsel %vm490, %v2219, 0.0
        %v2230 = vsel %vm490, %v2222, 0.0
        %v2231 = vsel %vm490, %v2225, 0.0
        %v2232 = vadd.f32 %v2196, %v2226
        %v2233 = vadd.f32 %v2197, %v2227
        %v2234 = vadd.f32 %v2198, %v2228
        %v2235 = vadd.f32 %v2199, %v2229
        %v2236 = vadd.f32 %v2200, %v2230
        %v2237 = vadd.f32 %v2201, %v2231
        %v2238 = vsel %vm493, %v2155, 0.0
        %v2239 = vsel %vm493, %v2157, 0.0
        %v2240 = vsel %vm493, %v2159, 0.0
        %v2241 = vsel %vm493, %v2161, 0.0
        %v2242 = vsel %vm493, %v2163, 0.0
        %v2243 = vsel %vm493, %v2165, 0.0
        %v2244 = vsel %vm755, %v2238, 0.0
        %2245 = vadd.xlane.f32.xlu0 %v2244
        %v2246 = vpop.xlane.xlu0 %2245
        %v2247 = vsel %vm755, %v2239, 0.0
        %2248 = vadd.xlane.f32.xlu0 %v2247
        %v2249 = vpop.xlane.xlu0 %2248
        %v2250 = vsel %vm755, %v2240, 0.0
        %2251 = vadd.xlane.f32.xlu0 %v2250
        %v2252 = vpop.xlane.xlu0 %2251
        %v2253 = vsel %vm755, %v2241, 0.0
        %2254 = vadd.xlane.f32.xlu0 %v2253
        %v2255 = vpop.xlane.xlu0 %2254
        %v2256 = vsel %vm755, %v2242, 0.0
        %2257 = vadd.xlane.f32.xlu0 %v2256
        %v2258 = vpop.xlane.xlu0 %2257
        %v2259 = vsel %vm755, %v2243, 0.0
        %2260 = vadd.xlane.f32.xlu0 %v2259
        %v2261 = vpop.xlane.xlu0 %2260
        %v2262 = vsel %vm493, %v2246, 0.0
        %v2263 = vsel %vm493, %v2249, 0.0
        %v2264 = vsel %vm493, %v2252, 0.0
        %v2265 = vsel %vm493, %v2255, 0.0
        %v2266 = vsel %vm493, %v2258, 0.0
        %v2267 = vsel %vm493, %v2261, 0.0
        %v2268 = vadd.f32 %v2232, %v2262
        %v2269 = vadd.f32 %v2233, %v2263
        %v2270 = vadd.f32 %v2234, %v2264
        %v2271 = vadd.f32 %v2235, %v2265
        %v2272 = vadd.f32 %v2236, %v2266
        %v2273 = vadd.f32 %v2237, %v2267
        %v2274 = vrcp.pop %v2268
        %v2275 = vmul.f32 %v2268, %v2274
        %v2276 = vsub.f32 1.0, %v2275
        %v2277 = vmul.f32 %v2274, %v2276
        %v2278 = vadd.f32 %v2274, %v2277
        %vm2279 = vweird.f32 %v2268
        %vm2280 = vweird.f32 %v2274
        %vm2281 = vmor %vm2279, %vm2280
        %v2282 = vsel %vm2281, %v2274, %v2278
        %v2283 = vand.u32 2147483647, %v2268
        %vm2284 = vcmp.eq.f32.partialorder %v2283, 8.507059e+37
        %v2285 = vand.u32 %v2268, 2147483648
        %v2286 = vor.u32 1.1754944e-38, %v2285
        %v2287 = vsel %vm2284, %v2286, %v2282
        %v2288 = vmul.f32 %v2155, %v2287
        %v2289 = vrcp.pop %v2269
        %v2290 = vmul.f32 %v2269, %v2289
        %v2291 = vsub.f32 1.0, %v2290
        %v2292 = vmul.f32 %v2289, %v2291
        %v2293 = vadd.f32 %v2289, %v2292
        %vm2294 = vweird.f32 %v2269
        %vm2295 = vweird.f32 %v2289
        %vm2296 = vmor %vm2294, %vm2295
        %v2297 = vsel %vm2296, %v2289, %v2293
        %v2298 = vand.u32 2147483647, %v2269
        %vm2299 = vcmp.eq.f32.partialorder %v2298, 8.507059e+37
        %v2300 = vand.u32 %v2269, 2147483648
        %v2301 = vor.u32 1.1754944e-38, %v2300
        %v2302 = vsel %vm2299, %v2301, %v2297
        %v2303 = vmul.f32 %v2157, %v2302
        %v2304 = vrcp.pop %v2270
        %v2305 = vmul.f32 %v2270, %v2304
        %v2306 = vsub.f32 1.0, %v2305
        %v2307 = vmul.f32 %v2304, %v2306
        %v2308 = vadd.f32 %v2304, %v2307
        %vm2309 = vweird.f32 %v2270
        %vm2310 = vweird.f32 %v2304
        %vm2311 = vmor %vm2309, %vm2310
        %v2312 = vsel %vm2311, %v2304, %v2308
        %v2313 = vand.u32 2147483647, %v2270
        %vm2314 = vcmp.eq.f32.partialorder %v2313, 8.507059e+37
        %v2315 = vand.u32 %v2270, 2147483648
        %v2316 = vor.u32 1.1754944e-38, %v2315
        %v2317 = vsel %vm2314, %v2316, %v2312
        %v2318 = vmul.f32 %v2159, %v2317
        %v2319 = vrcp.pop %v2271
        %v2320 = vmul.f32 %v2271, %v2319
        %v2321 = vsub.f32 1.0, %v2320
        %v2322 = vmul.f32 %v2319, %v2321
        %v2323 = vadd.f32 %v2319, %v2322
        %vm2324 = vweird.f32 %v2271
        %vm2325 = vweird.f32 %v2319
        %vm2326 = vmor %vm2324, %vm2325
        %v2327 = vsel %vm2326, %v2319, %v2323
        %v2328 = vand.u32 2147483647, %v2271
        %vm2329 = vcmp.eq.f32.partialorder %v2328, 8.507059e+37
        %v2330 = vand.u32 %v2271, 2147483648
        %v2331 = vor.u32 1.1754944e-38, %v2330
        %v2332 = vsel %vm2329, %v2331, %v2327
        %v2333 = vmul.f32 %v2161, %v2332
        %v2334 = vrcp.pop %v2272
        %v2335 = vmul.f32 %v2272, %v2334
        %v2336 = vsub.f32 1.0, %v2335
        %v2337 = vmul.f32 %v2334, %v2336
        %v2338 = vadd.f32 %v2334, %v2337
        %vm2339 = vweird.f32 %v2272
        %vm2340 = vweird.f32 %v2334
        %vm2341 = vmor %vm2339, %vm2340
        %v2342 = vsel %vm2341, %v2334, %v2338
        %v2343 = vand.u32 2147483647, %v2272
        %vm2344 = vcmp.eq.f32.partialorder %v2343, 8.507059e+37
        %v2345 = vand.u32 %v2272, 2147483648
        %v2346 = vor.u32 1.1754944e-38, %v2345
        %v2347 = vsel %vm2344, %v2346, %v2342
        %v2348 = vmul.f32 %v2163, %v2347
        %v2349 = vrcp.pop %v2273
        %v2350 = vmul.f32 %v2273, %v2349
        %v2351 = vsub.f32 1.0, %v2350
        %v2352 = vmul.f32 %v2349, %v2351
        %v2353 = vadd.f32 %v2349, %v2352
        %vm2354 = vweird.f32 %v2273
        %vm2355 = vweird.f32 %v2349
        %vm2356 = vmor %vm2354, %vm2355
        %v2357 = vsel %vm2356, %v2349, %v2353
        %v2358 = vand.u32 2147483647, %v2273
        %vm2359 = vcmp.eq.f32.partialorder %v2358, 8.507059e+37
        %v2360 = vand.u32 %v2273, 2147483648
        %v2361 = vor.u32 1.1754944e-38, %v2360
        %v2362 = vsel %vm2359, %v2361, %v2357
        %v2363 = vmul.f32 %v2165, %v2362
        %v2364 = vmul.f32 %v2288, %v1075
        %v2365 = vmul.f32 %v2303, %v1075
        %v2366 = vmul.f32 %v2318, %v1075
        %v2367 = vmul.f32 %v2333, %v1075
        %v2368 = vmul.f32 %v2348, %v1075
        %v2369 = vmul.f32 %v2363, %v1075
        %s2370 = scalar_lea.vmem %s416, 96 [#allocation4]
        %2371 = vst.msk [vmem:[%s2370] sm:$0xff] %vm755, %v2364
        %2372 = vst.msk [vmem:[%s2370 + $0x8] sm:$0xff] %vm755, %v2365
        %2373 = vst.msk [vmem:[%s2370 + $0x10] sm:$0xff] %vm755, %v2366
        %2374 = vst.msk [vmem:[%s2370 + $0x18] sm:$0xff] %vm755, %v2367
        %2375 = vst.msk [vmem:[%s2370 + $0x20] sm:$0xff] %vm755, %v2368
        %2376 = vst.msk [vmem:[%s2370 + $0x28] sm:$0xff] %vm755, %v2369
        %v2378 = vsel %vm755, %v2364, 0
        %v2381 = vsel %vm755, %v2365, 0
        %v2384 = vsel %vm755, %v2366, 0
        %v2387 = vsel %vm755, %v2367, 0
        %v2390 = vsel %vm755, %v2368, 0
        %v2393 = vsel %vm755, %v2369, 0
        %2395 = vmatpush.msra.mxu0 0.0
        %2396 = vmatpush.msra.mxu0 0.0
        %2397 = vmatpush.msra.mxu0 0.0
        %2398 = vmatpush.msra.mxu0 0.0
        %2399 = vmatpush.msra.mxu0 0.0
        %2400 = vmatpush.msra.mxu0 0.0
        %2401 = vmatpush.msra.mxu0 0.0
        %2402 = vmatpush.msra.mxu0 0.0
        %2403 = vmatpush.msra.mxu0 0.0
        %2404 = vmatpush.msra.mxu0 0.0
        %2405 = vmatpush.msra.mxu0 %v1955
        %2406 = vmatpush.msra.mxu0 %v1952
        %2407 = vmatpush.msra.mxu0 %v1949
        %2408 = vmatpush.msra.mxu0 %v1946
        %2409 = vmatpush.msra.mxu0 %v1943
        %2410 = vmatpush.msra.mxu0 %v1940
        %2411 = vmatmul.f32.gmra.mxu0 %v2378
        %v2412 = vpop.f32.mrf.mxu0
        %v2413 = vadd.f32 0.0, %v2412
        %2414 = vmatmul.f32.gmra.mxu0 %v2381
        %v2415 = vpop.f32.mrf.mxu0
        %v2416 = vadd.f32 0.0, %v2415
        %2417 = vmatmul.f32.gmra.mxu0 %v2384
        %v2418 = vpop.f32.mrf.mxu0
        %v2419 = vadd.f32 0.0, %v2418
        %2420 = vmatmul.f32.gmra.mxu0 %v2387
        %v2421 = vpop.f32.mrf.mxu0
        %v2422 = vadd.f32 0.0, %v2421
        %2423 = vmatmul.f32.gmra.mxu0 %v2390
        %v2424 = vpop.f32.mrf.mxu0
        %v2425 = vadd.f32 0.0, %v2424
        %2426 = vmatmul.f32.gmra.mxu0 %v2393
        %v2427 = vpop.f32.mrf.mxu0
        %v2428 = vadd.f32 0.0, %v2427
        %2429 = vdwg.mxu0
        %s2430 = scalar_lea.vmem %s1, 384
        %v2431 = vld [vmem:[%s2430] sm:$0xff]
        %v2432 = vld [vmem:[%s2430 + $0x8] sm:$0xff]
        %v2433 = vld [vmem:[%s2430 + $0x10] sm:$0xff]
        %v2434 = vld [vmem:[%s2430 + $0x18] sm:$0xff]
        %v2435 = vld [vmem:[%s2430 + $0x20] sm:$0xff]
        %v2436 = vld [vmem:[%s2430 + $0x28] sm:$0xff]
        %v2437 = vld [vmem:[%s2430 + $0x30] sm:$0xff]
        %v2438 = vld [vmem:[%s2430 + $0x38] sm:$0xff]
        %v2439 = vld [vmem:[%s2430 + $0x40] sm:$0xff]
        %v2440 = vld [vmem:[%s2430 + $0x48] sm:$0xff]
        %v2441 = vld [vmem:[%s2430 + $0x50] sm:$0xff]
        %v2442 = vld [vmem:[%s2430 + $0x58] sm:$0xff]
        %v2443 = vld [vmem:[%s2430 + $0x60] sm:$0xff]
        %v2444 = vld [vmem:[%s2430 + $0x68] sm:$0xff]
        %v2445 = vld [vmem:[%s2430 + $0x70] sm:$0xff]
        %v2446 = vld [vmem:[%s2430 + $0x78] sm:$0xff]
        %s2447 = scalar_lea.vmem %s4, 3
        %v2448 = vld [vmem:[%s2447] sm:$0x1]
        %v2450 = vperm.slane %v2448, 0
        %2452 = vmatpush.msra.mxu0 %v2446
        %2453 = vmatpush.msra.mxu0 %v2445
        %2454 = vmatpush.msra.mxu0 %v2444
        %2455 = vmatpush.msra.mxu0 %v2443
        %2456 = vmatpush.msra.mxu0 %v2442
        %2457 = vmatpush.msra.mxu0 %v2441
        %2458 = vmatpush.msra.mxu0 %v2440
        %2459 = vmatpush.msra.mxu0 %v2439
        %2460 = vmatpush.msra.mxu0 %v2438
        %2461 = vmatpush.msra.mxu0 %v2437
        %2462 = vmatpush.msra.mxu0 %v2436
        %2463 = vmatpush.msra.mxu0 %v2435
        %2464 = vmatpush.msra.mxu0 %v2434
        %2465 = vmatpush.msra.mxu0 %v2433
        %2466 = vmatpush.msra.mxu0 %v2432
        %2467 = vmatpush.msra.mxu0 %v2431
        %2468 = vmatmul.f32.gmra.mxu0 %v430
        %v2469 = vpop.f32.mrf.mxu0
        %v2470 = vadd.f32 %v2450, %v2469
        %2471 = vmatmul.f32.gmra.mxu0 %v431
        %v2472 = vpop.f32.mrf.mxu0
        %v2473 = vadd.f32 %v2450, %v2472
        %2474 = vmatmul.f32.gmra.mxu0 %v432
        %v2475 = vpop.f32.mrf.mxu0
        %v2476 = vadd.f32 %v2450, %v2475
        %2477 = vmatmul.f32.gmra.mxu0 %v433
        %v2478 = vpop.f32.mrf.mxu0
        %v2479 = vadd.f32 %v2450, %v2478
        %2480 = vmatmul.f32.gmra.mxu0 %v434
        %v2481 = vpop.f32.mrf.mxu0
        %v2482 = vadd.f32 %v2450, %v2481
        %2483 = vmatmul.f32.gmra.mxu0 %v435
        %v2484 = vpop.f32.mrf.mxu0
        %v2485 = vadd.f32 %v2450, %v2484
        %2486 = vdwg.mxu0
        %s2487 = scalar_lea.vmem %s2, 384
        %v2488 = vld [vmem:[%s2487] sm:$0xff]
        %v2489 = vld [vmem:[%s2487 + $0x8] sm:$0xff]
        %v2490 = vld [vmem:[%s2487 + $0x10] sm:$0xff]
        %v2491 = vld [vmem:[%s2487 + $0x18] sm:$0xff]
        %v2492 = vld [vmem:[%s2487 + $0x20] sm:$0xff]
        %v2493 = vld [vmem:[%s2487 + $0x28] sm:$0xff]
        %v2494 = vld [vmem:[%s2487 + $0x30] sm:$0xff]
        %v2495 = vld [vmem:[%s2487 + $0x38] sm:$0xff]
        %v2496 = vld [vmem:[%s2487 + $0x40] sm:$0xff]
        %v2497 = vld [vmem:[%s2487 + $0x48] sm:$0xff]
        %v2498 = vld [vmem:[%s2487 + $0x50] sm:$0xff]
        %v2499 = vld [vmem:[%s2487 + $0x58] sm:$0xff]
        %v2500 = vld [vmem:[%s2487 + $0x60] sm:$0xff]
        %v2501 = vld [vmem:[%s2487 + $0x68] sm:$0xff]
        %v2502 = vld [vmem:[%s2487 + $0x70] sm:$0xff]
        %v2503 = vld [vmem:[%s2487 + $0x78] sm:$0xff]
        %s2504 = scalar_lea.vmem %s5, 3
        %v2505 = vld [vmem:[%s2504] sm:$0x1]
        %v2507 = vperm.slane %v2505, 0
        %2509 = vmatpush.msra.mxu0 %v2503
        %2510 = vmatpush.msra.mxu0 %v2502
        %2511 = vmatpush.msra.mxu0 %v2501
        %2512 = vmatpush.msra.mxu0 %v2500
        %2513 = vmatpush.msra.mxu0 %v2499
        %2514 = vmatpush.msra.mxu0 %v2498
        %2515 = vmatpush.msra.mxu0 %v2497
        %2516 = vmatpush.msra.mxu0 %v2496
        %2517 = vmatpush.msra.mxu0 %v2495
        %2518 = vmatpush.msra.mxu0 %v2494
        %2519 = vmatpush.msra.mxu0 %v2493
        %2520 = vmatpush.msra.mxu0 %v2492
        %2521 = vmatpush.msra.mxu0 %v2491
        %2522 = vmatpush.msra.mxu0 %v2490
        %2523 = vmatpush.msra.mxu0 %v2489
        %2524 = vmatpush.msra.mxu0 %v2488
        %2525 = vmatmul.f32.gmra.mxu0 %v430
        %v2526 = vpop.f32.mrf.mxu0
        %v2527 = vadd.f32 %v2507, %v2526
        %2528 = vmatmul.f32.gmra.mxu0 %v431
        %v2529 = vpop.f32.mrf.mxu0
        %v2530 = vadd.f32 %v2507, %v2529
        %2531 = vmatmul.f32.gmra.mxu0 %v432
        %v2532 = vpop.f32.mrf.mxu0
        %v2533 = vadd.f32 %v2507, %v2532
        %2534 = vmatmul.f32.gmra.mxu0 %v433
        %v2535 = vpop.f32.mrf.mxu0
        %v2536 = vadd.f32 %v2507, %v2535
        %2537 = vmatmul.f32.gmra.mxu0 %v434
        %v2538 = vpop.f32.mrf.mxu0
        %v2539 = vadd.f32 %v2507, %v2538
        %2540 = vmatmul.f32.gmra.mxu0 %v435
        %v2541 = vpop.f32.mrf.mxu0
        %v2542 = vadd.f32 %v2507, %v2541
        %2543 = vdwg.mxu0
        %s2544 = scalar_lea.vmem %s3, 384
        %v2545 = vld [vmem:[%s2544] sm:$0xff]
        %v2546 = vld [vmem:[%s2544 + $0x8] sm:$0xff]
        %v2547 = vld [vmem:[%s2544 + $0x10] sm:$0xff]
        %v2548 = vld [vmem:[%s2544 + $0x18] sm:$0xff]
        %v2549 = vld [vmem:[%s2544 + $0x20] sm:$0xff]
        %v2550 = vld [vmem:[%s2544 + $0x28] sm:$0xff]
        %v2551 = vld [vmem:[%s2544 + $0x30] sm:$0xff]
        %v2552 = vld [vmem:[%s2544 + $0x38] sm:$0xff]
        %v2553 = vld [vmem:[%s2544 + $0x40] sm:$0xff]
        %v2554 = vld [vmem:[%s2544 + $0x48] sm:$0xff]
        %v2555 = vld [vmem:[%s2544 + $0x50] sm:$0xff]
        %v2556 = vld [vmem:[%s2544 + $0x58] sm:$0xff]
        %v2557 = vld [vmem:[%s2544 + $0x60] sm:$0xff]
        %v2558 = vld [vmem:[%s2544 + $0x68] sm:$0xff]
        %v2559 = vld [vmem:[%s2544 + $0x70] sm:$0xff]
        %v2560 = vld [vmem:[%s2544 + $0x78] sm:$0xff]
        %s2561 = scalar_lea.vmem %s6, 3
        %v2562 = vld [vmem:[%s2561] sm:$0x1]
        %v2564 = vperm.slane %v2562, 0
        %2566 = vmatpush.msra.mxu0 %v2560
        %2567 = vmatpush.msra.mxu0 %v2559
        %2568 = vmatpush.msra.mxu0 %v2558
        %2569 = vmatpush.msra.mxu0 %v2557
        %2570 = vmatpush.msra.mxu0 %v2556
        %2571 = vmatpush.msra.mxu0 %v2555
        %2572 = vmatpush.msra.mxu0 %v2554
        %2573 = vmatpush.msra.mxu0 %v2553
        %2574 = vmatpush.msra.mxu0 %v2552
        %2575 = vmatpush.msra.mxu0 %v2551
        %2576 = vmatpush.msra.mxu0 %v2550
        %2577 = vmatpush.msra.mxu0 %v2549
        %2578 = vmatpush.msra.mxu0 %v2548
        %2579 = vmatpush.msra.mxu0 %v2547
        %2580 = vmatpush.msra.mxu0 %v2546
        %2581 = vmatpush.msra.mxu0 %v2545
        %2582 = vmatmul.f32.gmra.mxu0 %v430
        %v2583 = vpop.f32.mrf.mxu0
        %v2584 = vadd.f32 %v2564, %v2583
        %2585 = vmatmul.f32.gmra.mxu0 %v431
        %v2586 = vpop.f32.mrf.mxu0
        %v2587 = vadd.f32 %v2564, %v2586
        %2588 = vmatmul.f32.gmra.mxu0 %v432
        %v2589 = vpop.f32.mrf.mxu0
        %v2590 = vadd.f32 %v2564, %v2589
        %2591 = vmatmul.f32.gmra.mxu0 %v433
        %v2592 = vpop.f32.mrf.mxu0
        %v2593 = vadd.f32 %v2564, %v2592
        %2594 = vmatmul.f32.gmra.mxu0 %v434
        %v2595 = vpop.f32.mrf.mxu0
        %v2596 = vadd.f32 %v2564, %v2595
        %2597 = vmatmul.f32.gmra.mxu0 %v435
        %v2598 = vpop.f32.mrf.mxu0
        %v2599 = vadd.f32 %v2564, %v2598
        %2600 = vdwg.mxu0
        %v2602 = vsel %vm659, %v2470, 0
        %v2605 = vsel %vm659, %v2473, 0
        %v2608 = vsel %vm659, %v2476, 0
        %v2611 = vsel %vm659, %v2479, 0
        %v2614 = vsel %vm659, %v2482, 0
        %v2617 = vsel %vm659, %v2485, 0
        %v2620 = vsel %vm659, %v2527, 0
        %v2623 = vsel %vm659, %v2530, 0
        %v2626 = vsel %vm659, %v2533, 0
        %v2629 = vsel %vm659, %v2536, 0
        %v2632 = vsel %vm659, %v2539, 0
        %v2635 = vsel %vm659, %v2542, 0
        %2637 = vmatpush.xpose.msra.mxu0 0.0
        %2638 = vmatpush.xpose.msra.mxu0 0.0
        %2639 = vmatpush.xpose.msra.mxu0 0.0
        %2640 = vmatpush.xpose.msra.mxu0 0.0
        %2641 = vmatpush.xpose.msra.mxu0 0.0
        %2642 = vmatpush.xpose.msra.mxu0 0.0
        %2643 = vmatpush.xpose.msra.mxu0 0.0
        %2644 = vmatpush.xpose.msra.mxu0 0.0
        %2645 = vmatpush.xpose.msra.mxu0 0.0
        %2646 = vmatpush.xpose.msra.mxu0 0.0
        %2647 = vmatpush.xpose.msra.mxu0 %v2635
        %2648 = vmatpush.xpose.msra.mxu0 %v2632
        %2649 = vmatpush.xpose.msra.mxu0 %v2629
        %2650 = vmatpush.xpose.msra.mxu0 %v2626
        %2651 = vmatpush.xpose.msra.mxu0 %v2623
        %2652 = vmatpush.xpose.msra.mxu0 %v2620
        %2653 = vmatmul.f32.gmra.mxu0 %v2602
        %v2654 = vpop.f32.mrf.mxu0
        %v2655 = vadd.f32 0.0, %v2654
        %2656 = vmatmul.f32.gmra.mxu0 %v2605
        %v2657 = vpop.f32.mrf.mxu0
        %v2658 = vadd.f32 0.0, %v2657
        %2659 = vmatmul.f32.gmra.mxu0 %v2608
        %v2660 = vpop.f32.mrf.mxu0
        %v2661 = vadd.f32 0.0, %v2660
        %2662 = vmatmul.f32.gmra.mxu0 %v2611
        %v2663 = vpop.f32.mrf.mxu0
        %v2664 = vadd.f32 0.0, %v2663
        %2665 = vmatmul.f32.gmra.mxu0 %v2614
        %v2666 = vpop.f32.mrf.mxu0
        %v2667 = vadd.f32 0.0, %v2666
        %2668 = vmatmul.f32.gmra.mxu0 %v2617
        %v2669 = vpop.f32.mrf.mxu0
        %v2670 = vadd.f32 0.0, %v2669
        %2671 = vdwg.mxu0
        %v2672 = vmul.f32 %v2655, 0.17677669
        %v2673 = vmul.f32 %v2658, 0.17677669
        %v2674 = vmul.f32 %v2661, 0.17677669
        %v2675 = vmul.f32 %v2664, 0.17677669
        %v2676 = vmul.f32 %v2667, 0.17677669
        %v2677 = vmul.f32 %v2670, 0.17677669
        %v2678 = vsel %vm737, -1e+09, %v2672
        %v2679 = vsel %vm738, -1e+09, %v2673
        %v2680 = vsel %vm739, -1e+09, %v2674
        %v2681 = vsel %vm740, -1e+09, %v2675
        %v2682 = vsel %vm741, -1e+09, %v2676
        %v2683 = vsel %vm742, -1e+09, %v2677
        %v2684 = vsel %vm487, %v2678, -inf
        %v2685 = vsel %vm487, %v2679, -inf
        %v2686 = vsel %vm487, %v2680, -inf
        %v2687 = vsel %vm487, %v2681, -inf
        %v2688 = vsel %vm487, %v2682, -inf
        %v2689 = vsel %vm487, %v2683, -inf
        %v2690 = vsel %vm755, %v2684, -inf
        %2691 = vmax.xlane.f32.xlu0 %v2690
        %v2692 = vpop.xlane.xlu0 %2691
        %v2693 = vsel %vm755, %v2685, -inf
        %2694 = vmax.xlane.f32.xlu0 %v2693
        %v2695 = vpop.xlane.xlu0 %2694
        %v2696 = vsel %vm755, %v2686, -inf
        %2697 = vmax.xlane.f32.xlu0 %v2696
        %v2698 = vpop.xlane.xlu0 %2697
        %v2699 = vsel %vm755, %v2687, -inf
        %2700 = vmax.xlane.f32.xlu0 %v2699
        %v2701 = vpop.xlane.xlu0 %2700
        %v2702 = vsel %vm755, %v2688, -inf
        %2703 = vmax.xlane.f32.xlu0 %v2702
        %v2704 = vpop.xlane.xlu0 %2703
        %v2705 = vsel %vm755, %v2689, -inf
        %2706 = vmax.xlane.f32.xlu0 %v2705
        %v2707 = vpop.xlane.xlu0 %2706
        %v2708 = vsel %vm487, %v2692, 0.0
        %v2709 = vsel %vm487, %v2695, 0.0
        %v2710 = vsel %vm487, %v2698, 0.0
        %v2711 = vsel %vm487, %v2701, 0.0
        %v2712 = vsel %vm487, %v2704, 0.0
        %v2713 = vsel %vm487, %v2707, 0.0
        %v2714 = vadd.f32 %v2708, 0.0
        %v2715 = vadd.f32 %v2709, 0.0
        %v2716 = vadd.f32 %v2710, 0.0
        %v2717 = vadd.f32 %v2711, 0.0
        %v2718 = vadd.f32 %v2712, 0.0
        %v2719 = vadd.f32 %v2713, 0.0
        %v2720 = vsel %vm490, %v2678, -inf
        %v2721 = vsel %vm490, %v2679, -inf
        %v2722 = vsel %vm490, %v2680, -inf
        %v2723 = vsel %vm490, %v2681, -inf
        %v2724 = vsel %vm490, %v2682, -inf
        %v2725 = vsel %vm490, %v2683, -inf
        %v2726 = vsel %vm755, %v2720, -inf
        %2727 = vmax.xlane.f32.xlu0 %v2726
        %v2728 = vpop.xlane.xlu0 %2727
        %v2729 = vsel %vm755, %v2721, -inf
        %2730 = vmax.xlane.f32.xlu0 %v2729
        %v2731 = vpop.xlane.xlu0 %2730
        %v2732 = vsel %vm755, %v2722, -inf
        %2733 = vmax.xlane.f32.xlu0 %v2732
        %v2734 = vpop.xlane.xlu0 %2733
        %v2735 = vsel %vm755, %v2723, -inf
        %2736 = vmax.xlane.f32.xlu0 %v2735
        %v2737 = vpop.xlane.xlu0 %2736
        %v2738 = vsel %vm755, %v2724, -inf
        %2739 = vmax.xlane.f32.xlu0 %v2738
        %v2740 = vpop.xlane.xlu0 %2739
        %v2741 = vsel %vm755, %v2725, -inf
        %2742 = vmax.xlane.f32.xlu0 %v2741
        %v2743 = vpop.xlane.xlu0 %2742
        %v2744 = vsel %vm490, %v2728, 0.0
        %v2745 = vsel %vm490, %v2731, 0.0
        %v2746 = vsel %vm490, %v2734, 0.0
        %v2747 = vsel %vm490, %v2737, 0.0
        %v2748 = vsel %vm490, %v2740, 0.0
        %v2749 = vsel %vm490, %v2743, 0.0
        %v2750 = vadd.f32 %v2714, %v2744
        %v2751 = vadd.f32 %v2715, %v2745
        %v2752 = vadd.f32 %v2716, %v2746
        %v2753 = vadd.f32 %v2717, %v2747
        %v2754 = vadd.f32 %v2718, %v2748
        %v2755 = vadd.f32 %v2719, %v2749
        %v2756 = vsel %vm493, %v2678, -inf
        %v2757 = vsel %vm493, %v2679, -inf
        %v2758 = vsel %vm493, %v2680, -inf
        %v2759 = vsel %vm493, %v2681, -inf
        %v2760 = vsel %vm493, %v2682, -inf
        %v2761 = vsel %vm493, %v2683, -inf
        %v2762 = vsel %vm755, %v2756, -inf
        %2763 = vmax.xlane.f32.xlu0 %v2762
        %v2764 = vpop.xlane.xlu0 %2763
        %v2765 = vsel %vm755, %v2757, -inf
        %2766 = vmax.xlane.f32.xlu0 %v2765
        %v2767 = vpop.xlane.xlu0 %2766
        %v2768 = vsel %vm755, %v2758, -inf
        %2769 = vmax.xlane.f32.xlu0 %v2768
        %v2770 = vpop.xlane.xlu0 %2769
        %v2771 = vsel %vm755, %v2759, -inf
        %2772 = vmax.xlane.f32.xlu0 %v2771
        %v2773 = vpop.xlane.xlu0 %2772
        %v2774 = vsel %vm755, %v2760, -inf
        %2775 = vmax.xlane.f32.xlu0 %v2774
        %v2776 = vpop.xlane.xlu0 %2775
        %v2777 = vsel %vm755, %v2761, -inf
        %2778 = vmax.xlane.f32.xlu0 %v2777
        %v2779 = vpop.xlane.xlu0 %2778
        %v2780 = vsel %vm493, %v2764, 0.0
        %v2781 = vsel %vm493, %v2767, 0.0
        %v2782 = vsel %vm493, %v2770, 0.0
        %v2783 = vsel %vm493, %v2773, 0.0
        %v2784 = vsel %vm493, %v2776, 0.0
        %v2785 = vsel %vm493, %v2779, 0.0
        %v2786 = vadd.f32 %v2750, %v2780
        %v2787 = vadd.f32 %v2751, %v2781
        %v2788 = vadd.f32 %v2752, %v2782
        %v2789 = vadd.f32 %v2753, %v2783
        %v2790 = vadd.f32 %v2754, %v2784
        %v2791 = vadd.f32 %v2755, %v2785
        %v2792 = vsub.f32 %v2678, %v2786
        %v2793 = vsub.f32 %v2679, %v2787
        %v2794 = vsub.f32 %v2680, %v2788
        %v2795 = vsub.f32 %v2681, %v2789
        %v2796 = vsub.f32 %v2682, %v2790
        %v2797 = vsub.f32 %v2683, %v2791
        %v2798 = vmul.f32 %v2792, 1.442695
        %v2799 = vpow.pop %v2798
        %v2800 = vmul.f32 %v2793, 1.442695
        %v2801 = vpow.pop %v2800
        %v2802 = vmul.f32 %v2794, 1.442695
        %v2803 = vpow.pop %v2802
        %v2804 = vmul.f32 %v2795, 1.442695
        %v2805 = vpow.pop %v2804
        %v2806 = vmul.f32 %v2796, 1.442695
        %v2807 = vpow.pop %v2806
        %v2808 = vmul.f32 %v2797, 1.442695
        %v2809 = vpow.pop %v2808
        %v2810 = vsel %vm487, %v2799, 0.0
        %v2811 = vsel %vm487, %v2801, 0.0
        %v2812 = vsel %vm487, %v2803, 0.0
        %v2813 = vsel %vm487, %v2805, 0.0
        %v2814 = vsel %vm487, %v2807, 0.0
        %v2815 = vsel %vm487, %v2809, 0.0
        %v2816 = vsel %vm755, %v2810, 0.0
        %2817 = vadd.xlane.f32.xlu0 %v2816
        %v2818 = vpop.xlane.xlu0 %2817
        %v2819 = vsel %vm755, %v2811, 0.0
        %2820 = vadd.xlane.f32.xlu0 %v2819
        %v2821 = vpop.xlane.xlu0 %2820
        %v2822 = vsel %vm755, %v2812, 0.0
        %2823 = vadd.xlane.f32.xlu0 %v2822
        %v2824 = vpop.xlane.xlu0 %2823
        %v2825 = vsel %vm755, %v2813, 0.0
        %2826 = vadd.xlane.f32.xlu0 %v2825
        %v2827 = vpop.xlane.xlu0 %2826
        %v2828 = vsel %vm755, %v2814, 0.0
        %2829 = vadd.xlane.f32.xlu0 %v2828
        %v2830 = vpop.xlane.xlu0 %2829
        %v2831 = vsel %vm755, %v2815, 0.0
        %2832 = vadd.xlane.f32.xlu0 %v2831
        %v2833 = vpop.xlane.xlu0 %2832
        %v2834 = vsel %vm487, %v2818, 0.0
        %v2835 = vsel %vm487, %v2821, 0.0
        %v2836 = vsel %vm487, %v2824, 0.0
        %v2837 = vsel %vm487, %v2827, 0.0
        %v2838 = vsel %vm487, %v2830, 0.0
        %v2839 = vsel %vm487, %v2833, 0.0
        %v2840 = vadd.f32 %v2834, 0.0
        %v2841 = vadd.f32 %v2835, 0.0
        %v2842 = vadd.f32 %v2836, 0.0
        %v2843 = vadd.f32 %v2837, 0.0
        %v2844 = vadd.f32 %v2838, 0.0
        %v2845 = vadd.f32 %v2839, 0.0
        %v2846 = vsel %vm490, %v2799, 0.0
        %v2847 = vsel %vm490, %v2801, 0.0
        %v2848 = vsel %vm490, %v2803, 0.0
        %v2849 = vsel %vm490, %v2805, 0.0
        %v2850 = vsel %vm490, %v2807, 0.0
        %v2851 = vsel %vm490, %v2809, 0.0
        %v2852 = vsel %vm755, %v2846, 0.0
        %2853 = vadd.xlane.f32.xlu0 %v2852
        %v2854 = vpop.xlane.xlu0 %2853
        %v2855 = vsel %vm755, %v2847, 0.0
        %2856 = vadd.xlane.f32.xlu0 %v2855
        %v2857 = vpop.xlane.xlu0 %2856
        %v2858 = vsel %vm755, %v2848, 0.0
        %2859 = vadd.xlane.f32.xlu0 %v2858
        %v2860 = vpop.xlane.xlu0 %2859
        %v2861 = vsel %vm755, %v2849, 0.0
        %2862 = vadd.xlane.f32.xlu0 %v2861
        %v2863 = vpop.xlane.xlu0 %2862
        %v2864 = vsel %vm755, %v2850, 0.0
        %2865 = vadd.xlane.f32.xlu0 %v2864
        %v2866 = vpop.xlane.xlu0 %2865
        %v2867 = vsel %vm755, %v2851, 0.0
        %2868 = vadd.xlane.f32.xlu0 %v2867
        %v2869 = vpop.xlane.xlu0 %2868
        %v2870 = vsel %vm490, %v2854, 0.0
        %v2871 = vsel %vm490, %v2857, 0.0
        %v2872 = vsel %vm490, %v2860, 0.0
        %v2873 = vsel %vm490, %v2863, 0.0
        %v2874 = vsel %vm490, %v2866, 0.0
        %v2875 = vsel %vm490, %v2869, 0.0
        %v2876 = vadd.f32 %v2840, %v2870
        %v2877 = vadd.f32 %v2841, %v2871
        %v2878 = vadd.f32 %v2842, %v2872
        %v2879 = vadd.f32 %v2843, %v2873
        %v2880 = vadd.f32 %v2844, %v2874
        %v2881 = vadd.f32 %v2845, %v2875
        %v2882 = vsel %vm493, %v2799, 0.0
        %v2883 = vsel %vm493, %v2801, 0.0
        %v2884 = vsel %vm493, %v2803, 0.0
        %v2885 = vsel %vm493, %v2805, 0.0
        %v2886 = vsel %vm493, %v2807, 0.0
        %v2887 = vsel %vm493, %v2809, 0.0
        %v2888 = vsel %vm755, %v2882, 0.0
        %2889 = vadd.xlane.f32.xlu0 %v2888
        %v2890 = vpop.xlane.xlu0 %2889
        %v2891 = vsel %vm755, %v2883, 0.0
        %2892 = vadd.xlane.f32.xlu0 %v2891
        %v2893 = vpop.xlane.xlu0 %2892
        %v2894 = vsel %vm755, %v2884, 0.0
        %2895 = vadd.xlane.f32.xlu0 %v2894
        %v2896 = vpop.xlane.xlu0 %2895
        %v2897 = vsel %vm755, %v2885, 0.0
        %2898 = vadd.xlane.f32.xlu0 %v2897
        %v2899 = vpop.xlane.xlu0 %2898
        %v2900 = vsel %vm755, %v2886, 0.0
        %2901 = vadd.xlane.f32.xlu0 %v2900
        %v2902 = vpop.xlane.xlu0 %2901
        %v2903 = vsel %vm755, %v2887, 0.0
        %2904 = vadd.xlane.f32.xlu0 %v2903
        %v2905 = vpop.xlane.xlu0 %2904
        %v2906 = vsel %vm493, %v2890, 0.0
        %v2907 = vsel %vm493, %v2893, 0.0
        %v2908 = vsel %vm493, %v2896, 0.0
        %v2909 = vsel %vm493, %v2899, 0.0
        %v2910 = vsel %vm493, %v2902, 0.0
        %v2911 = vsel %vm493, %v2905, 0.0
        %v2912 = vadd.f32 %v2876, %v2906
        %v2913 = vadd.f32 %v2877, %v2907
        %v2914 = vadd.f32 %v2878, %v2908
        %v2915 = vadd.f32 %v2879, %v2909
        %v2916 = vadd.f32 %v2880, %v2910
        %v2917 = vadd.f32 %v2881, %v2911
        %v2918 = vrcp.pop %v2912
        %v2919 = vmul.f32 %v2912, %v2918
        %v2920 = vsub.f32 1.0, %v2919
        %v2921 = vmul.f32 %v2918, %v2920
        %v2922 = vadd.f32 %v2918, %v2921
        %vm2923 = vweird.f32 %v2912
        %vm2924 = vweird.f32 %v2918
        %vm2925 = vmor %vm2923, %vm2924
        %v2926 = vsel %vm2925, %v2918, %v2922
        %v2927 = vand.u32 2147483647, %v2912
        %vm2928 = vcmp.eq.f32.partialorder %v2927, 8.507059e+37
        %v2929 = vand.u32 %v2912, 2147483648
        %v2930 = vor.u32 1.1754944e-38, %v2929
        %v2931 = vsel %vm2928, %v2930, %v2926
        %v2932 = vmul.f32 %v2799, %v2931
        %v2933 = vrcp.pop %v2913
        %v2934 = vmul.f32 %v2913, %v2933
        %v2935 = vsub.f32 1.0, %v2934
        %v2936 = vmul.f32 %v2933, %v2935
        %v2937 = vadd.f32 %v2933, %v2936
        %vm2938 = vweird.f32 %v2913
        %vm2939 = vweird.f32 %v2933
        %vm2940 = vmor %vm2938, %vm2939
        %v2941 = vsel %vm2940, %v2933, %v2937
        %v2942 = vand.u32 2147483647, %v2913
        %vm2943 = vcmp.eq.f32.partialorder %v2942, 8.507059e+37
        %v2944 = vand.u32 %v2913, 2147483648
        %v2945 = vor.u32 1.1754944e-38, %v2944
        %v2946 = vsel %vm2943, %v2945, %v2941
        %v2947 = vmul.f32 %v2801, %v2946
        %v2948 = vrcp.pop %v2914
        %v2949 = vmul.f32 %v2914, %v2948
        %v2950 = vsub.f32 1.0, %v2949
        %v2951 = vmul.f32 %v2948, %v2950
        %v2952 = vadd.f32 %v2948, %v2951
        %vm2953 = vweird.f32 %v2914
        %vm2954 = vweird.f32 %v2948
        %vm2955 = vmor %vm2953, %vm2954
        %v2956 = vsel %vm2955, %v2948, %v2952
        %v2957 = vand.u32 2147483647, %v2914
        %vm2958 = vcmp.eq.f32.partialorder %v2957, 8.507059e+37
        %v2959 = vand.u32 %v2914, 2147483648
        %v2960 = vor.u32 1.1754944e-38, %v2959
        %v2961 = vsel %vm2958, %v2960, %v2956
        %v2962 = vmul.f32 %v2803, %v2961
        %v2963 = vrcp.pop %v2915
        %v2964 = vmul.f32 %v2915, %v2963
        %v2965 = vsub.f32 1.0, %v2964
        %v2966 = vmul.f32 %v2963, %v2965
        %v2967 = vadd.f32 %v2963, %v2966
        %vm2968 = vweird.f32 %v2915
        %vm2969 = vweird.f32 %v2963
        %vm2970 = vmor %vm2968, %vm2969
        %v2971 = vsel %vm2970, %v2963, %v2967
        %v2972 = vand.u32 2147483647, %v2915
        %vm2973 = vcmp.eq.f32.partialorder %v2972, 8.507059e+37
        %v2974 = vand.u32 %v2915, 2147483648
        %v2975 = vor.u32 1.1754944e-38, %v2974
        %v2976 = vsel %vm2973, %v2975, %v2971
        %v2977 = vmul.f32 %v2805, %v2976
        %v2978 = vrcp.pop %v2916
        %v2979 = vmul.f32 %v2916, %v2978
        %v2980 = vsub.f32 1.0, %v2979
        %v2981 = vmul.f32 %v2978, %v2980
        %v2982 = vadd.f32 %v2978, %v2981
        %vm2983 = vweird.f32 %v2916
        %vm2984 = vweird.f32 %v2978
        %vm2985 = vmor %vm2983, %vm2984
        %v2986 = vsel %vm2985, %v2978, %v2982
        %v2987 = vand.u32 2147483647, %v2916
        %vm2988 = vcmp.eq.f32.partialorder %v2987, 8.507059e+37
        %v2989 = vand.u32 %v2916, 2147483648
        %v2990 = vor.u32 1.1754944e-38, %v2989
        %v2991 = vsel %vm2988, %v2990, %v2986
        %v2992 = vmul.f32 %v2807, %v2991
        %v2993 = vrcp.pop %v2917
        %v2994 = vmul.f32 %v2917, %v2993
        %v2995 = vsub.f32 1.0, %v2994
        %v2996 = vmul.f32 %v2993, %v2995
        %v2997 = vadd.f32 %v2993, %v2996
        %vm2998 = vweird.f32 %v2917
        %vm2999 = vweird.f32 %v2993
        %vm3000 = vmor %vm2998, %vm2999
        %v3001 = vsel %vm3000, %v2993, %v2997
        %v3002 = vand.u32 2147483647, %v2917
        %vm3003 = vcmp.eq.f32.partialorder %v3002, 8.507059e+37
        %v3004 = vand.u32 %v2917, 2147483648
        %v3005 = vor.u32 1.1754944e-38, %v3004
        %v3006 = vsel %vm3003, %v3005, %v3001
        %v3007 = vmul.f32 %v2809, %v3006
        %v3008 = vmul.f32 %v2932, %v1075
        %v3009 = vmul.f32 %v2947, %v1075
        %v3010 = vmul.f32 %v2962, %v1075
        %v3011 = vmul.f32 %v2977, %v1075
        %v3012 = vmul.f32 %v2992, %v1075
        %v3013 = vmul.f32 %v3007, %v1075
        %s3014 = scalar_lea.vmem %s416, 144 [#allocation4]
        %3015 = vst.msk [vmem:[%s3014] sm:$0xff] %vm755, %v3008
        %3016 = vst.msk [vmem:[%s3014 + $0x8] sm:$0xff] %vm755, %v3009
        %3017 = vst.msk [vmem:[%s3014 + $0x10] sm:$0xff] %vm755, %v3010
        %3018 = vst.msk [vmem:[%s3014 + $0x18] sm:$0xff] %vm755, %v3011
        %3019 = vst.msk [vmem:[%s3014 + $0x20] sm:$0xff] %vm755, %v3012
        %3020 = vst.msk [vmem:[%s3014 + $0x28] sm:$0xff] %vm755, %v3013
        %v3022 = vsel %vm755, %v3008, 0
        %v3025 = vsel %vm755, %v3009, 0
        %v3028 = vsel %vm755, %v3010, 0
        %v3031 = vsel %vm755, %v3011, 0
        %v3034 = vsel %vm755, %v3012, 0
        %v3037 = vsel %vm755, %v3013, 0
        %3039 = vmatpush.msra.mxu0 0.0
        %3040 = vmatpush.msra.mxu0 0.0
        %3041 = vmatpush.msra.mxu0 0.0
        %3042 = vmatpush.msra.mxu0 0.0
        %3043 = vmatpush.msra.mxu0 0.0
        %3044 = vmatpush.msra.mxu0 0.0
        %3045 = vmatpush.msra.mxu0 0.0
        %3046 = vmatpush.msra.mxu0 0.0
        %3047 = vmatpush.msra.mxu0 0.0
        %3048 = vmatpush.msra.mxu0 0.0
        %3049 = vmatpush.msra.mxu0 %v2599
        %3050 = vmatpush.msra.mxu0 %v2596
        %3051 = vmatpush.msra.mxu0 %v2593
        %3052 = vmatpush.msra.mxu0 %v2590
        %3053 = vmatpush.msra.mxu0 %v2587
        %3054 = vmatpush.msra.mxu0 %v2584
        %3055 = vmatmul.f32.gmra.mxu0 %v3022
        %v3056 = vpop.f32.mrf.mxu0
        %v3057 = vadd.f32 0.0, %v3056
        %3058 = vmatmul.f32.gmra.mxu0 %v3025
        %v3059 = vpop.f32.mrf.mxu0
        %v3060 = vadd.f32 0.0, %v3059
        %3061 = vmatmul.f32.gmra.mxu0 %v3028
        %v3062 = vpop.f32.mrf.mxu0
        %v3063 = vadd.f32 0.0, %v3062
        %3064 = vmatmul.f32.gmra.mxu0 %v3031
        %v3065 = vpop.f32.mrf.mxu0
        %v3066 = vadd.f32 0.0, %v3065
        %3067 = vmatmul.f32.gmra.mxu0 %v3034
        %v3068 = vpop.f32.mrf.mxu0
        %v3069 = vadd.f32 0.0, %v3068
        %3070 = vmatmul.f32.gmra.mxu0 %v3037
        %v3071 = vpop.f32.mrf.mxu0
        %v3072 = vadd.f32 0.0, %v3071
        %3073 = vdwg.mxu0
        %3080 = vrot.lane.b32.xlu0 %v1769, 32
        %v3081 = vpop.permute.xlu0 %3080
        %3082 = vrot.lane.b32.xlu0 %v1772, 32
        %v3083 = vpop.permute.xlu0 %3082
        %3084 = vrot.lane.b32.xlu0 %v1775, 32
        %v3085 = vpop.permute.xlu0 %3084
        %3086 = vrot.lane.b32.xlu0 %v1778, 32
        %v3087 = vpop.permute.xlu0 %3086
        %3088 = vrot.lane.b32.xlu0 %v1781, 32
        %v3089 = vpop.permute.xlu0 %3088
        %3090 = vrot.lane.b32.xlu0 %v1784, 32
        %v3091 = vpop.permute.xlu0 %3090
        %3104 = vrot.lane.b32.xlu0 %v2413, 64
        %v3105 = vpop.permute.xlu0 %3104
        %3106 = vrot.lane.b32.xlu0 %v2416, 64
        %v3107 = vpop.permute.xlu0 %3106
        %3108 = vrot.lane.b32.xlu0 %v2419, 64
        %v3109 = vpop.permute.xlu0 %3108
        %3110 = vrot.lane.b32.xlu0 %v2422, 64
        %v3111 = vpop.permute.xlu0 %3110
        %3112 = vrot.lane.b32.xlu0 %v2425, 64
        %v3113 = vpop.permute.xlu0 %3112
        %3114 = vrot.lane.b32.xlu0 %v2428, 64
        %v3115 = vpop.permute.xlu0 %3114
        %3128 = vrot.lane.b32.xlu0 %v3057, 96
        %v3129 = vpop.permute.xlu0 %3128
        %3130 = vrot.lane.b32.xlu0 %v3060, 96
        %v3131 = vpop.permute.xlu0 %3130
        %3132 = vrot.lane.b32.xlu0 %v3063, 96
        %v3133 = vpop.permute.xlu0 %3132
        %3134 = vrot.lane.b32.xlu0 %v3066, 96
        %v3135 = vpop.permute.xlu0 %3134
        %3136 = vrot.lane.b32.xlu0 %v3069, 96
        %v3137 = vpop.permute.xlu0 %3136
        %3138 = vrot.lane.b32.xlu0 %v3072, 96
        %v3139 = vpop.permute.xlu0 %3138
        %v3146 = vsel %vm659, %v1125, %v3081
        %v3147 = vsel %vm659, %v1128, %v3083
        %v3148 = vsel %vm659, %v1131, %v3085
        %v3149 = vsel %vm659, %v1134, %v3087
        %v3150 = vsel %vm659, %v1137, %v3089
        %v3151 = vsel %vm659, %v1140, %v3091
        %vm3152 = vcmask 523264
        %v3153 = vsel %vm3152, %v3146, %v3105
        %v3154 = vsel %vm3152, %v3147, %v3107
        %v3155 = vsel %vm3152, %v3148, %v3109
        %v3156 = vsel %vm3152, %v3149, %v3111
        %v3157 = vsel %vm3152, %v3150, %v3113
        %v3158 = vsel %vm3152, %v3151, %v3115
        %vm3159 = vcmask 785408
        %v3160 = vsel %vm3159, %v3153, %v3129
        %v3161 = vsel %vm3159, %v3154, %v3131
        %v3162 = vsel %vm3159, %v3155, %v3133
        %v3163 = vsel %vm3159, %v3156, %v3135
        %v3164 = vsel %vm3159, %v3157, %v3137
        %v3165 = vsel %vm3159, %v3158, %v3139
        %3166 = vst [vmem:[%s409] sm:$0xff] %v3160
        %3167 = vst [vmem:[%s409 + $0x8] sm:$0xff] %v3161
        %3168 = vst [vmem:[%s409 + $0x10] sm:$0xff] %v3162
        %3169 = vst [vmem:[%s409 + $0x18] sm:$0xff] %v3163
        %3170 = vst [vmem:[%s409 + $0x20] sm:$0xff] %v3164
        %3171 = vst [vmem:[%s409 + $0x28] sm:$0xff] %v3165
        %s3172 = sand.u32 %s262, 1
        %s3173 = scalar_lea.sflag [#allocation3], %s3172
        %s3174 = sand.u32 %s262, 1
        %s3175 = smul.addr %s3174, 48
        %s3176 = scalar_lea.vmem [#allocation2], %s3175
        %s3177 = sand.u32 %s288, 1
        %s3178 = scalar_lea.sflag [#allocation5], %s3177
        %s3179 = sand.u32 %s288, 1
        %s3180 = smul.addr %s3179, 192
        %s3181 = scalar_lea.vmem [#allocation4], %s3180
        // Predicated region
        $region61: #{tpu_custom_call.1} parent=59 // pred_check
          %p3182 = pneg %p272
        $region62: #{tpu_custom_call.1} parent=59 // pred_check_branch
          %3184 = sbr.rel (%p3182) target = $region64
        $region63: #{tpu_custom_call.1} parent=59 // pred_region
          %3186 = vsyncadd %s3173, 0
          %s3187 = smul.addr %s29, 6
          %s3188 = smul.addr %s3187, 8
          %s3189 = scalar_lea.hbm %s10, %s3188
          %s3190 = sshll.u32 %s3176, 4
          %s3191 = int_to_ptr.vmem [resolvable:$true] %s3190
          %s3192 = sshll.u32 %s3189, 4
          %s3193 = int_to_ptr.hbm [resolvable:$true] %s3192
          %3198 = dma.vmem_to_hbm [thread:$0]  %s3191, 768, %s3193, %s3173, 128, 128, 8
        $region64: #{tpu_custom_call.1} parent=59 // pred_fallthru
          _
        // Predicated region
        $region65: #{tpu_custom_call.1} parent=59 // pred_check
          %p3199 = pneg %p298
        $region66: #{tpu_custom_call.1} parent=59 // pred_check_branch
          %3201 = sbr.rel (%p3199) target = $region68
        $region67: #{tpu_custom_call.1} parent=59 // pred_region
          %3203 = vsyncadd %s3178, 0
          %s3204 = smul.addr %s29, 24
          %s3205 = smul.addr %s3204, 8
          %s3206 = scalar_lea.hbm %s11, %s3205
          %s3207 = sshll.u32 %s3181, 4
          %s3208 = int_to_ptr.vmem [resolvable:$true] %s3207
          %s3209 = sshll.u32 %s3206, 4
          %s3210 = int_to_ptr.hbm [resolvable:$true] %s3209
          %3215 = dma.vmem_to_hbm [thread:$0]  %s3208, 3072, %s3210, %s3178, 128, 128, 8
        $region68: #{tpu_custom_call.1} parent=59 // pred_fallthru
          _
      $region60: #{tpu_custom_call.1} parent=5 // pred_fallthru
        _
      %p3216 = scmp.le.s32.totalorder 2, %s24
      // Predicated region
      $region69: #{tpu_custom_call.1} parent=5 // pred_check
        %p3217 = pneg %p3216
      $region70: #{tpu_custom_call.1} parent=5 // pred_check_branch
        %3219 = sbr.rel (%p3217) target = $region72
      $region71: #{tpu_custom_call.1} parent=5 // pred_region
        %s3220 = ssub.s32 %s24, 2
        // Predicated region
        $region73: #{tpu_custom_call.1} parent=71 // pred_check
          %p3221 = pneg %p278
        $region74: #{tpu_custom_call.1} parent=71 // pred_check_branch
          %3223 = sbr.rel (%p3221) target = $region76
        $region75: #{tpu_custom_call.1} parent=71 // pred_region
          %s3224 = sand.u32 %s263, 1
          %s3225 = scalar_lea.sflag [#allocation3], %s3224
          %s3226 = sand.u32 %s263, 1
          %s3227 = smul.addr %s3226, 48
          %s3228 = scalar_lea.vmem [#allocation2], %s3227
          %3230 = dma.done %s3225, 768
        $region76: #{tpu_custom_call.1} parent=71 // pred_fallthru
          _
        // Predicated region
        $region77: #{tpu_custom_call.1} parent=71 // pred_check
          %p3231 = pneg %p304
        $region78: #{tpu_custom_call.1} parent=71 // pred_check_branch
          %3233 = sbr.rel (%p3231) target = $region80
        $region79: #{tpu_custom_call.1} parent=71 // pred_region
          %s3234 = sand.u32 %s289, 1
          %s3235 = scalar_lea.sflag [#allocation5], %s3234
          %s3236 = sand.u32 %s289, 1
          %s3237 = smul.addr %s3236, 192
          %s3238 = scalar_lea.vmem [#allocation4], %s3237
          %3240 = dma.done %s3235, 3072
        $region80: #{tpu_custom_call.1} parent=71 // pred_fallthru
          _
      $region72: #{tpu_custom_call.1} parent=5 // pred_fallthru
        _
    $region6: #{tpu_custom_call.1} parent=1 // loop_footer
      %s28 = sadd.s32 1, %s24
    $region7: #{tpu_custom_call.1} parent=1 // loop_footer_branch
      %23 = sbr.rel target = $region3
    $region8: #{tpu_custom_call.1} parent=1 // loop_exit
      _
    %3241 = vsyncpa [#allocation3], 1
    %s3242 = scalar_lea.sflag [#allocation3], 1
    %3243 = vsyncpa %s3242, 1
    %3244 = vsyncpa [#allocation5], 1
    %s3245 = scalar_lea.sflag [#allocation5], 1
    %3246 = vsyncpa %s3245, 1

</llo_original>
